<compile_context>
chip_gen: v5e
topology: v5e:2x2
jax: 0.10.0
libtpu: 0.0.40
codegen_flags: <defaults>
</compile_context>

<pallas_src>
import jax
import jax.numpy as jnp
from jax.experimental import pallas as pl
from jax.experimental.pallas import tpu as pltpu


def _round_up(x, m):
    return (x + m - 1) // m * m


def _choose_tile(batch, tile_b):
    """Pick the batch tile (rows / grid step), always a multiple of 8."""
    tile_b = max(8, _round_up(tile_b, 8))
    if batch <= tile_b:
        # Tiny batch: one step on one core (avoids duplicating the weight
        # DMA across both v7x TensorCores for no pipelining benefit).
        return min(_round_up(batch, 8), tile_b)
    n_steps = pl.cdiv(batch, tile_b)
    if n_steps < 4:
        # Mid-size batch: shrink the tile so each v7x TensorCore gets >= 2
        # grid steps and the weight/activation DMA can overlap compute.
        return max(8, _round_up(pl.cdiv(batch, 4), 8))
    return tile_b


def _projection_kernel(x_ref, wt_ref, o_ref):
    # x_ref : (TB, D_IN)      activation tile (native dtype, cast to bf16)
    # wt_ref: (D_IN, D_OUT_P) full pre-transposed, lane-padded bf16 weight
    # o_ref : (TB, D_OUT_P)   L2-normalized projected tile
    #
    # bf16 x bf16 operands -> MXU native path; accumulate in f32.
    y = jnp.dot(x_ref[...].astype(jnp.bfloat16), wt_ref[...],
                preferred_element_type=jnp.float32)

    # Projection L2 norm in f32.  Padded output lanes are zero and do not
    # change the sum of squares.  The eps clamps the norm at ~1e-12 so
    # all-zero rows produce 0 instead of NaN (the PyTorch module would NaN).
    ssq = jnp.sum(y * y, axis=-1, keepdims=True)
    inv = jax.lax.rsqrt(jnp.maximum(ssq, jnp.float32(1e-24)))
    o_ref[...] = (y * inv).astype(o_ref.dtype)


def _projection_forward(x, wt, *, d_out, tile_b, out_dtype):
    """x: [B, d_in]; wt: [d_in, d_out_padded] (transposed, lane-padded, bf16)."""
    B, d_in = x.shape
    d_in_w, d_out_p = wt.shape
    assert d_in_w == d_in, "weight / activation feature-dim mismatch"
    assert d_out_p % 128 == 0
    if out_dtype is None:
        out_dtype = x.dtype

    tb = _choose_tile(B, tile_b)
    grid_b = pl.cdiv(B, tb)

    # VMEM footprint: double-buffered x / out tiles + the (constant-index,
    # second buffer idle) resident weight block.  ~2x + slack for compiler
    # temporaries (bf16 cast of the x tile, f32 y tile).
    w_bytes = 2 * d_in * d_out_p * jnp.dtype(wt.dtype).itemsize
    x_bytes = 2 * tb * d_in * jnp.dtype(x.dtype).itemsize
    o_bytes = 2 * tb * d_out_p * jnp.dtype(out_dtype).itemsize
    vmem_limit = min(2 * (w_bytes + x_bytes + o_bytes) + (4 << 20), 64 << 20)

    out = pl.pallas_call(
        _projection_kernel,
        out_shape=jax.ShapeDtypeStruct((B, d_out_p), out_dtype),
        grid=(grid_b,),
        in_specs=[
            pl.BlockSpec((tb, d_in), lambda i: (i, 0)),
            # Constant block index -> the weight is DMA'd into VMEM once and
            # reused across all grid steps.
            pl.BlockSpec((d_in, d_out_p), lambda i: (0, 0)),
        ],
        out_specs=pl.BlockSpec((tb, d_out_p), lambda i: (i, 0)),
        compiler_params=pltpu.CompilerParams(
            dimension_semantics=("parallel",),
            vmem_limit_bytes=vmem_limit,
        ),
    )(x, wt)

    # Drop lane padding only if any was added (no batch padding to drop).
    if d_out_p != d_out:
        out = out[:, :d_out]
    return out


_forward_jit = jax.jit(
    _projection_forward, static_argnames=("d_out", "tile_b", "out_dtype"))


def make_projection_head(weight, *, tile_b=128, out_dtype=None):
    """Build the projection-head callable for a PyTorch-convention weight.

    Args:
      weight: [proj_dim, vision_dim] Linear weight (no bias).
      tile_b: batch tile (rows per grid step).  128 suits v5e; 256-512 is a
              reasonable sweep on v6e's 128 MiB VMEM for batches >= ~512.
      out_dtype: output dtype (default: same as the activations).  Pass
              jnp.bfloat16 to halve writeback if downstream accepts it.
    Returns:
      apply(x): x [B, vision_dim] -> [B, proj_dim] L2-normalized projection.
    """
    d_out, d_in = weight.shape
    d_out_p = _round_up(d_out, 128)                 # lane-dense output stores
    # Transpose + cast to bf16 + lane pad ONCE, outside the per-call hot path.
    wt = jnp.asarray(weight, dtype=jnp.bfloat16).T  # [d_in, d_out]
    if d_out_p != d_out:
        wt = jnp.pad(wt, ((0, 0), (0, d_out_p - d_out)))

    def apply(x):
        return _forward_jit(x, wt, d_out=d_out, tile_b=tile_b,
                            out_dtype=out_dtype)

    return apply


def projection_layer_ref(x, weight):
    """Pure-JAX reference matching the PyTorch module (both norms, f32)."""
    xf = jnp.asarray(x, jnp.float32)
    wf = jnp.asarray(weight, jnp.float32)
    xn = xf / jnp.linalg.norm(xf, axis=-1, keepdims=True)
    y = jnp.matmul(xn, wf.T, precision=jax.lax.Precision.HIGHEST)
    y = y / jnp.linalg.norm(y, axis=-1, keepdims=True)
    return y.astype(x.dtype)


if __name__ == "__main__":
    key = jax.random.PRNGKey(0)
    kx, kw = jax.random.split(key)

    # Shapes consistent with VisionModel: resnet50 embedding 2048 -> proj 512.
    # Ragged batch (200) exercises the no-pad ragged-last-block path and the
    # grid-shaping heuristic (tb=56, grid=4 -> >= 2 steps per v7x core).
    B, D_IN, D_OUT = 200, 2048, 512
    x = jax.random.normal(kx, (B, D_IN), dtype=jnp.float32)
    weight = (jax.random.normal(kw, (D_OUT, D_IN), dtype=jnp.float32)
              / jnp.sqrt(jnp.float32(D_IN)))

    head = make_projection_head(weight, tile_b=128)
    out = jax.block_until_ready(head(x))

    ref = projection_layer_ref(x, weight)
    assert out.shape == (B, D_OUT)
    assert out.dtype == x.dtype
    # Rows must be unit-norm.
    assert jnp.allclose(jnp.linalg.norm(out, axis=-1), 1.0, atol=1e-3)
    # Tolerance accounts for the bf16-operand MXU matmul (f32 accumulation)
    # vs the HIGHEST-precision f32 reference; observed error is ~1e-4.
    assert jnp.allclose(out, ref, atol=2e-3, rtol=2e-3), "mismatch vs reference"

    print("KERNEL_OK")
</pallas_src>

<mosaic_0001>
module attributes {stable_mosaic.version = 11 : i64} {
  func.func @_projection_kernel(%arg0: i32, %arg1: memref<56x2048xf32, #tpu.memory_space<vmem>>, %arg2: memref<2048x512xbf16, #tpu.memory_space<vmem>>, %arg3: memref<56x512xf32, #tpu.memory_space<vmem>>) attributes {dimension_semantics = [#tpu.dimension_semantics<parallel>], iteration_bounds = array<i64: 4>, scalar_prefetch = 0 : i64, scratch_operands = 0 : i64, tpu.core_type = #tpu.core_type<tc>, window_params = [{transform_indices = @transform_0, window_bounds = array<i64: 56, 2048>}, {pipeline_mode = #tpu.pipeline_mode<synchronous>, transform_indices = @transform_1, window_bounds = array<i64: 2048, 512>}, {transform_indices = @transform_2, window_bounds = array<i64: 56, 512>}]} {
    %c0 = arith.constant 0 : index
    %c0_0 = arith.constant 0 : index
    %0 = vector.load %arg1[%c0, %c0_0] : memref<56x2048xf32, #tpu.memory_space<vmem>>, vector<56x2048xf32>
    %1 = arith.truncf %0 : vector<56x2048xf32> to vector<56x2048xbf16>
    %c0_1 = arith.constant 0 : index
    %c0_2 = arith.constant 0 : index
    %2 = vector.load %arg2[%c0_1, %c0_2] : memref<2048x512xbf16, #tpu.memory_space<vmem>>, vector<2048x512xbf16>
    %cst = arith.constant dense<0.000000e+00> : vector<56x512xf32>
    %3 = tpu.matmul %1, %2, %cst {dimension_numbers = #tpu.dot_dimension_numbers<[1], [0], [0], [1], [0, 0, 1, 1], [], []>} : vector<56x2048xbf16>, vector<2048x512xbf16>, vector<56x512xf32> -> vector<56x512xf32>
    %4 = arith.mulf %3, %3 : vector<56x512xf32>
    %cst_3 = arith.constant dense<0.000000e+00> : vector<56xf32>
    %5 = vector.multi_reduction <add>, %4, %cst_3 [1] : vector<56x512xf32> to vector<56xf32>
    %6 = vector.shape_cast %5 : vector<56xf32> to vector<56x1xf32>
    %cst_4 = arith.constant 1.000000e-24 : f32
    %7 = vector.broadcast %cst_4 : f32 to vector<56x1xf32>
    %8 = arith.maximumf %6, %7 : vector<56x1xf32>
    %9 = math.rsqrt %8 : vector<56x1xf32>
    %10 = vector.broadcast %9 : vector<56x1xf32> to vector<56x512xf32>
    %11 = arith.mulf %3, %10 : vector<56x512xf32>
    %c0_5 = arith.constant 0 : index
    %c0_6 = arith.constant 0 : index
    %12 = vector.load %arg3[%c0_5, %c0_6] : memref<56x512xf32, #tpu.memory_space<vmem>>, vector<56x512xf32>
    tpu.vector_store %arg3[%c0_5, %c0_6], %11 {strides = array<i32>} : memref<56x512xf32, #tpu.memory_space<vmem>>, vector<56x512xf32>,
    return
  }
  func.func @transform_0(%arg0: i32) -> (i32, i32) {
    %c0_i32 = arith.constant 0 : i32
    %c0_i32_0 = arith.constant 0 : i32
    return %arg0, %c0_i32 : i32, i32
  }
  func.func @transform_1(%arg0: i32) -> (i32, i32) {
    %c0_i32 = arith.constant 0 : i32
    %c0_i32_0 = arith.constant 0 : i32
    %c0_i32_1 = arith.constant 0 : i32
    return %c0_i32, %c0_i32_0 : i32, i32
  }
  func.func @transform_2(%arg0: i32) -> (i32, i32) {
    %c0_i32 = arith.constant 0 : i32
    %c0_i32_0 = arith.constant 0 : i32
    return %arg0, %c0_i32 : i32, i32
  }
}

</mosaic_0001>

<llo_original>
// kernel: _projection_forward.1
$region0: #{_projection_forward.1}
  #allocation0 [shape = 'u32[]', space=smem, size = 0x4, offset = 0x4, fixed_abs, tag = 'smem constant byte address 0x4 - core index']
  #allocation1 [shape = 'u32[72,128]{1,0:T(1,128)}', space=vmem, size = 0x9000, scoped, tag = 'internal scratch']
  %s0 = inlined_call_operand.hbm [shape: f32[200,2048], index: 0, kind: input, shape index: {}]
  %s1 = inlined_call_operand.hbm [shape: bf16[2048,512], index: 1, kind: input, shape index: {}]
  %s2 = inlined_call_operand.hbm [shape: f32[200,512], index: 2, kind: output, shape index: {}]
  %s3 = sld [smem:[#allocation0]]
  $region49: #{_projection_forward.1} parent=0
    _
  %s5 = ssub.s32 1, %s3
  %s6 = scalar_select 0, %s5, %s3
  $region1: #{_projection_forward.1} parent=0
    #allocation2 [shape = 'u8[917504]{0}', space=vmem, size = 0xe0000, scoped, tag = 'input window, operand 0']
    #allocation3 [shape = 's32[2]{0}', space=sflag, size = 0x8, scoped, tag = 'scoped memory for _projection_forward.1']
    #allocation4 [shape = 's32[2]{0}', space=sflag, size = 0x8, scoped, tag = 'scoped memory for _projection_forward.1']
    #allocation5 [shape = 'u8[2097152]{0}', space=vmem, size = 0x200000, scoped, tag = 'input window, operand 1, single buffered']
    #allocation6 [shape = 's32[1]{0}', space=sflag, size = 0x4, scoped, tag = 'scoped memory for _projection_forward.1']
    #allocation7 [shape = 'u8[229376]{0}', space=vmem, size = 0x38000, scoped, tag = 'output window, operand 0']
    %7 = vsyncpa [#allocation3], 0
    %s8 = scalar_lea.sflag [#allocation3], 1
    %9 = vsyncpa %s8, 0
    %10 = vsyncpa [#allocation6], 0
    %11 = vsyncpa [#allocation4], 0
    %s12 = scalar_lea.sflag [#allocation4], 1
    %13 = vsyncpa %s12, 0
    loop: start=0, step=1, limit=6
    $region2: #{_projection_forward.1} parent=1 // loop_pre_header
      _
    $region3: #{_projection_forward.1} parent=1 // loop_header
      %s15 = sphi 0, %s19
      %p16 = scmp.ge.s32.totalorder %s15, 6
      %s25 = sphi 0, %s27
      %s28 = sphi 0, %s25
      %s29 = sphi 0, %s28
      %s45 = sphi 0, %s29
      %s49 = sphi 0, %s49
      %s51 = sphi 0, %s49
      %s52 = sphi 0, %s51
      %s66 = sphi 0, %s52
      %s72 = sphi 0, %s74
      %s75 = sphi 0, %s72
      %s76 = sphi 0, %s75
      %s92 = sphi 0, %s76
    $region4: #{_projection_forward.1} parent=1 // loop_header_branch
      %18 = sbr.rel (%p16) target = $region8
    $region5: #{_projection_forward.1} parent=1 // loop_body
      %s20 = ssub.s32 %s15, 1
      %s21 = ssub.s32 %s15, 2
      %s22 = sadd.s32 %s15, 1
      %s23 = ssub.s32 %s15, %s22
      %p24 = scmp.eq.s32.totalorder %s23, 0
      %s26 = sadd.s32 %s25, 1
      %s27 = scalar_select %p24, %s25, %s26
      %p30 = pneg %p24
      %p31 = scmp.eq.s32.totalorder %s15, 3
      %p32 = por %p30, %p31
      %p33 = scmp.ne.s32.totalorder %s25, %s28
      %p34 = scmp.eq.s32.totalorder %s15, 0
      %p35 = por %p33, %p34
      %p36 = scmp.ne.s32.totalorder %s25, %s28
      %p37 = scmp.eq.s32.totalorder %s20, 3
      %p38 = por %p36, %p37
      %p39 = scmp.ne.s32.totalorder %s28, %s29
      %p40 = scmp.eq.s32.totalorder %s20, 0
      %p41 = por %p39, %p40
      %p42 = scmp.ne.s32.totalorder %s28, %s29
      %p43 = scmp.eq.s32.totalorder %s21, 3
      %p44 = por %p42, %p43
      %p46 = scmp.ne.s32.totalorder %s29, %s45
      %p47 = scmp.eq.s32.totalorder %s21, 0
      %p48 = por %p46, %p47
      %s50 = sadd.s32 %s49, 1
      %p53 = scmp.eq.s32.totalorder %s15, 3
      %p54 = scmp.ne.s32.totalorder %s49, %s51
      %p55 = scmp.eq.s32.totalorder %s15, 0
      %p56 = por %p54, %p55
      %p57 = scmp.ne.s32.totalorder %s49, %s51
      %p58 = scmp.eq.s32.totalorder %s20, 3
      %p59 = por %p57, %p58
      %p60 = scmp.ne.s32.totalorder %s51, %s52
      %p61 = scmp.eq.s32.totalorder %s20, 0
      %p62 = por %p60, %p61
      %p63 = scmp.ne.s32.totalorder %s51, %s52
      %p64 = scmp.eq.s32.totalorder %s21, 3
      %p65 = por %p63, %p64
      %p67 = scmp.ne.s32.totalorder %s52, %s66
      %p68 = scmp.eq.s32.totalorder %s21, 0
      %p69 = por %p67, %p68
      %s70 = ssub.s32 %s15, %s22
      %p71 = scmp.eq.s32.totalorder %s70, 0
      %s73 = sadd.s32 %s72, 1
      %s74 = scalar_select %p71, %s72, %s73
      %p77 = pneg %p71
      %p78 = scmp.eq.s32.totalorder %s15, 3
      %p79 = por %p77, %p78
      %p80 = scmp.ne.s32.totalorder %s72, %s75
      %p81 = scmp.eq.s32.totalorder %s15, 0
      %p82 = por %p80, %p81
      %p83 = scmp.ne.s32.totalorder %s72, %s75
      %p84 = scmp.eq.s32.totalorder %s20, 3
      %p85 = por %p83, %p84
      %p86 = scmp.ne.s32.totalorder %s75, %s76
      %p87 = scmp.eq.s32.totalorder %s20, 0
      %p88 = por %p86, %p87
      %p89 = scmp.ne.s32.totalorder %s75, %s76
      %p90 = scmp.eq.s32.totalorder %s21, 3
      %p91 = por %p89, %p90
      %p93 = scmp.ne.s32.totalorder %s76, %s92
      %p94 = scmp.eq.s32.totalorder %s21, 0
      %p95 = por %p93, %p94
      %p96 = scmp.le.s32.totalorder 1, %s15
      %p97 = scmp.lt.s32.totalorder %s15, 5
      %p98 = pnand %p96, %p97
      %p99 = pneg %p98
      // Predicated region
      $region9: #{_projection_forward.1} parent=5 // pred_check
        _
      $region10: #{_projection_forward.1} parent=5 // pred_check_branch
        %101 = sbr.rel (%p98) target = $region12
      $region11: #{_projection_forward.1} parent=5 // pred_region
        %s102 = ssub.s32 %s15, 1
        // Predicated region
        $region13: #{_projection_forward.1} parent=11 // pred_check
          %p103 = pneg %p62
        $region14: #{_projection_forward.1} parent=11 // pred_check_branch
          %105 = sbr.rel (%p103) target = $region16
        $region15: #{_projection_forward.1} parent=11 // pred_region
          %107 = vsyncadd [#allocation6], 0
          %s108 = sshll.u32 %s1, 4
          %s109 = int_to_ptr.hbm [resolvable:$true] %s108
          %s110 = sshll.u32 [#allocation5], 4
          %s111 = int_to_ptr.vmem [resolvable:$true] %s110
          %116 = dma.hbm_to_vmem [thread:$0]  %s109, 65536, %s111, [#allocation6], 256, 256, 16
        $region16: #{_projection_forward.1} parent=11 // pred_fallthru
          _
      $region12: #{_projection_forward.1} parent=5 // pred_fallthru
        _
      %p117 = scmp.lt.s32.totalorder %s15, 4
      // Predicated region
      $region17: #{_projection_forward.1} parent=5 // pred_check
        %p118 = pneg %p117
      $region18: #{_projection_forward.1} parent=5 // pred_check_branch
        %120 = sbr.rel (%p118) target = $region20
      $region19: #{_projection_forward.1} parent=5 // pred_region
        // Predicated region
        $region21: #{_projection_forward.1} parent=19 // pred_check
          %p121 = pneg %p35
        $region22: #{_projection_forward.1} parent=19 // pred_check_branch
          %123 = sbr.rel (%p121) target = $region24
        $region23: #{_projection_forward.1} parent=19 // pred_region
          %s124 = sand.u32 %s25, 1
          %s125 = scalar_lea.sflag [#allocation3], %s124
          %s126 = sand.u32 %s25, 1
          %s127 = smul.addr %s126, 896
          %s128 = scalar_lea.vmem [#allocation2], %s127
          %s129 = smul.u32 7, %s15
          %s130 = ssub.s32 25, %s129
          %p131 = scmp.lt.s32.totalorder %s130, 7
          %s132 = scalar_select %p131, %s130, 7
          %s133 = smul.u32 8, %s132
          %s134 = smul.u32 %s133, 16
          %s135 = ssub.s32 896, %s134
          %s136 = sshll.u32 %s135, 4
          %137 = vsyncadd %s125, %s136
          %p138 = scmp.ne.s32.totalorder 0, %s134
          %s139 = smul.addr %s129, 16
          %s140 = smul.addr %s139, 8
          %s141 = scalar_lea.hbm %s0, %s140
          %s142 = smul.u32 128, %s132
          %s143 = sshll.u32 %s141, 4
          %s144 = int_to_ptr.hbm [resolvable:$true] %s143
          %s145 = sshll.u32 %s128, 4
          %s146 = int_to_ptr.vmem [resolvable:$true] %s145
          %s147 = sshll.u32 %s142, 4
          %151 = dma.hbm_to_vmem [thread:$0]  (%p138), %s144, %s147, %s146, %s125, 2048, 2048, 128
        $region24: #{_projection_forward.1} parent=19 // pred_fallthru
          _
      $region20: #{_projection_forward.1} parent=5 // pred_fallthru
        _
      %p152 = scmp.le.s32.totalorder 1, %s15
      %p153 = scmp.lt.s32.totalorder %s15, 5
      %p154 = pnand %p152, %p153
      %p155 = pneg %p154
      // Predicated region
      $region25: #{_projection_forward.1} parent=5 // pred_check
        _
      $region26: #{_projection_forward.1} parent=5 // pred_check_branch
        %157 = sbr.rel (%p154) target = $region28
      $region27: #{_projection_forward.1} parent=5 // pred_region
        %s158 = ssub.s32 %s15, 1
        %s159 = sand.u32 %s28, 1
        %s160 = scalar_lea.sflag [#allocation3], %s159
        %s161 = sand.u32 %s28, 1
        %s162 = smul.addr %s161, 896
        %s163 = scalar_lea.vmem [#allocation2], %s162
        // Predicated region
        $region29: #{_projection_forward.1} parent=27 // pred_check
          %p164 = pneg %p41
        $region30: #{_projection_forward.1} parent=27 // pred_check_branch
          %166 = sbr.rel (%p164) target = $region32
        $region31: #{_projection_forward.1} parent=27 // pred_region
          %168 = dma.done %s160, 14336
        $region32: #{_projection_forward.1} parent=27 // pred_fallthru
          _
        // Predicated region
        $region33: #{_projection_forward.1} parent=27 // pred_check
          %p169 = pneg %p62
        $region34: #{_projection_forward.1} parent=27 // pred_check_branch
          %171 = sbr.rel (%p169) target = $region36
        $region35: #{_projection_forward.1} parent=27 // pred_region
          %173 = dma.done [#allocation6], 65536
        $region36: #{_projection_forward.1} parent=27 // pred_fallthru
          _
        %s174 = sand.u32 %s28, 1
        %s175 = scalar_lea.sflag [#allocation3], %s174
        %s176 = sand.u32 %s28, 1
        %s177 = smul.addr %s176, 896
        %s178 = scalar_lea.vmem [#allocation2], %s177
        %p179 = pneg %p41
        %p180 = pneg %p38
        %p181 = pneg %p62
        %p182 = pneg %p59
        %p183 = pneg %p88
        %p184 = pneg %p85
        %s185 = sand.u32 %s75, 1
        %s186 = scalar_lea.sflag [#allocation4], %s185
        %s187 = sand.u32 %s75, 1
        %s188 = smul.addr %s187, 224
        %s189 = scalar_lea.vmem [#allocation7], %s188
        %s190 = smul.u32 7, %s20
        %s191 = ssub.s32 25, %s190
        %p192 = scmp.lt.s32.totalorder %s191, 7
        %s193 = scalar_select %p192, %s191, 7
        %s194 = smul.u32 8, %s193
        %s195 = smul.u32 %s194, 16
        %s196 = smul.u32 7, %s20
        %s197 = ssub.s32 25, %s196
        %p198 = scmp.lt.s32.totalorder %s197, 7
        %s199 = scalar_select %p198, %s197, 7
        %s200 = smul.u32 8, %s199
        %s201 = smul.u32 %s200, 4
        %v202 = vld [vmem:[%s163] sm:$0xff]
        %v203 = vld [vmem:[%s163 + $0x8] sm:$0xff]
        %v204 = vld [vmem:[%s163 + $0x10] sm:$0xff]
        %v205 = vld [vmem:[%s163 + $0x18] sm:$0xff]
        %v206 = vld [vmem:[%s163 + $0x20] sm:$0xff]
        %v207 = vld [vmem:[%s163 + $0x28] sm:$0xff]
        %v208 = vld [vmem:[%s163 + $0x30] sm:$0xff]
        %v209 = vld [vmem:[%s163 + $0x38] sm:$0xff]
        %v210 = vld [vmem:[%s163 + $0x40] sm:$0xff]
        %v211 = vld [vmem:[%s163 + $0x48] sm:$0xff]
        %v212 = vld [vmem:[%s163 + $0x50] sm:$0xff]
        %v213 = vld [vmem:[%s163 + $0x58] sm:$0xff]
        %v214 = vld [vmem:[%s163 + $0x60] sm:$0xff]
        %v215 = vld [vmem:[%s163 + $0x68] sm:$0xff]
        %v216 = vld [vmem:[%s163 + $0x70] sm:$0xff]
        %v217 = vld [vmem:[%s163 + $0x78] sm:$0xff]
        %v218 = vld [vmem:[%s163 + $0x80] sm:$0xff]
        %v219 = vld [vmem:[%s163 + $0x88] sm:$0xff]
        %v220 = vld [vmem:[%s163 + $0x90] sm:$0xff]
        %v221 = vld [vmem:[%s163 + $0x98] sm:$0xff]
        %v222 = vld [vmem:[%s163 + $0xa0] sm:$0xff]
        %v223 = vld [vmem:[%s163 + $0xa8] sm:$0xff]
        %v224 = vld [vmem:[%s163 + $0xb0] sm:$0xff]
        %v225 = vld [vmem:[%s163 + $0xb8] sm:$0xff]
        %v226 = vld [vmem:[%s163 + $0xc0] sm:$0xff]
        %v227 = vld [vmem:[%s163 + $0xc8] sm:$0xff]
        %v228 = vld [vmem:[%s163 + $0xd0] sm:$0xff]
        %v229 = vld [vmem:[%s163 + $0xd8] sm:$0xff]
        %v230 = vld [vmem:[%s163 + $0xe0] sm:$0xff]
        %v231 = vld [vmem:[%s163 + $0xe8] sm:$0xff]
        %v232 = vld [vmem:[%s163 + $0xf0] sm:$0xff]
        %v233 = vld [vmem:[%s163 + $0xf8] sm:$0xff]
        %v234 = vld [vmem:[%s163 + $0x100] sm:$0xff]
        %v235 = vld [vmem:[%s163 + $0x108] sm:$0xff]
        %v236 = vld [vmem:[%s163 + $0x110] sm:$0xff]
        %v237 = vld [vmem:[%s163 + $0x118] sm:$0xff]
        %v238 = vld [vmem:[%s163 + $0x120] sm:$0xff]
        %v239 = vld [vmem:[%s163 + $0x128] sm:$0xff]
        %v240 = vld [vmem:[%s163 + $0x130] sm:$0xff]
        %v241 = vld [vmem:[%s163 + $0x138] sm:$0xff]
        %v242 = vld [vmem:[%s163 + $0x140] sm:$0xff]
        %v243 = vld [vmem:[%s163 + $0x148] sm:$0xff]
        %v244 = vld [vmem:[%s163 + $0x150] sm:$0xff]
        %v245 = vld [vmem:[%s163 + $0x158] sm:$0xff]
        %v246 = vld [vmem:[%s163 + $0x160] sm:$0xff]
        %v247 = vld [vmem:[%s163 + $0x168] sm:$0xff]
        %v248 = vld [vmem:[%s163 + $0x170] sm:$0xff]
        %v249 = vld [vmem:[%s163 + $0x178] sm:$0xff]
        %v250 = vld [vmem:[%s163 + $0x180] sm:$0xff]
        %v251 = vld [vmem:[%s163 + $0x188] sm:$0xff]
        %v252 = vld [vmem:[%s163 + $0x190] sm:$0xff]
        %v253 = vld [vmem:[%s163 + $0x198] sm:$0xff]
        %v254 = vld [vmem:[%s163 + $0x1a0] sm:$0xff]
        %v255 = vld [vmem:[%s163 + $0x1a8] sm:$0xff]
        %v256 = vld [vmem:[%s163 + $0x1b0] sm:$0xff]
        %v257 = vld [vmem:[%s163 + $0x1b8] sm:$0xff]
        %v258 = vld [vmem:[%s163 + $0x1c0] sm:$0xff]
        %v259 = vld [vmem:[%s163 + $0x1c8] sm:$0xff]
        %v260 = vld [vmem:[%s163 + $0x1d0] sm:$0xff]
        %v261 = vld [vmem:[%s163 + $0x1d8] sm:$0xff]
        %v262 = vld [vmem:[%s163 + $0x1e0] sm:$0xff]
        %v263 = vld [vmem:[%s163 + $0x1e8] sm:$0xff]
        %v264 = vld [vmem:[%s163 + $0x1f0] sm:$0xff]
        %v265 = vld [vmem:[%s163 + $0x1f8] sm:$0xff]
        %v266 = vld [vmem:[%s163 + $0x200] sm:$0xff]
        %v267 = vld [vmem:[%s163 + $0x208] sm:$0xff]
        %v268 = vld [vmem:[%s163 + $0x210] sm:$0xff]
        %v269 = vld [vmem:[%s163 + $0x218] sm:$0xff]
        %v270 = vld [vmem:[%s163 + $0x220] sm:$0xff]
        %v271 = vld [vmem:[%s163 + $0x228] sm:$0xff]
        %v272 = vld [vmem:[%s163 + $0x230] sm:$0xff]
        %v273 = vld [vmem:[%s163 + $0x238] sm:$0xff]
        %v274 = vld [vmem:[%s163 + $0x240] sm:$0xff]
        %v275 = vld [vmem:[%s163 + $0x248] sm:$0xff]
        %v276 = vld [vmem:[%s163 + $0x250] sm:$0xff]
        %v277 = vld [vmem:[%s163 + $0x258] sm:$0xff]
        %v278 = vld [vmem:[%s163 + $0x260] sm:$0xff]
        %v279 = vld [vmem:[%s163 + $0x268] sm:$0xff]
        %v280 = vld [vmem:[%s163 + $0x270] sm:$0xff]
        %v281 = vld [vmem:[%s163 + $0x278] sm:$0xff]
        %v282 = vld [vmem:[%s163 + $0x280] sm:$0xff]
        %v283 = vld [vmem:[%s163 + $0x288] sm:$0xff]
        %v284 = vld [vmem:[%s163 + $0x290] sm:$0xff]
        %v285 = vld [vmem:[%s163 + $0x298] sm:$0xff]
        %v286 = vld [vmem:[%s163 + $0x2a0] sm:$0xff]
        %v287 = vld [vmem:[%s163 + $0x2a8] sm:$0xff]
        %v288 = vld [vmem:[%s163 + $0x2b0] sm:$0xff]
        %v289 = vld [vmem:[%s163 + $0x2b8] sm:$0xff]
        %v290 = vld [vmem:[%s163 + $0x2c0] sm:$0xff]
        %v291 = vld [vmem:[%s163 + $0x2c8] sm:$0xff]
        %v292 = vld [vmem:[%s163 + $0x2d0] sm:$0xff]
        %v293 = vld [vmem:[%s163 + $0x2d8] sm:$0xff]
        %v294 = vld [vmem:[%s163 + $0x2e0] sm:$0xff]
        %v295 = vld [vmem:[%s163 + $0x2e8] sm:$0xff]
        %v296 = vld [vmem:[%s163 + $0x2f0] sm:$0xff]
        %v297 = vld [vmem:[%s163 + $0x2f8] sm:$0xff]
        %v298 = vld [vmem:[%s163 + $0x300] sm:$0xff]
        %v299 = vld [vmem:[%s163 + $0x308] sm:$0xff]
        %v300 = vld [vmem:[%s163 + $0x310] sm:$0xff]
        %v301 = vld [vmem:[%s163 + $0x318] sm:$0xff]
        %v302 = vld [vmem:[%s163 + $0x320] sm:$0xff]
        %v303 = vld [vmem:[%s163 + $0x328] sm:$0xff]
        %v304 = vld [vmem:[%s163 + $0x330] sm:$0xff]
        %v305 = vld [vmem:[%s163 + $0x338] sm:$0xff]
        %v306 = vld [vmem:[%s163 + $0x340] sm:$0xff]
        %v307 = vld [vmem:[%s163 + $0x348] sm:$0xff]
        %v308 = vld [vmem:[%s163 + $0x350] sm:$0xff]
        %v309 = vld [vmem:[%s163 + $0x358] sm:$0xff]
        %v310 = vld [vmem:[%s163 + $0x360] sm:$0xff]
        %v311 = vld [vmem:[%s163 + $0x368] sm:$0xff]
        %v312 = vld [vmem:[%s163 + $0x370] sm:$0xff]
        %v313 = vld [vmem:[%s163 + $0x378] sm:$0xff]
        %v314 = vpack.c.bf16 %v218, %v202
        %v315 = vpack.c.bf16 %v219, %v203
        %v316 = vpack.c.bf16 %v220, %v204
        %v317 = vpack.c.bf16 %v221, %v205
        %v318 = vpack.c.bf16 %v222, %v206
        %v319 = vpack.c.bf16 %v223, %v207
        %v320 = vpack.c.bf16 %v224, %v208
        %v321 = vpack.c.bf16 %v225, %v209
        %v322 = vpack.c.bf16 %v226, %v210
        %v323 = vpack.c.bf16 %v227, %v211
        %v324 = vpack.c.bf16 %v228, %v212
        %v325 = vpack.c.bf16 %v229, %v213
        %v326 = vpack.c.bf16 %v230, %v214
        %v327 = vpack.c.bf16 %v231, %v215
        %v328 = vpack.c.bf16 %v232, %v216
        %v329 = vpack.c.bf16 %v233, %v217
        %v330 = vpack.c.bf16 %v250, %v234
        %v331 = vpack.c.bf16 %v251, %v235
        %v332 = vpack.c.bf16 %v252, %v236
        %v333 = vpack.c.bf16 %v253, %v237
        %v334 = vpack.c.bf16 %v254, %v238
        %v335 = vpack.c.bf16 %v255, %v239
        %v336 = vpack.c.bf16 %v256, %v240
        %v337 = vpack.c.bf16 %v257, %v241
        %v338 = vpack.c.bf16 %v258, %v242
        %v339 = vpack.c.bf16 %v259, %v243
        %v340 = vpack.c.bf16 %v260, %v244
        %v341 = vpack.c.bf16 %v261, %v245
        %v342 = vpack.c.bf16 %v262, %v246
        %v343 = vpack.c.bf16 %v263, %v247
        %v344 = vpack.c.bf16 %v264, %v248
        %v345 = vpack.c.bf16 %v265, %v249
        %v346 = vpack.c.bf16 %v282, %v266
        %v347 = vpack.c.bf16 %v283, %v267
        %v348 = vpack.c.bf16 %v284, %v268
        %v349 = vpack.c.bf16 %v285, %v269
        %v350 = vpack.c.bf16 %v286, %v270
        %v351 = vpack.c.bf16 %v287, %v271
        %v352 = vpack.c.bf16 %v288, %v272
        %v353 = vpack.c.bf16 %v289, %v273
        %v354 = vpack.c.bf16 %v290, %v274
        %v355 = vpack.c.bf16 %v291, %v275
        %v356 = vpack.c.bf16 %v292, %v276
        %v357 = vpack.c.bf16 %v293, %v277
        %v358 = vpack.c.bf16 %v294, %v278
        %v359 = vpack.c.bf16 %v295, %v279
        %v360 = vpack.c.bf16 %v296, %v280
        %v361 = vpack.c.bf16 %v297, %v281
        %v362 = vpack.c.bf16 %v298, %v298
        %v363 = vpack.c.bf16 %v299, %v299
        %v364 = vpack.c.bf16 %v300, %v300
        %v365 = vpack.c.bf16 %v301, %v301
        %v366 = vpack.c.bf16 %v302, %v302
        %v367 = vpack.c.bf16 %v303, %v303
        %v368 = vpack.c.bf16 %v304, %v304
        %v369 = vpack.c.bf16 %v305, %v305
        %v370 = vpack.c.bf16 %v306, %v306
        %v371 = vpack.c.bf16 %v307, %v307
        %v372 = vpack.c.bf16 %v308, %v308
        %v373 = vpack.c.bf16 %v309, %v309
        %v374 = vpack.c.bf16 %v310, %v310
        %v375 = vpack.c.bf16 %v311, %v311
        %v376 = vpack.c.bf16 %v312, %v312
        %v377 = vpack.c.bf16 %v313, %v313
        %v378 = vld [vmem:[#allocation5] sm:$0xff]
        %v379 = vld [vmem:[#allocation5 + $0x8] sm:$0xff]
        %v380 = vld [vmem:[#allocation5 + $0x10] sm:$0xff]
        %v381 = vld [vmem:[#allocation5 + $0x18] sm:$0xff]
        %v382 = vld [vmem:[#allocation5 + $0x20] sm:$0xff]
        %v383 = vld [vmem:[#allocation5 + $0x28] sm:$0xff]
        %v384 = vld [vmem:[#allocation5 + $0x30] sm:$0xff]
        %v385 = vld [vmem:[#allocation5 + $0x38] sm:$0xff]
        %v386 = vld [vmem:[#allocation5 + $0x40] sm:$0xff]
        %v387 = vld [vmem:[#allocation5 + $0x48] sm:$0xff]
        %v388 = vld [vmem:[#allocation5 + $0x50] sm:$0xff]
        %v389 = vld [vmem:[#allocation5 + $0x58] sm:$0xff]
        %v390 = vld [vmem:[#allocation5 + $0x60] sm:$0xff]
        %v391 = vld [vmem:[#allocation5 + $0x68] sm:$0xff]
        %v392 = vld [vmem:[#allocation5 + $0x70] sm:$0xff]
        %v393 = vld [vmem:[#allocation5 + $0x78] sm:$0xff]
        %v394 = vld [vmem:[#allocation5 + $0x80] sm:$0xff]
        %v395 = vld [vmem:[#allocation5 + $0x88] sm:$0xff]
        %v396 = vld [vmem:[#allocation5 + $0x90] sm:$0xff]
        %v397 = vld [vmem:[#allocation5 + $0x98] sm:$0xff]
        %v398 = vld [vmem:[#allocation5 + $0xa0] sm:$0xff]
        %v399 = vld [vmem:[#allocation5 + $0xa8] sm:$0xff]
        %v400 = vld [vmem:[#allocation5 + $0xb0] sm:$0xff]
        %v401 = vld [vmem:[#allocation5 + $0xb8] sm:$0xff]
        %v402 = vld [vmem:[#allocation5 + $0xc0] sm:$0xff]
        %v403 = vld [vmem:[#allocation5 + $0xc8] sm:$0xff]
        %v404 = vld [vmem:[#allocation5 + $0xd0] sm:$0xff]
        %v405 = vld [vmem:[#allocation5 + $0xd8] sm:$0xff]
        %v406 = vld [vmem:[#allocation5 + $0xe0] sm:$0xff]
        %v407 = vld [vmem:[#allocation5 + $0xe8] sm:$0xff]
        %v408 = vld [vmem:[#allocation5 + $0xf0] sm:$0xff]
        %v409 = vld [vmem:[#allocation5 + $0xf8] sm:$0xff]
        %v410 = vld [vmem:[#allocation5 + $0x100] sm:$0xff]
        %v411 = vld [vmem:[#allocation5 + $0x108] sm:$0xff]
        %v412 = vld [vmem:[#allocation5 + $0x110] sm:$0xff]
        %v413 = vld [vmem:[#allocation5 + $0x118] sm:$0xff]
        %v414 = vld [vmem:[#allocation5 + $0x120] sm:$0xff]
        %v415 = vld [vmem:[#allocation5 + $0x128] sm:$0xff]
        %v416 = vld [vmem:[#allocation5 + $0x130] sm:$0xff]
        %v417 = vld [vmem:[#allocation5 + $0x138] sm:$0xff]
        %v418 = vld [vmem:[#allocation5 + $0x140] sm:$0xff]
        %v419 = vld [vmem:[#allocation5 + $0x148] sm:$0xff]
        %v420 = vld [vmem:[#allocation5 + $0x150] sm:$0xff]
        %v421 = vld [vmem:[#allocation5 + $0x158] sm:$0xff]
        %v422 = vld [vmem:[#allocation5 + $0x160] sm:$0xff]
        %v423 = vld [vmem:[#allocation5 + $0x168] sm:$0xff]
        %v424 = vld [vmem:[#allocation5 + $0x170] sm:$0xff]
        %v425 = vld [vmem:[#allocation5 + $0x178] sm:$0xff]
        %v426 = vld [vmem:[#allocation5 + $0x180] sm:$0xff]
        %v427 = vld [vmem:[#allocation5 + $0x188] sm:$0xff]
        %v428 = vld [vmem:[#allocation5 + $0x190] sm:$0xff]
        %v429 = vld [vmem:[#allocation5 + $0x198] sm:$0xff]
        %v430 = vld [vmem:[#allocation5 + $0x1a0] sm:$0xff]
        %v431 = vld [vmem:[#allocation5 + $0x1a8] sm:$0xff]
        %v432 = vld [vmem:[#allocation5 + $0x1b0] sm:$0xff]
        %v433 = vld [vmem:[#allocation5 + $0x1b8] sm:$0xff]
        %v434 = vld [vmem:[#allocation5 + $0x1c0] sm:$0xff]
        %v435 = vld [vmem:[#allocation5 + $0x1c8] sm:$0xff]
        %v436 = vld [vmem:[#allocation5 + $0x1d0] sm:$0xff]
        %v437 = vld [vmem:[#allocation5 + $0x1d8] sm:$0xff]
        %v438 = vld [vmem:[#allocation5 + $0x1e0] sm:$0xff]
        %v439 = vld [vmem:[#allocation5 + $0x1e8] sm:$0xff]
        %v440 = vld [vmem:[#allocation5 + $0x1f0] sm:$0xff]
        %v441 = vld [vmem:[#allocation5 + $0x1f8] sm:$0xff]
        %v442 = vld [vmem:[#allocation5 + $0x200] sm:$0xff]
        %v443 = vld [vmem:[#allocation5 + $0x208] sm:$0xff]
        %v444 = vld [vmem:[#allocation5 + $0x210] sm:$0xff]
        %v445 = vld [vmem:[#allocation5 + $0x218] sm:$0xff]
        %v446 = vld [vmem:[#allocation5 + $0x220] sm:$0xff]
        %v447 = vld [vmem:[#allocation5 + $0x228] sm:$0xff]
        %v448 = vld [vmem:[#allocation5 + $0x230] sm:$0xff]
        %v449 = vld [vmem:[#allocation5 + $0x238] sm:$0xff]
        %v450 = vld [vmem:[#allocation5 + $0x240] sm:$0xff]
        %v451 = vld [vmem:[#allocation5 + $0x248] sm:$0xff]
        %v452 = vld [vmem:[#allocation5 + $0x250] sm:$0xff]
        %v453 = vld [vmem:[#allocation5 + $0x258] sm:$0xff]
        %v454 = vld [vmem:[#allocation5 + $0x260] sm:$0xff]
        %v455 = vld [vmem:[#allocation5 + $0x268] sm:$0xff]
        %v456 = vld [vmem:[#allocation5 + $0x270] sm:$0xff]
        %v457 = vld [vmem:[#allocation5 + $0x278] sm:$0xff]
        %v458 = vld [vmem:[#allocation5 + $0x280] sm:$0xff]
        %v459 = vld [vmem:[#allocation5 + $0x288] sm:$0xff]
        %v460 = vld [vmem:[#allocation5 + $0x290] sm:$0xff]
        %v461 = vld [vmem:[#allocation5 + $0x298] sm:$0xff]
        %v462 = vld [vmem:[#allocation5 + $0x2a0] sm:$0xff]
        %v463 = vld [vmem:[#allocation5 + $0x2a8] sm:$0xff]
        %v464 = vld [vmem:[#allocation5 + $0x2b0] sm:$0xff]
        %v465 = vld [vmem:[#allocation5 + $0x2b8] sm:$0xff]
        %v466 = vld [vmem:[#allocation5 + $0x2c0] sm:$0xff]
        %v467 = vld [vmem:[#allocation5 + $0x2c8] sm:$0xff]
        %v468 = vld [vmem:[#allocation5 + $0x2d0] sm:$0xff]
        %v469 = vld [vmem:[#allocation5 + $0x2d8] sm:$0xff]
        %v470 = vld [vmem:[#allocation5 + $0x2e0] sm:$0xff]
        %v471 = vld [vmem:[#allocation5 + $0x2e8] sm:$0xff]
        %v472 = vld [vmem:[#allocation5 + $0x2f0] sm:$0xff]
        %v473 = vld [vmem:[#allocation5 + $0x2f8] sm:$0xff]
        %v474 = vld [vmem:[#allocation5 + $0x300] sm:$0xff]
        %v475 = vld [vmem:[#allocation5 + $0x308] sm:$0xff]
        %v476 = vld [vmem:[#allocation5 + $0x310] sm:$0xff]
        %v477 = vld [vmem:[#allocation5 + $0x318] sm:$0xff]
        %v478 = vld [vmem:[#allocation5 + $0x320] sm:$0xff]
        %v479 = vld [vmem:[#allocation5 + $0x328] sm:$0xff]
        %v480 = vld [vmem:[#allocation5 + $0x330] sm:$0xff]
        %v481 = vld [vmem:[#allocation5 + $0x338] sm:$0xff]
        %v482 = vld [vmem:[#allocation5 + $0x340] sm:$0xff]
        %v483 = vld [vmem:[#allocation5 + $0x348] sm:$0xff]
        %v484 = vld [vmem:[#allocation5 + $0x350] sm:$0xff]
        %v485 = vld [vmem:[#allocation5 + $0x358] sm:$0xff]
        %v486 = vld [vmem:[#allocation5 + $0x360] sm:$0xff]
        %v487 = vld [vmem:[#allocation5 + $0x368] sm:$0xff]
        %v488 = vld [vmem:[#allocation5 + $0x370] sm:$0xff]
        %v489 = vld [vmem:[#allocation5 + $0x378] sm:$0xff]
        %v490 = vld [vmem:[#allocation5 + $0x380] sm:$0xff]
        %v491 = vld [vmem:[#allocation5 + $0x388] sm:$0xff]
        %v492 = vld [vmem:[#allocation5 + $0x390] sm:$0xff]
        %v493 = vld [vmem:[#allocation5 + $0x398] sm:$0xff]
        %v494 = vld [vmem:[#allocation5 + $0x3a0] sm:$0xff]
        %v495 = vld [vmem:[#allocation5 + $0x3a8] sm:$0xff]
        %v496 = vld [vmem:[#allocation5 + $0x3b0] sm:$0xff]
        %v497 = vld [vmem:[#allocation5 + $0x3b8] sm:$0xff]
        %v498 = vld [vmem:[#allocation5 + $0x3c0] sm:$0xff]
        %v499 = vld [vmem:[#allocation5 + $0x3c8] sm:$0xff]
        %v500 = vld [vmem:[#allocation5 + $0x3d0] sm:$0xff]
        %v501 = vld [vmem:[#allocation5 + $0x3d8] sm:$0xff]
        %v502 = vld [vmem:[#allocation5 + $0x3e0] sm:$0xff]
        %v503 = vld [vmem:[#allocation5 + $0x3e8] sm:$0xff]
        %v504 = vld [vmem:[#allocation5 + $0x3f0] sm:$0xff]
        %v505 = vld [vmem:[#allocation5 + $0x3f8] sm:$0xff]
        %v506 = vld [vmem:[#allocation5 + $0x400] sm:$0xff]
        %v507 = vld [vmem:[#allocation5 + $0x408] sm:$0xff]
        %v508 = vld [vmem:[#allocation5 + $0x410] sm:$0xff]
        %v509 = vld [vmem:[#allocation5 + $0x418] sm:$0xff]
        %v510 = vld [vmem:[#allocation5 + $0x420] sm:$0xff]
        %v511 = vld [vmem:[#allocation5 + $0x428] sm:$0xff]
        %v512 = vld [vmem:[#allocation5 + $0x430] sm:$0xff]
        %v513 = vld [vmem:[#allocation5 + $0x438] sm:$0xff]
        %v514 = vld [vmem:[#allocation5 + $0x440] sm:$0xff]
        %v515 = vld [vmem:[#allocation5 + $0x448] sm:$0xff]
        %v516 = vld [vmem:[#allocation5 + $0x450] sm:$0xff]
        %v517 = vld [vmem:[#allocation5 + $0x458] sm:$0xff]
        %v518 = vld [vmem:[#allocation5 + $0x460] sm:$0xff]
        %v519 = vld [vmem:[#allocation5 + $0x468] sm:$0xff]
        %v520 = vld [vmem:[#allocation5 + $0x470] sm:$0xff]
        %v521 = vld [vmem:[#allocation5 + $0x478] sm:$0xff]
        %v522 = vld [vmem:[#allocation5 + $0x480] sm:$0xff]
        %v523 = vld [vmem:[#allocation5 + $0x488] sm:$0xff]
        %v524 = vld [vmem:[#allocation5 + $0x490] sm:$0xff]
        %v525 = vld [vmem:[#allocation5 + $0x498] sm:$0xff]
        %v526 = vld [vmem:[#allocation5 + $0x4a0] sm:$0xff]
        %v527 = vld [vmem:[#allocation5 + $0x4a8] sm:$0xff]
        %v528 = vld [vmem:[#allocation5 + $0x4b0] sm:$0xff]
        %v529 = vld [vmem:[#allocation5 + $0x4b8] sm:$0xff]
        %v530 = vld [vmem:[#allocation5 + $0x4c0] sm:$0xff]
        %v531 = vld [vmem:[#allocation5 + $0x4c8] sm:$0xff]
        %v532 = vld [vmem:[#allocation5 + $0x4d0] sm:$0xff]
        %v533 = vld [vmem:[#allocation5 + $0x4d8] sm:$0xff]
        %v534 = vld [vmem:[#allocation5 + $0x4e0] sm:$0xff]
        %v535 = vld [vmem:[#allocation5 + $0x4e8] sm:$0xff]
        %v536 = vld [vmem:[#allocation5 + $0x4f0] sm:$0xff]
        %v537 = vld [vmem:[#allocation5 + $0x4f8] sm:$0xff]
        %v538 = vld [vmem:[#allocation5 + $0x500] sm:$0xff]
        %v539 = vld [vmem:[#allocation5 + $0x508] sm:$0xff]
        %v540 = vld [vmem:[#allocation5 + $0x510] sm:$0xff]
        %v541 = vld [vmem:[#allocation5 + $0x518] sm:$0xff]
        %v542 = vld [vmem:[#allocation5 + $0x520] sm:$0xff]
        %v543 = vld [vmem:[#allocation5 + $0x528] sm:$0xff]
        %v544 = vld [vmem:[#allocation5 + $0x530] sm:$0xff]
        %v545 = vld [vmem:[#allocation5 + $0x538] sm:$0xff]
        %v546 = vld [vmem:[#allocation5 + $0x540] sm:$0xff]
        %v547 = vld [vmem:[#allocation5 + $0x548] sm:$0xff]
        %v548 = vld [vmem:[#allocation5 + $0x550] sm:$0xff]
        %v549 = vld [vmem:[#allocation5 + $0x558] sm:$0xff]
        %v550 = vld [vmem:[#allocation5 + $0x560] sm:$0xff]
        %v551 = vld [vmem:[#allocation5 + $0x568] sm:$0xff]
        %v552 = vld [vmem:[#allocation5 + $0x570] sm:$0xff]
        %v553 = vld [vmem:[#allocation5 + $0x578] sm:$0xff]
        %v554 = vld [vmem:[#allocation5 + $0x580] sm:$0xff]
        %v555 = vld [vmem:[#allocation5 + $0x588] sm:$0xff]
        %v556 = vld [vmem:[#allocation5 + $0x590] sm:$0xff]
        %v557 = vld [vmem:[#allocation5 + $0x598] sm:$0xff]
        %v558 = vld [vmem:[#allocation5 + $0x5a0] sm:$0xff]
        %v559 = vld [vmem:[#allocation5 + $0x5a8] sm:$0xff]
        %v560 = vld [vmem:[#allocation5 + $0x5b0] sm:$0xff]
        %v561 = vld [vmem:[#allocation5 + $0x5b8] sm:$0xff]
        %v562 = vld [vmem:[#allocation5 + $0x5c0] sm:$0xff]
        %v563 = vld [vmem:[#allocation5 + $0x5c8] sm:$0xff]
        %v564 = vld [vmem:[#allocation5 + $0x5d0] sm:$0xff]
        %v565 = vld [vmem:[#allocation5 + $0x5d8] sm:$0xff]
        %v566 = vld [vmem:[#allocation5 + $0x5e0] sm:$0xff]
        %v567 = vld [vmem:[#allocation5 + $0x5e8] sm:$0xff]
        %v568 = vld [vmem:[#allocation5 + $0x5f0] sm:$0xff]
        %v569 = vld [vmem:[#allocation5 + $0x5f8] sm:$0xff]
        %v570 = vld [vmem:[#allocation5 + $0x600] sm:$0xff]
        %v571 = vld [vmem:[#allocation5 + $0x608] sm:$0xff]
        %v572 = vld [vmem:[#allocation5 + $0x610] sm:$0xff]
        %v573 = vld [vmem:[#allocation5 + $0x618] sm:$0xff]
        %v574 = vld [vmem:[#allocation5 + $0x620] sm:$0xff]
        %v575 = vld [vmem:[#allocation5 + $0x628] sm:$0xff]
        %v576 = vld [vmem:[#allocation5 + $0x630] sm:$0xff]
        %v577 = vld [vmem:[#allocation5 + $0x638] sm:$0xff]
        %v578 = vld [vmem:[#allocation5 + $0x640] sm:$0xff]
        %v579 = vld [vmem:[#allocation5 + $0x648] sm:$0xff]
        %v580 = vld [vmem:[#allocation5 + $0x650] sm:$0xff]
        %v581 = vld [vmem:[#allocation5 + $0x658] sm:$0xff]
        %v582 = vld [vmem:[#allocation5 + $0x660] sm:$0xff]
        %v583 = vld [vmem:[#allocation5 + $0x668] sm:$0xff]
        %v584 = vld [vmem:[#allocation5 + $0x670] sm:$0xff]
        %v585 = vld [vmem:[#allocation5 + $0x678] sm:$0xff]
        %v586 = vld [vmem:[#allocation5 + $0x680] sm:$0xff]
        %v587 = vld [vmem:[#allocation5 + $0x688] sm:$0xff]
        %v588 = vld [vmem:[#allocation5 + $0x690] sm:$0xff]
        %v589 = vld [vmem:[#allocation5 + $0x698] sm:$0xff]
        %v590 = vld [vmem:[#allocation5 + $0x6a0] sm:$0xff]
        %v591 = vld [vmem:[#allocation5 + $0x6a8] sm:$0xff]
        %v592 = vld [vmem:[#allocation5 + $0x6b0] sm:$0xff]
        %v593 = vld [vmem:[#allocation5 + $0x6b8] sm:$0xff]
        %v594 = vld [vmem:[#allocation5 + $0x6c0] sm:$0xff]
        %v595 = vld [vmem:[#allocation5 + $0x6c8] sm:$0xff]
        %v596 = vld [vmem:[#allocation5 + $0x6d0] sm:$0xff]
        %v597 = vld [vmem:[#allocation5 + $0x6d8] sm:$0xff]
        %v598 = vld [vmem:[#allocation5 + $0x6e0] sm:$0xff]
        %v599 = vld [vmem:[#allocation5 + $0x6e8] sm:$0xff]
        %v600 = vld [vmem:[#allocation5 + $0x6f0] sm:$0xff]
        %v601 = vld [vmem:[#allocation5 + $0x6f8] sm:$0xff]
        %v602 = vld [vmem:[#allocation5 + $0x700] sm:$0xff]
        %v603 = vld [vmem:[#allocation5 + $0x708] sm:$0xff]
        %v604 = vld [vmem:[#allocation5 + $0x710] sm:$0xff]
        %v605 = vld [vmem:[#allocation5 + $0x718] sm:$0xff]
        %v606 = vld [vmem:[#allocation5 + $0x720] sm:$0xff]
        %v607 = vld [vmem:[#allocation5 + $0x728] sm:$0xff]
        %v608 = vld [vmem:[#allocation5 + $0x730] sm:$0xff]
        %v609 = vld [vmem:[#allocation5 + $0x738] sm:$0xff]
        %v610 = vld [vmem:[#allocation5 + $0x740] sm:$0xff]
        %v611 = vld [vmem:[#allocation5 + $0x748] sm:$0xff]
        %v612 = vld [vmem:[#allocation5 + $0x750] sm:$0xff]
        %v613 = vld [vmem:[#allocation5 + $0x758] sm:$0xff]
        %v614 = vld [vmem:[#allocation5 + $0x760] sm:$0xff]
        %v615 = vld [vmem:[#allocation5 + $0x768] sm:$0xff]
        %v616 = vld [vmem:[#allocation5 + $0x770] sm:$0xff]
        %v617 = vld [vmem:[#allocation5 + $0x778] sm:$0xff]
        %v618 = vld [vmem:[#allocation5 + $0x780] sm:$0xff]
        %v619 = vld [vmem:[#allocation5 + $0x788] sm:$0xff]
        %v620 = vld [vmem:[#allocation5 + $0x790] sm:$0xff]
        %v621 = vld [vmem:[#allocation5 + $0x798] sm:$0xff]
        %v622 = vld [vmem:[#allocation5 + $0x7a0] sm:$0xff]
        %v623 = vld [vmem:[#allocation5 + $0x7a8] sm:$0xff]
        %v624 = vld [vmem:[#allocation5 + $0x7b0] sm:$0xff]
        %v625 = vld [vmem:[#allocation5 + $0x7b8] sm:$0xff]
        %v626 = vld [vmem:[#allocation5 + $0x7c0] sm:$0xff]
        %v627 = vld [vmem:[#allocation5 + $0x7c8] sm:$0xff]
        %v628 = vld [vmem:[#allocation5 + $0x7d0] sm:$0xff]
        %v629 = vld [vmem:[#allocation5 + $0x7d8] sm:$0xff]
        %v630 = vld [vmem:[#allocation5 + $0x7e0] sm:$0xff]
        %v631 = vld [vmem:[#allocation5 + $0x7e8] sm:$0xff]
        %v632 = vld [vmem:[#allocation5 + $0x7f0] sm:$0xff]
        %v633 = vld [vmem:[#allocation5 + $0x7f8] sm:$0xff]
        %v634 = vld [vmem:[#allocation5 + $0x800] sm:$0xff]
        %v635 = vld [vmem:[#allocation5 + $0x808] sm:$0xff]
        %v636 = vld [vmem:[#allocation5 + $0x810] sm:$0xff]
        %v637 = vld [vmem:[#allocation5 + $0x818] sm:$0xff]
        %v638 = vld [vmem:[#allocation5 + $0x820] sm:$0xff]
        %v639 = vld [vmem:[#allocation5 + $0x828] sm:$0xff]
        %v640 = vld [vmem:[#allocation5 + $0x830] sm:$0xff]
        %v641 = vld [vmem:[#allocation5 + $0x838] sm:$0xff]
        %v642 = vld [vmem:[#allocation5 + $0x840] sm:$0xff]
        %v643 = vld [vmem:[#allocation5 + $0x848] sm:$0xff]
        %v644 = vld [vmem:[#allocation5 + $0x850] sm:$0xff]
        %v645 = vld [vmem:[#allocation5 + $0x858] sm:$0xff]
        %v646 = vld [vmem:[#allocation5 + $0x860] sm:$0xff]
        %v647 = vld [vmem:[#allocation5 + $0x868] sm:$0xff]
        %v648 = vld [vmem:[#allocation5 + $0x870] sm:$0xff]
        %v649 = vld [vmem:[#allocation5 + $0x878] sm:$0xff]
        %v650 = vld [vmem:[#allocation5 + $0x880] sm:$0xff]
        %v651 = vld [vmem:[#allocation5 + $0x888] sm:$0xff]
        %v652 = vld [vmem:[#allocation5 + $0x890] sm:$0xff]
        %v653 = vld [vmem:[#allocation5 + $0x898] sm:$0xff]
        %v654 = vld [vmem:[#allocation5 + $0x8a0] sm:$0xff]
        %v655 = vld [vmem:[#allocation5 + $0x8a8] sm:$0xff]
        %v656 = vld [vmem:[#allocation5 + $0x8b0] sm:$0xff]
        %v657 = vld [vmem:[#allocation5 + $0x8b8] sm:$0xff]
        %v658 = vld [vmem:[#allocation5 + $0x8c0] sm:$0xff]
        %v659 = vld [vmem:[#allocation5 + $0x8c8] sm:$0xff]
        %v660 = vld [vmem:[#allocation5 + $0x8d0] sm:$0xff]
        %v661 = vld [vmem:[#allocation5 + $0x8d8] sm:$0xff]
        %v662 = vld [vmem:[#allocation5 + $0x8e0] sm:$0xff]
        %v663 = vld [vmem:[#allocation5 + $0x8e8] sm:$0xff]
        %v664 = vld [vmem:[#allocation5 + $0x8f0] sm:$0xff]
        %v665 = vld [vmem:[#allocation5 + $0x8f8] sm:$0xff]
        %v666 = vld [vmem:[#allocation5 + $0x900] sm:$0xff]
        %v667 = vld [vmem:[#allocation5 + $0x908] sm:$0xff]
        %v668 = vld [vmem:[#allocation5 + $0x910] sm:$0xff]
        %v669 = vld [vmem:[#allocation5 + $0x918] sm:$0xff]
        %v670 = vld [vmem:[#allocation5 + $0x920] sm:$0xff]
        %v671 = vld [vmem:[#allocation5 + $0x928] sm:$0xff]
        %v672 = vld [vmem:[#allocation5 + $0x930] sm:$0xff]
        %v673 = vld [vmem:[#allocation5 + $0x938] sm:$0xff]
        %v674 = vld [vmem:[#allocation5 + $0x940] sm:$0xff]
        %v675 = vld [vmem:[#allocation5 + $0x948] sm:$0xff]
        %v676 = vld [vmem:[#allocation5 + $0x950] sm:$0xff]
        %v677 = vld [vmem:[#allocation5 + $0x958] sm:$0xff]
        %v678 = vld [vmem:[#allocation5 + $0x960] sm:$0xff]
        %v679 = vld [vmem:[#allocation5 + $0x968] sm:$0xff]
        %v680 = vld [vmem:[#allocation5 + $0x970] sm:$0xff]
        %v681 = vld [vmem:[#allocation5 + $0x978] sm:$0xff]
        %v682 = vld [vmem:[#allocation5 + $0x980] sm:$0xff]
        %v683 = vld [vmem:[#allocation5 + $0x988] sm:$0xff]
        %v684 = vld [vmem:[#allocation5 + $0x990] sm:$0xff]
        %v685 = vld [vmem:[#allocation5 + $0x998] sm:$0xff]
        %v686 = vld [vmem:[#allocation5 + $0x9a0] sm:$0xff]
        %v687 = vld [vmem:[#allocation5 + $0x9a8] sm:$0xff]
        %v688 = vld [vmem:[#allocation5 + $0x9b0] sm:$0xff]
        %v689 = vld [vmem:[#allocation5 + $0x9b8] sm:$0xff]
        %v690 = vld [vmem:[#allocation5 + $0x9c0] sm:$0xff]
        %v691 = vld [vmem:[#allocation5 + $0x9c8] sm:$0xff]
        %v692 = vld [vmem:[#allocation5 + $0x9d0] sm:$0xff]
        %v693 = vld [vmem:[#allocation5 + $0x9d8] sm:$0xff]
        %v694 = vld [vmem:[#allocation5 + $0x9e0] sm:$0xff]
        %v695 = vld [vmem:[#allocation5 + $0x9e8] sm:$0xff]
        %v696 = vld [vmem:[#allocation5 + $0x9f0] sm:$0xff]
        %v697 = vld [vmem:[#allocation5 + $0x9f8] sm:$0xff]
        %v698 = vld [vmem:[#allocation5 + $0xa00] sm:$0xff]
        %v699 = vld [vmem:[#allocation5 + $0xa08] sm:$0xff]
        %v700 = vld [vmem:[#allocation5 + $0xa10] sm:$0xff]
        %v701 = vld [vmem:[#allocation5 + $0xa18] sm:$0xff]
        %v702 = vld [vmem:[#allocation5 + $0xa20] sm:$0xff]
        %v703 = vld [vmem:[#allocation5 + $0xa28] sm:$0xff]
        %v704 = vld [vmem:[#allocation5 + $0xa30] sm:$0xff]
        %v705 = vld [vmem:[#allocation5 + $0xa38] sm:$0xff]
        %v706 = vld [vmem:[#allocation5 + $0xa40] sm:$0xff]
        %v707 = vld [vmem:[#allocation5 + $0xa48] sm:$0xff]
        %v708 = vld [vmem:[#allocation5 + $0xa50] sm:$0xff]
        %v709 = vld [vmem:[#allocation5 + $0xa58] sm:$0xff]
        %v710 = vld [vmem:[#allocation5 + $0xa60] sm:$0xff]
        %v711 = vld [vmem:[#allocation5 + $0xa68] sm:$0xff]
        %v712 = vld [vmem:[#allocation5 + $0xa70] sm:$0xff]
        %v713 = vld [vmem:[#allocation5 + $0xa78] sm:$0xff]
        %v714 = vld [vmem:[#allocation5 + $0xa80] sm:$0xff]
        %v715 = vld [vmem:[#allocation5 + $0xa88] sm:$0xff]
        %v716 = vld [vmem:[#allocation5 + $0xa90] sm:$0xff]
        %v717 = vld [vmem:[#allocation5 + $0xa98] sm:$0xff]
        %v718 = vld [vmem:[#allocation5 + $0xaa0] sm:$0xff]
        %v719 = vld [vmem:[#allocation5 + $0xaa8] sm:$0xff]
        %v720 = vld [vmem:[#allocation5 + $0xab0] sm:$0xff]
        %v721 = vld [vmem:[#allocation5 + $0xab8] sm:$0xff]
        %v722 = vld [vmem:[#allocation5 + $0xac0] sm:$0xff]
        %v723 = vld [vmem:[#allocation5 + $0xac8] sm:$0xff]
        %v724 = vld [vmem:[#allocation5 + $0xad0] sm:$0xff]
        %v725 = vld [vmem:[#allocation5 + $0xad8] sm:$0xff]
        %v726 = vld [vmem:[#allocation5 + $0xae0] sm:$0xff]
        %v727 = vld [vmem:[#allocation5 + $0xae8] sm:$0xff]
        %v728 = vld [vmem:[#allocation5 + $0xaf0] sm:$0xff]
        %v729 = vld [vmem:[#allocation5 + $0xaf8] sm:$0xff]
        %v730 = vld [vmem:[#allocation5 + $0xb00] sm:$0xff]
        %v731 = vld [vmem:[#allocation5 + $0xb08] sm:$0xff]
        %v732 = vld [vmem:[#allocation5 + $0xb10] sm:$0xff]
        %v733 = vld [vmem:[#allocation5 + $0xb18] sm:$0xff]
        %v734 = vld [vmem:[#allocation5 + $0xb20] sm:$0xff]
        %v735 = vld [vmem:[#allocation5 + $0xb28] sm:$0xff]
        %v736 = vld [vmem:[#allocation5 + $0xb30] sm:$0xff]
        %v737 = vld [vmem:[#allocation5 + $0xb38] sm:$0xff]
        %v738 = vld [vmem:[#allocation5 + $0xb40] sm:$0xff]
        %v739 = vld [vmem:[#allocation5 + $0xb48] sm:$0xff]
        %v740 = vld [vmem:[#allocation5 + $0xb50] sm:$0xff]
        %v741 = vld [vmem:[#allocation5 + $0xb58] sm:$0xff]
        %v742 = vld [vmem:[#allocation5 + $0xb60] sm:$0xff]
        %v743 = vld [vmem:[#allocation5 + $0xb68] sm:$0xff]
        %v744 = vld [vmem:[#allocation5 + $0xb70] sm:$0xff]
        %v745 = vld [vmem:[#allocation5 + $0xb78] sm:$0xff]
        %v746 = vld [vmem:[#allocation5 + $0xb80] sm:$0xff]
        %v747 = vld [vmem:[#allocation5 + $0xb88] sm:$0xff]
        %v748 = vld [vmem:[#allocation5 + $0xb90] sm:$0xff]
        %v749 = vld [vmem:[#allocation5 + $0xb98] sm:$0xff]
        %v750 = vld [vmem:[#allocation5 + $0xba0] sm:$0xff]
        %v751 = vld [vmem:[#allocation5 + $0xba8] sm:$0xff]
        %v752 = vld [vmem:[#allocation5 + $0xbb0] sm:$0xff]
        %v753 = vld [vmem:[#allocation5 + $0xbb8] sm:$0xff]
        %v754 = vld [vmem:[#allocation5 + $0xbc0] sm:$0xff]
        %v755 = vld [vmem:[#allocation5 + $0xbc8] sm:$0xff]
        %v756 = vld [vmem:[#allocation5 + $0xbd0] sm:$0xff]
        %v757 = vld [vmem:[#allocation5 + $0xbd8] sm:$0xff]
        %v758 = vld [vmem:[#allocation5 + $0xbe0] sm:$0xff]
        %v759 = vld [vmem:[#allocation5 + $0xbe8] sm:$0xff]
        %v760 = vld [vmem:[#allocation5 + $0xbf0] sm:$0xff]
        %v761 = vld [vmem:[#allocation5 + $0xbf8] sm:$0xff]
        %v762 = vld [vmem:[#allocation5 + $0xc00] sm:$0xff]
        %v763 = vld [vmem:[#allocation5 + $0xc08] sm:$0xff]
        %v764 = vld [vmem:[#allocation5 + $0xc10] sm:$0xff]
        %v765 = vld [vmem:[#allocation5 + $0xc18] sm:$0xff]
        %v766 = vld [vmem:[#allocation5 + $0xc20] sm:$0xff]
        %v767 = vld [vmem:[#allocation5 + $0xc28] sm:$0xff]
        %v768 = vld [vmem:[#allocation5 + $0xc30] sm:$0xff]
        %v769 = vld [vmem:[#allocation5 + $0xc38] sm:$0xff]
        %v770 = vld [vmem:[#allocation5 + $0xc40] sm:$0xff]
        %v771 = vld [vmem:[#allocation5 + $0xc48] sm:$0xff]
        %v772 = vld [vmem:[#allocation5 + $0xc50] sm:$0xff]
        %v773 = vld [vmem:[#allocation5 + $0xc58] sm:$0xff]
        %v774 = vld [vmem:[#allocation5 + $0xc60] sm:$0xff]
        %v775 = vld [vmem:[#allocation5 + $0xc68] sm:$0xff]
        %v776 = vld [vmem:[#allocation5 + $0xc70] sm:$0xff]
        %v777 = vld [vmem:[#allocation5 + $0xc78] sm:$0xff]
        %v778 = vld [vmem:[#allocation5 + $0xc80] sm:$0xff]
        %v779 = vld [vmem:[#allocation5 + $0xc88] sm:$0xff]
        %v780 = vld [vmem:[#allocation5 + $0xc90] sm:$0xff]
        %v781 = vld [vmem:[#allocation5 + $0xc98] sm:$0xff]
        %v782 = vld [vmem:[#allocation5 + $0xca0] sm:$0xff]
        %v783 = vld [vmem:[#allocation5 + $0xca8] sm:$0xff]
        %v784 = vld [vmem:[#allocation5 + $0xcb0] sm:$0xff]
        %v785 = vld [vmem:[#allocation5 + $0xcb8] sm:$0xff]
        %v786 = vld [vmem:[#allocation5 + $0xcc0] sm:$0xff]
        %v787 = vld [vmem:[#allocation5 + $0xcc8] sm:$0xff]
        %v788 = vld [vmem:[#allocation5 + $0xcd0] sm:$0xff]
        %v789 = vld [vmem:[#allocation5 + $0xcd8] sm:$0xff]
        %v790 = vld [vmem:[#allocation5 + $0xce0] sm:$0xff]
        %v791 = vld [vmem:[#allocation5 + $0xce8] sm:$0xff]
        %v792 = vld [vmem:[#allocation5 + $0xcf0] sm:$0xff]
        %v793 = vld [vmem:[#allocation5 + $0xcf8] sm:$0xff]
        %v794 = vld [vmem:[#allocation5 + $0xd00] sm:$0xff]
        %v795 = vld [vmem:[#allocation5 + $0xd08] sm:$0xff]
        %v796 = vld [vmem:[#allocation5 + $0xd10] sm:$0xff]
        %v797 = vld [vmem:[#allocation5 + $0xd18] sm:$0xff]
        %v798 = vld [vmem:[#allocation5 + $0xd20] sm:$0xff]
        %v799 = vld [vmem:[#allocation5 + $0xd28] sm:$0xff]
        %v800 = vld [vmem:[#allocation5 + $0xd30] sm:$0xff]
        %v801 = vld [vmem:[#allocation5 + $0xd38] sm:$0xff]
        %v802 = vld [vmem:[#allocation5 + $0xd40] sm:$0xff]
        %v803 = vld [vmem:[#allocation5 + $0xd48] sm:$0xff]
        %v804 = vld [vmem:[#allocation5 + $0xd50] sm:$0xff]
        %v805 = vld [vmem:[#allocation5 + $0xd58] sm:$0xff]
        %v806 = vld [vmem:[#allocation5 + $0xd60] sm:$0xff]
        %v807 = vld [vmem:[#allocation5 + $0xd68] sm:$0xff]
        %v808 = vld [vmem:[#allocation5 + $0xd70] sm:$0xff]
        %v809 = vld [vmem:[#allocation5 + $0xd78] sm:$0xff]
        %v810 = vld [vmem:[#allocation5 + $0xd80] sm:$0xff]
        %v811 = vld [vmem:[#allocation5 + $0xd88] sm:$0xff]
        %v812 = vld [vmem:[#allocation5 + $0xd90] sm:$0xff]
        %v813 = vld [vmem:[#allocation5 + $0xd98] sm:$0xff]
        %v814 = vld [vmem:[#allocation5 + $0xda0] sm:$0xff]
        %v815 = vld [vmem:[#allocation5 + $0xda8] sm:$0xff]
        %v816 = vld [vmem:[#allocation5 + $0xdb0] sm:$0xff]
        %v817 = vld [vmem:[#allocation5 + $0xdb8] sm:$0xff]
        %v818 = vld [vmem:[#allocation5 + $0xdc0] sm:$0xff]
        %v819 = vld [vmem:[#allocation5 + $0xdc8] sm:$0xff]
        %v820 = vld [vmem:[#allocation5 + $0xdd0] sm:$0xff]
        %v821 = vld [vmem:[#allocation5 + $0xdd8] sm:$0xff]
        %v822 = vld [vmem:[#allocation5 + $0xde0] sm:$0xff]
        %v823 = vld [vmem:[#allocation5 + $0xde8] sm:$0xff]
        %v824 = vld [vmem:[#allocation5 + $0xdf0] sm:$0xff]
        %v825 = vld [vmem:[#allocation5 + $0xdf8] sm:$0xff]
        %v826 = vld [vmem:[#allocation5 + $0xe00] sm:$0xff]
        %v827 = vld [vmem:[#allocation5 + $0xe08] sm:$0xff]
        %v828 = vld [vmem:[#allocation5 + $0xe10] sm:$0xff]
        %v829 = vld [vmem:[#allocation5 + $0xe18] sm:$0xff]
        %v830 = vld [vmem:[#allocation5 + $0xe20] sm:$0xff]
        %v831 = vld [vmem:[#allocation5 + $0xe28] sm:$0xff]
        %v832 = vld [vmem:[#allocation5 + $0xe30] sm:$0xff]
        %v833 = vld [vmem:[#allocation5 + $0xe38] sm:$0xff]
        %v834 = vld [vmem:[#allocation5 + $0xe40] sm:$0xff]
        %v835 = vld [vmem:[#allocation5 + $0xe48] sm:$0xff]
        %v836 = vld [vmem:[#allocation5 + $0xe50] sm:$0xff]
        %v837 = vld [vmem:[#allocation5 + $0xe58] sm:$0xff]
        %v838 = vld [vmem:[#allocation5 + $0xe60] sm:$0xff]
        %v839 = vld [vmem:[#allocation5 + $0xe68] sm:$0xff]
        %v840 = vld [vmem:[#allocation5 + $0xe70] sm:$0xff]
        %v841 = vld [vmem:[#allocation5 + $0xe78] sm:$0xff]
        %v842 = vld [vmem:[#allocation5 + $0xe80] sm:$0xff]
        %v843 = vld [vmem:[#allocation5 + $0xe88] sm:$0xff]
        %v844 = vld [vmem:[#allocation5 + $0xe90] sm:$0xff]
        %v845 = vld [vmem:[#allocation5 + $0xe98] sm:$0xff]
        %v846 = vld [vmem:[#allocation5 + $0xea0] sm:$0xff]
        %v847 = vld [vmem:[#allocation5 + $0xea8] sm:$0xff]
        %v848 = vld [vmem:[#allocation5 + $0xeb0] sm:$0xff]
        %v849 = vld [vmem:[#allocation5 + $0xeb8] sm:$0xff]
        %v850 = vld [vmem:[#allocation5 + $0xec0] sm:$0xff]
        %v851 = vld [vmem:[#allocation5 + $0xec8] sm:$0xff]
        %v852 = vld [vmem:[#allocation5 + $0xed0] sm:$0xff]
        %v853 = vld [vmem:[#allocation5 + $0xed8] sm:$0xff]
        %v854 = vld [vmem:[#allocation5 + $0xee0] sm:$0xff]
        %v855 = vld [vmem:[#allocation5 + $0xee8] sm:$0xff]
        %v856 = vld [vmem:[#allocation5 + $0xef0] sm:$0xff]
        %v857 = vld [vmem:[#allocation5 + $0xef8] sm:$0xff]
        %v858 = vld [vmem:[#allocation5 + $0xf00] sm:$0xff]
        %v859 = vld [vmem:[#allocation5 + $0xf08] sm:$0xff]
        %v860 = vld [vmem:[#allocation5 + $0xf10] sm:$0xff]
        %v861 = vld [vmem:[#allocation5 + $0xf18] sm:$0xff]
        %v862 = vld [vmem:[#allocation5 + $0xf20] sm:$0xff]
        %v863 = vld [vmem:[#allocation5 + $0xf28] sm:$0xff]
        %v864 = vld [vmem:[#allocation5 + $0xf30] sm:$0xff]
        %v865 = vld [vmem:[#allocation5 + $0xf38] sm:$0xff]
        %v866 = vld [vmem:[#allocation5 + $0xf40] sm:$0xff]
        %v867 = vld [vmem:[#allocation5 + $0xf48] sm:$0xff]
        %v868 = vld [vmem:[#allocation5 + $0xf50] sm:$0xff]
        %v869 = vld [vmem:[#allocation5 + $0xf58] sm:$0xff]
        %v870 = vld [vmem:[#allocation5 + $0xf60] sm:$0xff]
        %v871 = vld [vmem:[#allocation5 + $0xf68] sm:$0xff]
        %v872 = vld [vmem:[#allocation5 + $0xf70] sm:$0xff]
        %v873 = vld [vmem:[#allocation5 + $0xf78] sm:$0xff]
        %v874 = vld [vmem:[#allocation5 + $0xf80] sm:$0xff]
        %v875 = vld [vmem:[#allocation5 + $0xf88] sm:$0xff]
        %v876 = vld [vmem:[#allocation5 + $0xf90] sm:$0xff]
        %v877 = vld [vmem:[#allocation5 + $0xf98] sm:$0xff]
        %v878 = vld [vmem:[#allocation5 + $0xfa0] sm:$0xff]
        %v879 = vld [vmem:[#allocation5 + $0xfa8] sm:$0xff]
        %v880 = vld [vmem:[#allocation5 + $0xfb0] sm:$0xff]
        %v881 = vld [vmem:[#allocation5 + $0xfb8] sm:$0xff]
        %v882 = vld [vmem:[#allocation5 + $0xfc0] sm:$0xff]
        %v883 = vld [vmem:[#allocation5 + $0xfc8] sm:$0xff]
        %v884 = vld [vmem:[#allocation5 + $0xfd0] sm:$0xff]
        %v885 = vld [vmem:[#allocation5 + $0xfd8] sm:$0xff]
        %v886 = vld [vmem:[#allocation5 + $0xfe0] sm:$0xff]
        %v887 = vld [vmem:[#allocation5 + $0xfe8] sm:$0xff]
        %v888 = vld [vmem:[#allocation5 + $0xff0] sm:$0xff]
        %v889 = vld [vmem:[#allocation5 + $0xff8] sm:$0xff]
        %v1402 = vunpack.c.l.b16 %v378
        %v1403 = vunpack.c.h.b16 %v378
        %v1404 = vunpack.c.l.b16 %v379
        %v1405 = vunpack.c.h.b16 %v379
        %v1406 = vunpack.c.l.b16 %v380
        %v1407 = vunpack.c.h.b16 %v380
        %v1408 = vunpack.c.l.b16 %v381
        %v1409 = vunpack.c.h.b16 %v381
        %v1410 = vunpack.c.l.b16 %v382
        %v1411 = vunpack.c.h.b16 %v382
        %v1412 = vunpack.c.l.b16 %v383
        %v1413 = vunpack.c.h.b16 %v383
        %v1414 = vunpack.c.l.b16 %v384
        %v1415 = vunpack.c.h.b16 %v384
        %v1416 = vunpack.c.l.b16 %v385
        %v1417 = vunpack.c.h.b16 %v385
        %v1418 = vunpack.c.l.b16 %v386
        %v1419 = vunpack.c.h.b16 %v386
        %v1420 = vunpack.c.l.b16 %v387
        %v1421 = vunpack.c.h.b16 %v387
        %v1422 = vunpack.c.l.b16 %v388
        %v1423 = vunpack.c.h.b16 %v388
        %v1424 = vunpack.c.l.b16 %v389
        %v1425 = vunpack.c.h.b16 %v389
        %v1426 = vunpack.c.l.b16 %v390
        %v1427 = vunpack.c.h.b16 %v390
        %v1428 = vunpack.c.l.b16 %v391
        %v1429 = vunpack.c.h.b16 %v391
        %v1430 = vunpack.c.l.b16 %v392
        %v1431 = vunpack.c.h.b16 %v392
        %v1432 = vunpack.c.l.b16 %v393
        %v1433 = vunpack.c.h.b16 %v393
        %v1434 = vunpack.c.l.b16 %v394
        %v1435 = vunpack.c.h.b16 %v394
        %v1436 = vunpack.c.l.b16 %v395
        %v1437 = vunpack.c.h.b16 %v395
        %v1438 = vunpack.c.l.b16 %v396
        %v1439 = vunpack.c.h.b16 %v396
        %v1440 = vunpack.c.l.b16 %v397
        %v1441 = vunpack.c.h.b16 %v397
        %v1442 = vunpack.c.l.b16 %v398
        %v1443 = vunpack.c.h.b16 %v398
        %v1444 = vunpack.c.l.b16 %v399
        %v1445 = vunpack.c.h.b16 %v399
        %v1446 = vunpack.c.l.b16 %v400
        %v1447 = vunpack.c.h.b16 %v400
        %v1448 = vunpack.c.l.b16 %v401
        %v1449 = vunpack.c.h.b16 %v401
        %v1450 = vunpack.c.l.b16 %v402
        %v1451 = vunpack.c.h.b16 %v402
        %v1452 = vunpack.c.l.b16 %v403
        %v1453 = vunpack.c.h.b16 %v403
        %v1454 = vunpack.c.l.b16 %v404
        %v1455 = vunpack.c.h.b16 %v404
        %v1456 = vunpack.c.l.b16 %v405
        %v1457 = vunpack.c.h.b16 %v405
        %v1458 = vunpack.c.l.b16 %v406
        %v1459 = vunpack.c.h.b16 %v406
        %v1460 = vunpack.c.l.b16 %v407
        %v1461 = vunpack.c.h.b16 %v407
        %v1462 = vunpack.c.l.b16 %v408
        %v1463 = vunpack.c.h.b16 %v408
        %v1464 = vunpack.c.l.b16 %v409
        %v1465 = vunpack.c.h.b16 %v409
        %v1466 = vunpack.c.l.b16 %v410
        %v1467 = vunpack.c.h.b16 %v410
        %v1468 = vunpack.c.l.b16 %v411
        %v1469 = vunpack.c.h.b16 %v411
        %v1470 = vunpack.c.l.b16 %v412
        %v1471 = vunpack.c.h.b16 %v412
        %v1472 = vunpack.c.l.b16 %v413
        %v1473 = vunpack.c.h.b16 %v413
        %v1474 = vunpack.c.l.b16 %v414
        %v1475 = vunpack.c.h.b16 %v414
        %v1476 = vunpack.c.l.b16 %v415
        %v1477 = vunpack.c.h.b16 %v415
        %v1478 = vunpack.c.l.b16 %v416
        %v1479 = vunpack.c.h.b16 %v416
        %v1480 = vunpack.c.l.b16 %v417
        %v1481 = vunpack.c.h.b16 %v417
        %v1482 = vunpack.c.l.b16 %v418
        %v1483 = vunpack.c.h.b16 %v418
        %v1484 = vunpack.c.l.b16 %v419
        %v1485 = vunpack.c.h.b16 %v419
        %v1486 = vunpack.c.l.b16 %v420
        %v1487 = vunpack.c.h.b16 %v420
        %v1488 = vunpack.c.l.b16 %v421
        %v1489 = vunpack.c.h.b16 %v421
        %v1490 = vunpack.c.l.b16 %v422
        %v1491 = vunpack.c.h.b16 %v422
        %v1492 = vunpack.c.l.b16 %v423
        %v1493 = vunpack.c.h.b16 %v423
        %v1494 = vunpack.c.l.b16 %v424
        %v1495 = vunpack.c.h.b16 %v424
        %v1496 = vunpack.c.l.b16 %v425
        %v1497 = vunpack.c.h.b16 %v425
        %v1498 = vunpack.c.l.b16 %v426
        %v1499 = vunpack.c.h.b16 %v426
        %v1500 = vunpack.c.l.b16 %v427
        %v1501 = vunpack.c.h.b16 %v427
        %v1502 = vunpack.c.l.b16 %v428
        %v1503 = vunpack.c.h.b16 %v428
        %v1504 = vunpack.c.l.b16 %v429
        %v1505 = vunpack.c.h.b16 %v429
        %v1506 = vunpack.c.l.b16 %v430
        %v1507 = vunpack.c.h.b16 %v430
        %v1508 = vunpack.c.l.b16 %v431
        %v1509 = vunpack.c.h.b16 %v431
        %v1510 = vunpack.c.l.b16 %v432
        %v1511 = vunpack.c.h.b16 %v432
        %v1512 = vunpack.c.l.b16 %v433
        %v1513 = vunpack.c.h.b16 %v433
        %v1514 = vunpack.c.l.b16 %v434
        %v1515 = vunpack.c.h.b16 %v434
        %v1516 = vunpack.c.l.b16 %v435
        %v1517 = vunpack.c.h.b16 %v435
        %v1518 = vunpack.c.l.b16 %v436
        %v1519 = vunpack.c.h.b16 %v436
        %v1520 = vunpack.c.l.b16 %v437
        %v1521 = vunpack.c.h.b16 %v437
        %v1522 = vunpack.c.l.b16 %v438
        %v1523 = vunpack.c.h.b16 %v438
        %v1524 = vunpack.c.l.b16 %v439
        %v1525 = vunpack.c.h.b16 %v439
        %v1526 = vunpack.c.l.b16 %v440
        %v1527 = vunpack.c.h.b16 %v440
        %v1528 = vunpack.c.l.b16 %v441
        %v1529 = vunpack.c.h.b16 %v441
        %v1530 = vunpack.c.l.b16 %v442
        %v1531 = vunpack.c.h.b16 %v442
        %v1532 = vunpack.c.l.b16 %v443
        %v1533 = vunpack.c.h.b16 %v443
        %v1534 = vunpack.c.l.b16 %v444
        %v1535 = vunpack.c.h.b16 %v444
        %v1536 = vunpack.c.l.b16 %v445
        %v1537 = vunpack.c.h.b16 %v445
        %v1538 = vunpack.c.l.b16 %v446
        %v1539 = vunpack.c.h.b16 %v446
        %v1540 = vunpack.c.l.b16 %v447
        %v1541 = vunpack.c.h.b16 %v447
        %v1542 = vunpack.c.l.b16 %v448
        %v1543 = vunpack.c.h.b16 %v448
        %v1544 = vunpack.c.l.b16 %v449
        %v1545 = vunpack.c.h.b16 %v449
        %v1546 = vunpack.c.l.b16 %v450
        %v1547 = vunpack.c.h.b16 %v450
        %v1548 = vunpack.c.l.b16 %v451
        %v1549 = vunpack.c.h.b16 %v451
        %v1550 = vunpack.c.l.b16 %v452
        %v1551 = vunpack.c.h.b16 %v452
        %v1552 = vunpack.c.l.b16 %v453
        %v1553 = vunpack.c.h.b16 %v453
        %v1554 = vunpack.c.l.b16 %v454
        %v1555 = vunpack.c.h.b16 %v454
        %v1556 = vunpack.c.l.b16 %v455
        %v1557 = vunpack.c.h.b16 %v455
        %v1558 = vunpack.c.l.b16 %v456
        %v1559 = vunpack.c.h.b16 %v456
        %v1560 = vunpack.c.l.b16 %v457
        %v1561 = vunpack.c.h.b16 %v457
        %v1562 = vunpack.c.l.b16 %v458
        %v1563 = vunpack.c.h.b16 %v458
        %v1564 = vunpack.c.l.b16 %v459
        %v1565 = vunpack.c.h.b16 %v459
        %v1566 = vunpack.c.l.b16 %v460
        %v1567 = vunpack.c.h.b16 %v460
        %v1568 = vunpack.c.l.b16 %v461
        %v1569 = vunpack.c.h.b16 %v461
        %v1570 = vunpack.c.l.b16 %v462
        %v1571 = vunpack.c.h.b16 %v462
        %v1572 = vunpack.c.l.b16 %v463
        %v1573 = vunpack.c.h.b16 %v463
        %v1574 = vunpack.c.l.b16 %v464
        %v1575 = vunpack.c.h.b16 %v464
        %v1576 = vunpack.c.l.b16 %v465
        %v1577 = vunpack.c.h.b16 %v465
        %v1578 = vunpack.c.l.b16 %v466
        %v1579 = vunpack.c.h.b16 %v466
        %v1580 = vunpack.c.l.b16 %v467
        %v1581 = vunpack.c.h.b16 %v467
        %v1582 = vunpack.c.l.b16 %v468
        %v1583 = vunpack.c.h.b16 %v468
        %v1584 = vunpack.c.l.b16 %v469
        %v1585 = vunpack.c.h.b16 %v469
        %v1586 = vunpack.c.l.b16 %v470
        %v1587 = vunpack.c.h.b16 %v470
        %v1588 = vunpack.c.l.b16 %v471
        %v1589 = vunpack.c.h.b16 %v471
        %v1590 = vunpack.c.l.b16 %v472
        %v1591 = vunpack.c.h.b16 %v472
        %v1592 = vunpack.c.l.b16 %v473
        %v1593 = vunpack.c.h.b16 %v473
        %v1594 = vunpack.c.l.b16 %v474
        %v1595 = vunpack.c.h.b16 %v474
        %v1596 = vunpack.c.l.b16 %v475
        %v1597 = vunpack.c.h.b16 %v475
        %v1598 = vunpack.c.l.b16 %v476
        %v1599 = vunpack.c.h.b16 %v476
        %v1600 = vunpack.c.l.b16 %v477
        %v1601 = vunpack.c.h.b16 %v477
        %v1602 = vunpack.c.l.b16 %v478
        %v1603 = vunpack.c.h.b16 %v478
        %v1604 = vunpack.c.l.b16 %v479
        %v1605 = vunpack.c.h.b16 %v479
        %v1606 = vunpack.c.l.b16 %v480
        %v1607 = vunpack.c.h.b16 %v480
        %v1608 = vunpack.c.l.b16 %v481
        %v1609 = vunpack.c.h.b16 %v481
        %v1610 = vunpack.c.l.b16 %v482
        %v1611 = vunpack.c.h.b16 %v482
        %v1612 = vunpack.c.l.b16 %v483
        %v1613 = vunpack.c.h.b16 %v483
        %v1614 = vunpack.c.l.b16 %v484
        %v1615 = vunpack.c.h.b16 %v484
        %v1616 = vunpack.c.l.b16 %v485
        %v1617 = vunpack.c.h.b16 %v485
        %v1618 = vunpack.c.l.b16 %v486
        %v1619 = vunpack.c.h.b16 %v486
        %v1620 = vunpack.c.l.b16 %v487
        %v1621 = vunpack.c.h.b16 %v487
        %v1622 = vunpack.c.l.b16 %v488
        %v1623 = vunpack.c.h.b16 %v488
        %v1624 = vunpack.c.l.b16 %v489
        %v1625 = vunpack.c.h.b16 %v489
        %v1626 = vunpack.c.l.b16 %v490
        %v1627 = vunpack.c.h.b16 %v490
        %v1628 = vunpack.c.l.b16 %v491
        %v1629 = vunpack.c.h.b16 %v491
        %v1630 = vunpack.c.l.b16 %v492
        %v1631 = vunpack.c.h.b16 %v492
        %v1632 = vunpack.c.l.b16 %v493
        %v1633 = vunpack.c.h.b16 %v493
        %v1634 = vunpack.c.l.b16 %v494
        %v1635 = vunpack.c.h.b16 %v494
        %v1636 = vunpack.c.l.b16 %v495
        %v1637 = vunpack.c.h.b16 %v495
        %v1638 = vunpack.c.l.b16 %v496
        %v1639 = vunpack.c.h.b16 %v496
        %v1640 = vunpack.c.l.b16 %v497
        %v1641 = vunpack.c.h.b16 %v497
        %v1642 = vunpack.c.l.b16 %v498
        %v1643 = vunpack.c.h.b16 %v498
        %v1644 = vunpack.c.l.b16 %v499
        %v1645 = vunpack.c.h.b16 %v499
        %v1646 = vunpack.c.l.b16 %v500
        %v1647 = vunpack.c.h.b16 %v500
        %v1648 = vunpack.c.l.b16 %v501
        %v1649 = vunpack.c.h.b16 %v501
        %v1650 = vunpack.c.l.b16 %v502
        %v1651 = vunpack.c.h.b16 %v502
        %v1652 = vunpack.c.l.b16 %v503
        %v1653 = vunpack.c.h.b16 %v503
        %v1654 = vunpack.c.l.b16 %v504
        %v1655 = vunpack.c.h.b16 %v504
        %v1656 = vunpack.c.l.b16 %v505
        %v1657 = vunpack.c.h.b16 %v505
        %v1658 = vunpack.c.l.b16 %v506
        %v1659 = vunpack.c.h.b16 %v506
        %v1660 = vunpack.c.l.b16 %v507
        %v1661 = vunpack.c.h.b16 %v507
        %v1662 = vunpack.c.l.b16 %v508
        %v1663 = vunpack.c.h.b16 %v508
        %v1664 = vunpack.c.l.b16 %v509
        %v1665 = vunpack.c.h.b16 %v509
        %v1666 = vunpack.c.l.b16 %v510
        %v1667 = vunpack.c.h.b16 %v510
        %v1668 = vunpack.c.l.b16 %v511
        %v1669 = vunpack.c.h.b16 %v511
        %v1670 = vunpack.c.l.b16 %v512
        %v1671 = vunpack.c.h.b16 %v512
        %v1672 = vunpack.c.l.b16 %v513
        %v1673 = vunpack.c.h.b16 %v513
        %v1674 = vunpack.c.l.b16 %v514
        %v1675 = vunpack.c.h.b16 %v514
        %v1676 = vunpack.c.l.b16 %v515
        %v1677 = vunpack.c.h.b16 %v515
        %v1678 = vunpack.c.l.b16 %v516
        %v1679 = vunpack.c.h.b16 %v516
        %v1680 = vunpack.c.l.b16 %v517
        %v1681 = vunpack.c.h.b16 %v517
        %v1682 = vunpack.c.l.b16 %v518
        %v1683 = vunpack.c.h.b16 %v518
        %v1684 = vunpack.c.l.b16 %v519
        %v1685 = vunpack.c.h.b16 %v519
        %v1686 = vunpack.c.l.b16 %v520
        %v1687 = vunpack.c.h.b16 %v520
        %v1688 = vunpack.c.l.b16 %v521
        %v1689 = vunpack.c.h.b16 %v521
        %v1690 = vunpack.c.l.b16 %v522
        %v1691 = vunpack.c.h.b16 %v522
        %v1692 = vunpack.c.l.b16 %v523
        %v1693 = vunpack.c.h.b16 %v523
        %v1694 = vunpack.c.l.b16 %v524
        %v1695 = vunpack.c.h.b16 %v524
        %v1696 = vunpack.c.l.b16 %v525
        %v1697 = vunpack.c.h.b16 %v525
        %v1698 = vunpack.c.l.b16 %v526
        %v1699 = vunpack.c.h.b16 %v526
        %v1700 = vunpack.c.l.b16 %v527
        %v1701 = vunpack.c.h.b16 %v527
        %v1702 = vunpack.c.l.b16 %v528
        %v1703 = vunpack.c.h.b16 %v528
        %v1704 = vunpack.c.l.b16 %v529
        %v1705 = vunpack.c.h.b16 %v529
        %v1706 = vunpack.c.l.b16 %v530
        %v1707 = vunpack.c.h.b16 %v530
        %v1708 = vunpack.c.l.b16 %v531
        %v1709 = vunpack.c.h.b16 %v531
        %v1710 = vunpack.c.l.b16 %v532
        %v1711 = vunpack.c.h.b16 %v532
        %v1712 = vunpack.c.l.b16 %v533
        %v1713 = vunpack.c.h.b16 %v533
        %v1714 = vunpack.c.l.b16 %v534
        %v1715 = vunpack.c.h.b16 %v534
        %v1716 = vunpack.c.l.b16 %v535
        %v1717 = vunpack.c.h.b16 %v535
        %v1718 = vunpack.c.l.b16 %v536
        %v1719 = vunpack.c.h.b16 %v536
        %v1720 = vunpack.c.l.b16 %v537
        %v1721 = vunpack.c.h.b16 %v537
        %v1722 = vunpack.c.l.b16 %v538
        %v1723 = vunpack.c.h.b16 %v538
        %v1724 = vunpack.c.l.b16 %v539
        %v1725 = vunpack.c.h.b16 %v539
        %v1726 = vunpack.c.l.b16 %v540
        %v1727 = vunpack.c.h.b16 %v540
        %v1728 = vunpack.c.l.b16 %v541
        %v1729 = vunpack.c.h.b16 %v541
        %v1730 = vunpack.c.l.b16 %v542
        %v1731 = vunpack.c.h.b16 %v542
        %v1732 = vunpack.c.l.b16 %v543
        %v1733 = vunpack.c.h.b16 %v543
        %v1734 = vunpack.c.l.b16 %v544
        %v1735 = vunpack.c.h.b16 %v544
        %v1736 = vunpack.c.l.b16 %v545
        %v1737 = vunpack.c.h.b16 %v545
        %v1738 = vunpack.c.l.b16 %v546
        %v1739 = vunpack.c.h.b16 %v546
        %v1740 = vunpack.c.l.b16 %v547
        %v1741 = vunpack.c.h.b16 %v547
        %v1742 = vunpack.c.l.b16 %v548
        %v1743 = vunpack.c.h.b16 %v548
        %v1744 = vunpack.c.l.b16 %v549
        %v1745 = vunpack.c.h.b16 %v549
        %v1746 = vunpack.c.l.b16 %v550
        %v1747 = vunpack.c.h.b16 %v550
        %v1748 = vunpack.c.l.b16 %v551
        %v1749 = vunpack.c.h.b16 %v551
        %v1750 = vunpack.c.l.b16 %v552
        %v1751 = vunpack.c.h.b16 %v552
        %v1752 = vunpack.c.l.b16 %v553
        %v1753 = vunpack.c.h.b16 %v553
        %v1754 = vunpack.c.l.b16 %v554
        %v1755 = vunpack.c.h.b16 %v554
        %v1756 = vunpack.c.l.b16 %v555
        %v1757 = vunpack.c.h.b16 %v555
        %v1758 = vunpack.c.l.b16 %v556
        %v1759 = vunpack.c.h.b16 %v556
        %v1760 = vunpack.c.l.b16 %v557
        %v1761 = vunpack.c.h.b16 %v557
        %v1762 = vunpack.c.l.b16 %v558
        %v1763 = vunpack.c.h.b16 %v558
        %v1764 = vunpack.c.l.b16 %v559
        %v1765 = vunpack.c.h.b16 %v559
        %v1766 = vunpack.c.l.b16 %v560
        %v1767 = vunpack.c.h.b16 %v560
        %v1768 = vunpack.c.l.b16 %v561
        %v1769 = vunpack.c.h.b16 %v561
        %v1770 = vunpack.c.l.b16 %v562
        %v1771 = vunpack.c.h.b16 %v562
        %v1772 = vunpack.c.l.b16 %v563
        %v1773 = vunpack.c.h.b16 %v563
        %v1774 = vunpack.c.l.b16 %v564
        %v1775 = vunpack.c.h.b16 %v564
        %v1776 = vunpack.c.l.b16 %v565
        %v1777 = vunpack.c.h.b16 %v565
        %v1778 = vunpack.c.l.b16 %v566
        %v1779 = vunpack.c.h.b16 %v566
        %v1780 = vunpack.c.l.b16 %v567
        %v1781 = vunpack.c.h.b16 %v567
        %v1782 = vunpack.c.l.b16 %v568
        %v1783 = vunpack.c.h.b16 %v568
        %v1784 = vunpack.c.l.b16 %v569
        %v1785 = vunpack.c.h.b16 %v569
        %v1786 = vunpack.c.l.b16 %v570
        %v1787 = vunpack.c.h.b16 %v570
        %v1788 = vunpack.c.l.b16 %v571
        %v1789 = vunpack.c.h.b16 %v571
        %v1790 = vunpack.c.l.b16 %v572
        %v1791 = vunpack.c.h.b16 %v572
        %v1792 = vunpack.c.l.b16 %v573
        %v1793 = vunpack.c.h.b16 %v573
        %v1794 = vunpack.c.l.b16 %v574
        %v1795 = vunpack.c.h.b16 %v574
        %v1796 = vunpack.c.l.b16 %v575
        %v1797 = vunpack.c.h.b16 %v575
        %v1798 = vunpack.c.l.b16 %v576
        %v1799 = vunpack.c.h.b16 %v576
        %v1800 = vunpack.c.l.b16 %v577
        %v1801 = vunpack.c.h.b16 %v577
        %v1802 = vunpack.c.l.b16 %v578
        %v1803 = vunpack.c.h.b16 %v578
        %v1804 = vunpack.c.l.b16 %v579
        %v1805 = vunpack.c.h.b16 %v579
        %v1806 = vunpack.c.l.b16 %v580
        %v1807 = vunpack.c.h.b16 %v580
        %v1808 = vunpack.c.l.b16 %v581
        %v1809 = vunpack.c.h.b16 %v581
        %v1810 = vunpack.c.l.b16 %v582
        %v1811 = vunpack.c.h.b16 %v582
        %v1812 = vunpack.c.l.b16 %v583
        %v1813 = vunpack.c.h.b16 %v583
        %v1814 = vunpack.c.l.b16 %v584
        %v1815 = vunpack.c.h.b16 %v584
        %v1816 = vunpack.c.l.b16 %v585
        %v1817 = vunpack.c.h.b16 %v585
        %v1818 = vunpack.c.l.b16 %v586
        %v1819 = vunpack.c.h.b16 %v586
        %v1820 = vunpack.c.l.b16 %v587
        %v1821 = vunpack.c.h.b16 %v587
        %v1822 = vunpack.c.l.b16 %v588
        %v1823 = vunpack.c.h.b16 %v588
        %v1824 = vunpack.c.l.b16 %v589
        %v1825 = vunpack.c.h.b16 %v589
        %v1826 = vunpack.c.l.b16 %v590
        %v1827 = vunpack.c.h.b16 %v590
        %v1828 = vunpack.c.l.b16 %v591
        %v1829 = vunpack.c.h.b16 %v591
        %v1830 = vunpack.c.l.b16 %v592
        %v1831 = vunpack.c.h.b16 %v592
        %v1832 = vunpack.c.l.b16 %v593
        %v1833 = vunpack.c.h.b16 %v593
        %v1834 = vunpack.c.l.b16 %v594
        %v1835 = vunpack.c.h.b16 %v594
        %v1836 = vunpack.c.l.b16 %v595
        %v1837 = vunpack.c.h.b16 %v595
        %v1838 = vunpack.c.l.b16 %v596
        %v1839 = vunpack.c.h.b16 %v596
        %v1840 = vunpack.c.l.b16 %v597
        %v1841 = vunpack.c.h.b16 %v597
        %v1842 = vunpack.c.l.b16 %v598
        %v1843 = vunpack.c.h.b16 %v598
        %v1844 = vunpack.c.l.b16 %v599
        %v1845 = vunpack.c.h.b16 %v599
        %v1846 = vunpack.c.l.b16 %v600
        %v1847 = vunpack.c.h.b16 %v600
        %v1848 = vunpack.c.l.b16 %v601
        %v1849 = vunpack.c.h.b16 %v601
        %v1850 = vunpack.c.l.b16 %v602
        %v1851 = vunpack.c.h.b16 %v602
        %v1852 = vunpack.c.l.b16 %v603
        %v1853 = vunpack.c.h.b16 %v603
        %v1854 = vunpack.c.l.b16 %v604
        %v1855 = vunpack.c.h.b16 %v604
        %v1856 = vunpack.c.l.b16 %v605
        %v1857 = vunpack.c.h.b16 %v605
        %v1858 = vunpack.c.l.b16 %v606
        %v1859 = vunpack.c.h.b16 %v606
        %v1860 = vunpack.c.l.b16 %v607
        %v1861 = vunpack.c.h.b16 %v607
        %v1862 = vunpack.c.l.b16 %v608
        %v1863 = vunpack.c.h.b16 %v608
        %v1864 = vunpack.c.l.b16 %v609
        %v1865 = vunpack.c.h.b16 %v609
        %v1866 = vunpack.c.l.b16 %v610
        %v1867 = vunpack.c.h.b16 %v610
        %v1868 = vunpack.c.l.b16 %v611
        %v1869 = vunpack.c.h.b16 %v611
        %v1870 = vunpack.c.l.b16 %v612
        %v1871 = vunpack.c.h.b16 %v612
        %v1872 = vunpack.c.l.b16 %v613
        %v1873 = vunpack.c.h.b16 %v613
        %v1874 = vunpack.c.l.b16 %v614
        %v1875 = vunpack.c.h.b16 %v614
        %v1876 = vunpack.c.l.b16 %v615
        %v1877 = vunpack.c.h.b16 %v615
        %v1878 = vunpack.c.l.b16 %v616
        %v1879 = vunpack.c.h.b16 %v616
        %v1880 = vunpack.c.l.b16 %v617
        %v1881 = vunpack.c.h.b16 %v617
        %v1882 = vunpack.c.l.b16 %v618
        %v1883 = vunpack.c.h.b16 %v618
        %v1884 = vunpack.c.l.b16 %v619
        %v1885 = vunpack.c.h.b16 %v619
        %v1886 = vunpack.c.l.b16 %v620
        %v1887 = vunpack.c.h.b16 %v620
        %v1888 = vunpack.c.l.b16 %v621
        %v1889 = vunpack.c.h.b16 %v621
        %v1890 = vunpack.c.l.b16 %v622
        %v1891 = vunpack.c.h.b16 %v622
        %v1892 = vunpack.c.l.b16 %v623
        %v1893 = vunpack.c.h.b16 %v623
        %v1894 = vunpack.c.l.b16 %v624
        %v1895 = vunpack.c.h.b16 %v624
        %v1896 = vunpack.c.l.b16 %v625
        %v1897 = vunpack.c.h.b16 %v625
        %v1898 = vunpack.c.l.b16 %v626
        %v1899 = vunpack.c.h.b16 %v626
        %v1900 = vunpack.c.l.b16 %v627
        %v1901 = vunpack.c.h.b16 %v627
        %v1902 = vunpack.c.l.b16 %v628
        %v1903 = vunpack.c.h.b16 %v628
        %v1904 = vunpack.c.l.b16 %v629
        %v1905 = vunpack.c.h.b16 %v629
        %v1906 = vunpack.c.l.b16 %v630
        %v1907 = vunpack.c.h.b16 %v630
        %v1908 = vunpack.c.l.b16 %v631
        %v1909 = vunpack.c.h.b16 %v631
        %v1910 = vunpack.c.l.b16 %v632
        %v1911 = vunpack.c.h.b16 %v632
        %v1912 = vunpack.c.l.b16 %v633
        %v1913 = vunpack.c.h.b16 %v633
        %v1914 = vunpack.c.l.b16 %v634
        %v1915 = vunpack.c.h.b16 %v634
        %v1916 = vunpack.c.l.b16 %v635
        %v1917 = vunpack.c.h.b16 %v635
        %v1918 = vunpack.c.l.b16 %v636
        %v1919 = vunpack.c.h.b16 %v636
        %v1920 = vunpack.c.l.b16 %v637
        %v1921 = vunpack.c.h.b16 %v637
        %v1922 = vunpack.c.l.b16 %v638
        %v1923 = vunpack.c.h.b16 %v638
        %v1924 = vunpack.c.l.b16 %v639
        %v1925 = vunpack.c.h.b16 %v639
        %v1926 = vunpack.c.l.b16 %v640
        %v1927 = vunpack.c.h.b16 %v640
        %v1928 = vunpack.c.l.b16 %v641
        %v1929 = vunpack.c.h.b16 %v641
        %v1930 = vunpack.c.l.b16 %v642
        %v1931 = vunpack.c.h.b16 %v642
        %v1932 = vunpack.c.l.b16 %v643
        %v1933 = vunpack.c.h.b16 %v643
        %v1934 = vunpack.c.l.b16 %v644
        %v1935 = vunpack.c.h.b16 %v644
        %v1936 = vunpack.c.l.b16 %v645
        %v1937 = vunpack.c.h.b16 %v645
        %v1938 = vunpack.c.l.b16 %v646
        %v1939 = vunpack.c.h.b16 %v646
        %v1940 = vunpack.c.l.b16 %v647
        %v1941 = vunpack.c.h.b16 %v647
        %v1942 = vunpack.c.l.b16 %v648
        %v1943 = vunpack.c.h.b16 %v648
        %v1944 = vunpack.c.l.b16 %v649
        %v1945 = vunpack.c.h.b16 %v649
        %v1946 = vunpack.c.l.b16 %v650
        %v1947 = vunpack.c.h.b16 %v650
        %v1948 = vunpack.c.l.b16 %v651
        %v1949 = vunpack.c.h.b16 %v651
        %v1950 = vunpack.c.l.b16 %v652
        %v1951 = vunpack.c.h.b16 %v652
        %v1952 = vunpack.c.l.b16 %v653
        %v1953 = vunpack.c.h.b16 %v653
        %v1954 = vunpack.c.l.b16 %v654
        %v1955 = vunpack.c.h.b16 %v654
        %v1956 = vunpack.c.l.b16 %v655
        %v1957 = vunpack.c.h.b16 %v655
        %v1958 = vunpack.c.l.b16 %v656
        %v1959 = vunpack.c.h.b16 %v656
        %v1960 = vunpack.c.l.b16 %v657
        %v1961 = vunpack.c.h.b16 %v657
        %v1962 = vunpack.c.l.b16 %v658
        %v1963 = vunpack.c.h.b16 %v658
        %v1964 = vunpack.c.l.b16 %v659
        %v1965 = vunpack.c.h.b16 %v659
        %v1966 = vunpack.c.l.b16 %v660
        %v1967 = vunpack.c.h.b16 %v660
        %v1968 = vunpack.c.l.b16 %v661
        %v1969 = vunpack.c.h.b16 %v661
        %v1970 = vunpack.c.l.b16 %v662
        %v1971 = vunpack.c.h.b16 %v662
        %v1972 = vunpack.c.l.b16 %v663
        %v1973 = vunpack.c.h.b16 %v663
        %v1974 = vunpack.c.l.b16 %v664
        %v1975 = vunpack.c.h.b16 %v664
        %v1976 = vunpack.c.l.b16 %v665
        %v1977 = vunpack.c.h.b16 %v665
        %v1978 = vunpack.c.l.b16 %v666
        %v1979 = vunpack.c.h.b16 %v666
        %v1980 = vunpack.c.l.b16 %v667
        %v1981 = vunpack.c.h.b16 %v667
        %v1982 = vunpack.c.l.b16 %v668
        %v1983 = vunpack.c.h.b16 %v668
        %v1984 = vunpack.c.l.b16 %v669
        %v1985 = vunpack.c.h.b16 %v669
        %v1986 = vunpack.c.l.b16 %v670
        %v1987 = vunpack.c.h.b16 %v670
        %v1988 = vunpack.c.l.b16 %v671
        %v1989 = vunpack.c.h.b16 %v671
        %v1990 = vunpack.c.l.b16 %v672
        %v1991 = vunpack.c.h.b16 %v672
        %v1992 = vunpack.c.l.b16 %v673
        %v1993 = vunpack.c.h.b16 %v673
        %v1994 = vunpack.c.l.b16 %v674
        %v1995 = vunpack.c.h.b16 %v674
        %v1996 = vunpack.c.l.b16 %v675
        %v1997 = vunpack.c.h.b16 %v675
        %v1998 = vunpack.c.l.b16 %v676
        %v1999 = vunpack.c.h.b16 %v676
        %v2000 = vunpack.c.l.b16 %v677
        %v2001 = vunpack.c.h.b16 %v677
        %v2002 = vunpack.c.l.b16 %v678
        %v2003 = vunpack.c.h.b16 %v678
        %v2004 = vunpack.c.l.b16 %v679
        %v2005 = vunpack.c.h.b16 %v679
        %v2006 = vunpack.c.l.b16 %v680
        %v2007 = vunpack.c.h.b16 %v680
        %v2008 = vunpack.c.l.b16 %v681
        %v2009 = vunpack.c.h.b16 %v681
        %v2010 = vunpack.c.l.b16 %v682
        %v2011 = vunpack.c.h.b16 %v682
        %v2012 = vunpack.c.l.b16 %v683
        %v2013 = vunpack.c.h.b16 %v683
        %v2014 = vunpack.c.l.b16 %v684
        %v2015 = vunpack.c.h.b16 %v684
        %v2016 = vunpack.c.l.b16 %v685
        %v2017 = vunpack.c.h.b16 %v685
        %v2018 = vunpack.c.l.b16 %v686
        %v2019 = vunpack.c.h.b16 %v686
        %v2020 = vunpack.c.l.b16 %v687
        %v2021 = vunpack.c.h.b16 %v687
        %v2022 = vunpack.c.l.b16 %v688
        %v2023 = vunpack.c.h.b16 %v688
        %v2024 = vunpack.c.l.b16 %v689
        %v2025 = vunpack.c.h.b16 %v689
        %v2026 = vunpack.c.l.b16 %v690
        %v2027 = vunpack.c.h.b16 %v690
        %v2028 = vunpack.c.l.b16 %v691
        %v2029 = vunpack.c.h.b16 %v691
        %v2030 = vunpack.c.l.b16 %v692
        %v2031 = vunpack.c.h.b16 %v692
        %v2032 = vunpack.c.l.b16 %v693
        %v2033 = vunpack.c.h.b16 %v693
        %v2034 = vunpack.c.l.b16 %v694
        %v2035 = vunpack.c.h.b16 %v694
        %v2036 = vunpack.c.l.b16 %v695
        %v2037 = vunpack.c.h.b16 %v695
        %v2038 = vunpack.c.l.b16 %v696
        %v2039 = vunpack.c.h.b16 %v696
        %v2040 = vunpack.c.l.b16 %v697
        %v2041 = vunpack.c.h.b16 %v697
        %v2042 = vunpack.c.l.b16 %v698
        %v2043 = vunpack.c.h.b16 %v698
        %v2044 = vunpack.c.l.b16 %v699
        %v2045 = vunpack.c.h.b16 %v699
        %v2046 = vunpack.c.l.b16 %v700
        %v2047 = vunpack.c.h.b16 %v700
        %v2048 = vunpack.c.l.b16 %v701
        %v2049 = vunpack.c.h.b16 %v701
        %v2050 = vunpack.c.l.b16 %v702
        %v2051 = vunpack.c.h.b16 %v702
        %v2052 = vunpack.c.l.b16 %v703
        %v2053 = vunpack.c.h.b16 %v703
        %v2054 = vunpack.c.l.b16 %v704
        %v2055 = vunpack.c.h.b16 %v704
        %v2056 = vunpack.c.l.b16 %v705
        %v2057 = vunpack.c.h.b16 %v705
        %v2058 = vunpack.c.l.b16 %v706
        %v2059 = vunpack.c.h.b16 %v706
        %v2060 = vunpack.c.l.b16 %v707
        %v2061 = vunpack.c.h.b16 %v707
        %v2062 = vunpack.c.l.b16 %v708
        %v2063 = vunpack.c.h.b16 %v708
        %v2064 = vunpack.c.l.b16 %v709
        %v2065 = vunpack.c.h.b16 %v709
        %v2066 = vunpack.c.l.b16 %v710
        %v2067 = vunpack.c.h.b16 %v710
        %v2068 = vunpack.c.l.b16 %v711
        %v2069 = vunpack.c.h.b16 %v711
        %v2070 = vunpack.c.l.b16 %v712
        %v2071 = vunpack.c.h.b16 %v712
        %v2072 = vunpack.c.l.b16 %v713
        %v2073 = vunpack.c.h.b16 %v713
        %v2074 = vunpack.c.l.b16 %v714
        %v2075 = vunpack.c.h.b16 %v714
        %v2076 = vunpack.c.l.b16 %v715
        %v2077 = vunpack.c.h.b16 %v715
        %v2078 = vunpack.c.l.b16 %v716
        %v2079 = vunpack.c.h.b16 %v716
        %v2080 = vunpack.c.l.b16 %v717
        %v2081 = vunpack.c.h.b16 %v717
        %v2082 = vunpack.c.l.b16 %v718
        %v2083 = vunpack.c.h.b16 %v718
        %v2084 = vunpack.c.l.b16 %v719
        %v2085 = vunpack.c.h.b16 %v719
        %v2086 = vunpack.c.l.b16 %v720
        %v2087 = vunpack.c.h.b16 %v720
        %v2088 = vunpack.c.l.b16 %v721
        %v2089 = vunpack.c.h.b16 %v721
        %v2090 = vunpack.c.l.b16 %v722
        %v2091 = vunpack.c.h.b16 %v722
        %v2092 = vunpack.c.l.b16 %v723
        %v2093 = vunpack.c.h.b16 %v723
        %v2094 = vunpack.c.l.b16 %v724
        %v2095 = vunpack.c.h.b16 %v724
        %v2096 = vunpack.c.l.b16 %v725
        %v2097 = vunpack.c.h.b16 %v725
        %v2098 = vunpack.c.l.b16 %v726
        %v2099 = vunpack.c.h.b16 %v726
        %v2100 = vunpack.c.l.b16 %v727
        %v2101 = vunpack.c.h.b16 %v727
        %v2102 = vunpack.c.l.b16 %v728
        %v2103 = vunpack.c.h.b16 %v728
        %v2104 = vunpack.c.l.b16 %v729
        %v2105 = vunpack.c.h.b16 %v729
        %v2106 = vunpack.c.l.b16 %v730
        %v2107 = vunpack.c.h.b16 %v730
        %v2108 = vunpack.c.l.b16 %v731
        %v2109 = vunpack.c.h.b16 %v731
        %v2110 = vunpack.c.l.b16 %v732
        %v2111 = vunpack.c.h.b16 %v732
        %v2112 = vunpack.c.l.b16 %v733
        %v2113 = vunpack.c.h.b16 %v733
        %v2114 = vunpack.c.l.b16 %v734
        %v2115 = vunpack.c.h.b16 %v734
        %v2116 = vunpack.c.l.b16 %v735
        %v2117 = vunpack.c.h.b16 %v735
        %v2118 = vunpack.c.l.b16 %v736
        %v2119 = vunpack.c.h.b16 %v736
        %v2120 = vunpack.c.l.b16 %v737
        %v2121 = vunpack.c.h.b16 %v737
        %v2122 = vunpack.c.l.b16 %v738
        %v2123 = vunpack.c.h.b16 %v738
        %v2124 = vunpack.c.l.b16 %v739
        %v2125 = vunpack.c.h.b16 %v739
        %v2126 = vunpack.c.l.b16 %v740
        %v2127 = vunpack.c.h.b16 %v740
        %v2128 = vunpack.c.l.b16 %v741
        %v2129 = vunpack.c.h.b16 %v741
        %v2130 = vunpack.c.l.b16 %v742
        %v2131 = vunpack.c.h.b16 %v742
        %v2132 = vunpack.c.l.b16 %v743
        %v2133 = vunpack.c.h.b16 %v743
        %v2134 = vunpack.c.l.b16 %v744
        %v2135 = vunpack.c.h.b16 %v744
        %v2136 = vunpack.c.l.b16 %v745
        %v2137 = vunpack.c.h.b16 %v745
        %v2138 = vunpack.c.l.b16 %v746
        %v2139 = vunpack.c.h.b16 %v746
        %v2140 = vunpack.c.l.b16 %v747
        %v2141 = vunpack.c.h.b16 %v747
        %v2142 = vunpack.c.l.b16 %v748
        %v2143 = vunpack.c.h.b16 %v748
        %v2144 = vunpack.c.l.b16 %v749
        %v2145 = vunpack.c.h.b16 %v749
        %v2146 = vunpack.c.l.b16 %v750
        %v2147 = vunpack.c.h.b16 %v750
        %v2148 = vunpack.c.l.b16 %v751
        %v2149 = vunpack.c.h.b16 %v751
        %v2150 = vunpack.c.l.b16 %v752
        %v2151 = vunpack.c.h.b16 %v752
        %v2152 = vunpack.c.l.b16 %v753
        %v2153 = vunpack.c.h.b16 %v753
        %v2154 = vunpack.c.l.b16 %v754
        %v2155 = vunpack.c.h.b16 %v754
        %v2156 = vunpack.c.l.b16 %v755
        %v2157 = vunpack.c.h.b16 %v755
        %v2158 = vunpack.c.l.b16 %v756
        %v2159 = vunpack.c.h.b16 %v756
        %v2160 = vunpack.c.l.b16 %v757
        %v2161 = vunpack.c.h.b16 %v757
        %v2162 = vunpack.c.l.b16 %v758
        %v2163 = vunpack.c.h.b16 %v758
        %v2164 = vunpack.c.l.b16 %v759
        %v2165 = vunpack.c.h.b16 %v759
        %v2166 = vunpack.c.l.b16 %v760
        %v2167 = vunpack.c.h.b16 %v760
        %v2168 = vunpack.c.l.b16 %v761
        %v2169 = vunpack.c.h.b16 %v761
        %v2170 = vunpack.c.l.b16 %v762
        %v2171 = vunpack.c.h.b16 %v762
        %v2172 = vunpack.c.l.b16 %v763
        %v2173 = vunpack.c.h.b16 %v763
        %v2174 = vunpack.c.l.b16 %v764
        %v2175 = vunpack.c.h.b16 %v764
        %v2176 = vunpack.c.l.b16 %v765
        %v2177 = vunpack.c.h.b16 %v765
        %v2178 = vunpack.c.l.b16 %v766
        %v2179 = vunpack.c.h.b16 %v766
        %v2180 = vunpack.c.l.b16 %v767
        %v2181 = vunpack.c.h.b16 %v767
        %v2182 = vunpack.c.l.b16 %v768
        %v2183 = vunpack.c.h.b16 %v768
        %v2184 = vunpack.c.l.b16 %v769
        %v2185 = vunpack.c.h.b16 %v769
        %v2186 = vunpack.c.l.b16 %v770
        %v2187 = vunpack.c.h.b16 %v770
        %v2188 = vunpack.c.l.b16 %v771
        %v2189 = vunpack.c.h.b16 %v771
        %v2190 = vunpack.c.l.b16 %v772
        %v2191 = vunpack.c.h.b16 %v772
        %v2192 = vunpack.c.l.b16 %v773
        %v2193 = vunpack.c.h.b16 %v773
        %v2194 = vunpack.c.l.b16 %v774
        %v2195 = vunpack.c.h.b16 %v774
        %v2196 = vunpack.c.l.b16 %v775
        %v2197 = vunpack.c.h.b16 %v775
        %v2198 = vunpack.c.l.b16 %v776
        %v2199 = vunpack.c.h.b16 %v776
        %v2200 = vunpack.c.l.b16 %v777
        %v2201 = vunpack.c.h.b16 %v777
        %v2202 = vunpack.c.l.b16 %v778
        %v2203 = vunpack.c.h.b16 %v778
        %v2204 = vunpack.c.l.b16 %v779
        %v2205 = vunpack.c.h.b16 %v779
        %v2206 = vunpack.c.l.b16 %v780
        %v2207 = vunpack.c.h.b16 %v780
        %v2208 = vunpack.c.l.b16 %v781
        %v2209 = vunpack.c.h.b16 %v781
        %v2210 = vunpack.c.l.b16 %v782
        %v2211 = vunpack.c.h.b16 %v782
        %v2212 = vunpack.c.l.b16 %v783
        %v2213 = vunpack.c.h.b16 %v783
        %v2214 = vunpack.c.l.b16 %v784
        %v2215 = vunpack.c.h.b16 %v784
        %v2216 = vunpack.c.l.b16 %v785
        %v2217 = vunpack.c.h.b16 %v785
        %v2218 = vunpack.c.l.b16 %v786
        %v2219 = vunpack.c.h.b16 %v786
        %v2220 = vunpack.c.l.b16 %v787
        %v2221 = vunpack.c.h.b16 %v787
        %v2222 = vunpack.c.l.b16 %v788
        %v2223 = vunpack.c.h.b16 %v788
        %v2224 = vunpack.c.l.b16 %v789
        %v2225 = vunpack.c.h.b16 %v789
        %v2226 = vunpack.c.l.b16 %v790
        %v2227 = vunpack.c.h.b16 %v790
        %v2228 = vunpack.c.l.b16 %v791
        %v2229 = vunpack.c.h.b16 %v791
        %v2230 = vunpack.c.l.b16 %v792
        %v2231 = vunpack.c.h.b16 %v792
        %v2232 = vunpack.c.l.b16 %v793
        %v2233 = vunpack.c.h.b16 %v793
        %v2234 = vunpack.c.l.b16 %v794
        %v2235 = vunpack.c.h.b16 %v794
        %v2236 = vunpack.c.l.b16 %v795
        %v2237 = vunpack.c.h.b16 %v795
        %v2238 = vunpack.c.l.b16 %v796
        %v2239 = vunpack.c.h.b16 %v796
        %v2240 = vunpack.c.l.b16 %v797
        %v2241 = vunpack.c.h.b16 %v797
        %v2242 = vunpack.c.l.b16 %v798
        %v2243 = vunpack.c.h.b16 %v798
        %v2244 = vunpack.c.l.b16 %v799
        %v2245 = vunpack.c.h.b16 %v799
        %v2246 = vunpack.c.l.b16 %v800
        %v2247 = vunpack.c.h.b16 %v800
        %v2248 = vunpack.c.l.b16 %v801
        %v2249 = vunpack.c.h.b16 %v801
        %v2250 = vunpack.c.l.b16 %v802
        %v2251 = vunpack.c.h.b16 %v802
        %v2252 = vunpack.c.l.b16 %v803
        %v2253 = vunpack.c.h.b16 %v803
        %v2254 = vunpack.c.l.b16 %v804
        %v2255 = vunpack.c.h.b16 %v804
        %v2256 = vunpack.c.l.b16 %v805
        %v2257 = vunpack.c.h.b16 %v805
        %v2258 = vunpack.c.l.b16 %v806
        %v2259 = vunpack.c.h.b16 %v806
        %v2260 = vunpack.c.l.b16 %v807
        %v2261 = vunpack.c.h.b16 %v807
        %v2262 = vunpack.c.l.b16 %v808
        %v2263 = vunpack.c.h.b16 %v808
        %v2264 = vunpack.c.l.b16 %v809
        %v2265 = vunpack.c.h.b16 %v809
        %v2266 = vunpack.c.l.b16 %v810
        %v2267 = vunpack.c.h.b16 %v810
        %v2268 = vunpack.c.l.b16 %v811
        %v2269 = vunpack.c.h.b16 %v811
        %v2270 = vunpack.c.l.b16 %v812
        %v2271 = vunpack.c.h.b16 %v812
        %v2272 = vunpack.c.l.b16 %v813
        %v2273 = vunpack.c.h.b16 %v813
        %v2274 = vunpack.c.l.b16 %v814
        %v2275 = vunpack.c.h.b16 %v814
        %v2276 = vunpack.c.l.b16 %v815
        %v2277 = vunpack.c.h.b16 %v815
        %v2278 = vunpack.c.l.b16 %v816
        %v2279 = vunpack.c.h.b16 %v816
        %v2280 = vunpack.c.l.b16 %v817
        %v2281 = vunpack.c.h.b16 %v817
        %v2282 = vunpack.c.l.b16 %v818
        %v2283 = vunpack.c.h.b16 %v818
        %v2284 = vunpack.c.l.b16 %v819
        %v2285 = vunpack.c.h.b16 %v819
        %v2286 = vunpack.c.l.b16 %v820
        %v2287 = vunpack.c.h.b16 %v820
        %v2288 = vunpack.c.l.b16 %v821
        %v2289 = vunpack.c.h.b16 %v821
        %v2290 = vunpack.c.l.b16 %v822
        %v2291 = vunpack.c.h.b16 %v822
        %v2292 = vunpack.c.l.b16 %v823
        %v2293 = vunpack.c.h.b16 %v823
        %v2294 = vunpack.c.l.b16 %v824
        %v2295 = vunpack.c.h.b16 %v824
        %v2296 = vunpack.c.l.b16 %v825
        %v2297 = vunpack.c.h.b16 %v825
        %v2298 = vunpack.c.l.b16 %v826
        %v2299 = vunpack.c.h.b16 %v826
        %v2300 = vunpack.c.l.b16 %v827
        %v2301 = vunpack.c.h.b16 %v827
        %v2302 = vunpack.c.l.b16 %v828
        %v2303 = vunpack.c.h.b16 %v828
        %v2304 = vunpack.c.l.b16 %v829
        %v2305 = vunpack.c.h.b16 %v829
        %v2306 = vunpack.c.l.b16 %v830
        %v2307 = vunpack.c.h.b16 %v830
        %v2308 = vunpack.c.l.b16 %v831
        %v2309 = vunpack.c.h.b16 %v831
        %v2310 = vunpack.c.l.b16 %v832
        %v2311 = vunpack.c.h.b16 %v832
        %v2312 = vunpack.c.l.b16 %v833
        %v2313 = vunpack.c.h.b16 %v833
        %v2314 = vunpack.c.l.b16 %v834
        %v2315 = vunpack.c.h.b16 %v834
        %v2316 = vunpack.c.l.b16 %v835
        %v2317 = vunpack.c.h.b16 %v835
        %v2318 = vunpack.c.l.b16 %v836
        %v2319 = vunpack.c.h.b16 %v836
        %v2320 = vunpack.c.l.b16 %v837
        %v2321 = vunpack.c.h.b16 %v837
        %v2322 = vunpack.c.l.b16 %v838
        %v2323 = vunpack.c.h.b16 %v838
        %v2324 = vunpack.c.l.b16 %v839
        %v2325 = vunpack.c.h.b16 %v839
        %v2326 = vunpack.c.l.b16 %v840
        %v2327 = vunpack.c.h.b16 %v840
        %v2328 = vunpack.c.l.b16 %v841
        %v2329 = vunpack.c.h.b16 %v841
        %v2330 = vunpack.c.l.b16 %v842
        %v2331 = vunpack.c.h.b16 %v842
        %v2332 = vunpack.c.l.b16 %v843
        %v2333 = vunpack.c.h.b16 %v843
        %v2334 = vunpack.c.l.b16 %v844
        %v2335 = vunpack.c.h.b16 %v844
        %v2336 = vunpack.c.l.b16 %v845
        %v2337 = vunpack.c.h.b16 %v845
        %v2338 = vunpack.c.l.b16 %v846
        %v2339 = vunpack.c.h.b16 %v846
        %v2340 = vunpack.c.l.b16 %v847
        %v2341 = vunpack.c.h.b16 %v847
        %v2342 = vunpack.c.l.b16 %v848
        %v2343 = vunpack.c.h.b16 %v848
        %v2344 = vunpack.c.l.b16 %v849
        %v2345 = vunpack.c.h.b16 %v849
        %v2346 = vunpack.c.l.b16 %v850
        %v2347 = vunpack.c.h.b16 %v850
        %v2348 = vunpack.c.l.b16 %v851
        %v2349 = vunpack.c.h.b16 %v851
        %v2350 = vunpack.c.l.b16 %v852
        %v2351 = vunpack.c.h.b16 %v852
        %v2352 = vunpack.c.l.b16 %v853
        %v2353 = vunpack.c.h.b16 %v853
        %v2354 = vunpack.c.l.b16 %v854
        %v2355 = vunpack.c.h.b16 %v854
        %v2356 = vunpack.c.l.b16 %v855
        %v2357 = vunpack.c.h.b16 %v855
        %v2358 = vunpack.c.l.b16 %v856
        %v2359 = vunpack.c.h.b16 %v856
        %v2360 = vunpack.c.l.b16 %v857
        %v2361 = vunpack.c.h.b16 %v857
        %v2362 = vunpack.c.l.b16 %v858
        %v2363 = vunpack.c.h.b16 %v858
        %v2364 = vunpack.c.l.b16 %v859
        %v2365 = vunpack.c.h.b16 %v859
        %v2366 = vunpack.c.l.b16 %v860
        %v2367 = vunpack.c.h.b16 %v860
        %v2368 = vunpack.c.l.b16 %v861
        %v2369 = vunpack.c.h.b16 %v861
        %v2370 = vunpack.c.l.b16 %v862
        %v2371 = vunpack.c.h.b16 %v862
        %v2372 = vunpack.c.l.b16 %v863
        %v2373 = vunpack.c.h.b16 %v863
        %v2374 = vunpack.c.l.b16 %v864
        %v2375 = vunpack.c.h.b16 %v864
        %v2376 = vunpack.c.l.b16 %v865
        %v2377 = vunpack.c.h.b16 %v865
        %v2378 = vunpack.c.l.b16 %v866
        %v2379 = vunpack.c.h.b16 %v866
        %v2380 = vunpack.c.l.b16 %v867
        %v2381 = vunpack.c.h.b16 %v867
        %v2382 = vunpack.c.l.b16 %v868
        %v2383 = vunpack.c.h.b16 %v868
        %v2384 = vunpack.c.l.b16 %v869
        %v2385 = vunpack.c.h.b16 %v869
        %v2386 = vunpack.c.l.b16 %v870
        %v2387 = vunpack.c.h.b16 %v870
        %v2388 = vunpack.c.l.b16 %v871
        %v2389 = vunpack.c.h.b16 %v871
        %v2390 = vunpack.c.l.b16 %v872
        %v2391 = vunpack.c.h.b16 %v872
        %v2392 = vunpack.c.l.b16 %v873
        %v2393 = vunpack.c.h.b16 %v873
        %v2394 = vunpack.c.l.b16 %v874
        %v2395 = vunpack.c.h.b16 %v874
        %v2396 = vunpack.c.l.b16 %v875
        %v2397 = vunpack.c.h.b16 %v875
        %v2398 = vunpack.c.l.b16 %v876
        %v2399 = vunpack.c.h.b16 %v876
        %v2400 = vunpack.c.l.b16 %v877
        %v2401 = vunpack.c.h.b16 %v877
        %v2402 = vunpack.c.l.b16 %v878
        %v2403 = vunpack.c.h.b16 %v878
        %v2404 = vunpack.c.l.b16 %v879
        %v2405 = vunpack.c.h.b16 %v879
        %v2406 = vunpack.c.l.b16 %v880
        %v2407 = vunpack.c.h.b16 %v880
        %v2408 = vunpack.c.l.b16 %v881
        %v2409 = vunpack.c.h.b16 %v881
        %v2410 = vunpack.c.l.b16 %v882
        %v2411 = vunpack.c.h.b16 %v882
        %v2412 = vunpack.c.l.b16 %v883
        %v2413 = vunpack.c.h.b16 %v883
        %v2414 = vunpack.c.l.b16 %v884
        %v2415 = vunpack.c.h.b16 %v884
        %v2416 = vunpack.c.l.b16 %v885
        %v2417 = vunpack.c.h.b16 %v885
        %v2418 = vunpack.c.l.b16 %v886
        %v2419 = vunpack.c.h.b16 %v886
        %v2420 = vunpack.c.l.b16 %v887
        %v2421 = vunpack.c.h.b16 %v887
        %v2422 = vunpack.c.l.b16 %v888
        %v2423 = vunpack.c.h.b16 %v888
        %v2424 = vunpack.c.l.b16 %v889
        %v2425 = vunpack.c.h.b16 %v889
        %v2426 = vpack.c.b16 %v1406, %v1402
        %v2427 = vpack.c.b16 %v1407, %v1403
        %v2428 = vpack.c.b16 %v1408, %v1404
        %v2429 = vpack.c.b16 %v1409, %v1405
        %v2430 = vpack.c.b16 %v1414, %v1410
        %v2431 = vpack.c.b16 %v1415, %v1411
        %v2432 = vpack.c.b16 %v1416, %v1412
        %v2433 = vpack.c.b16 %v1417, %v1413
        %v2434 = vpack.c.b16 %v1422, %v1418
        %v2435 = vpack.c.b16 %v1423, %v1419
        %v2436 = vpack.c.b16 %v1424, %v1420
        %v2437 = vpack.c.b16 %v1425, %v1421
        %v2438 = vpack.c.b16 %v1430, %v1426
        %v2439 = vpack.c.b16 %v1431, %v1427
        %v2440 = vpack.c.b16 %v1432, %v1428
        %v2441 = vpack.c.b16 %v1433, %v1429
        %v2442 = vpack.c.b16 %v1438, %v1434
        %v2443 = vpack.c.b16 %v1439, %v1435
        %v2444 = vpack.c.b16 %v1440, %v1436
        %v2445 = vpack.c.b16 %v1441, %v1437
        %v2446 = vpack.c.b16 %v1446, %v1442
        %v2447 = vpack.c.b16 %v1447, %v1443
        %v2448 = vpack.c.b16 %v1448, %v1444
        %v2449 = vpack.c.b16 %v1449, %v1445
        %v2450 = vpack.c.b16 %v1454, %v1450
        %v2451 = vpack.c.b16 %v1455, %v1451
        %v2452 = vpack.c.b16 %v1456, %v1452
        %v2453 = vpack.c.b16 %v1457, %v1453
        %v2454 = vpack.c.b16 %v1462, %v1458
        %v2455 = vpack.c.b16 %v1463, %v1459
        %v2456 = vpack.c.b16 %v1464, %v1460
        %v2457 = vpack.c.b16 %v1465, %v1461
        %v2458 = vpack.c.b16 %v1470, %v1466
        %v2459 = vpack.c.b16 %v1471, %v1467
        %v2460 = vpack.c.b16 %v1472, %v1468
        %v2461 = vpack.c.b16 %v1473, %v1469
        %v2462 = vpack.c.b16 %v1478, %v1474
        %v2463 = vpack.c.b16 %v1479, %v1475
        %v2464 = vpack.c.b16 %v1480, %v1476
        %v2465 = vpack.c.b16 %v1481, %v1477
        %v2466 = vpack.c.b16 %v1486, %v1482
        %v2467 = vpack.c.b16 %v1487, %v1483
        %v2468 = vpack.c.b16 %v1488, %v1484
        %v2469 = vpack.c.b16 %v1489, %v1485
        %v2470 = vpack.c.b16 %v1494, %v1490
        %v2471 = vpack.c.b16 %v1495, %v1491
        %v2472 = vpack.c.b16 %v1496, %v1492
        %v2473 = vpack.c.b16 %v1497, %v1493
        %v2474 = vpack.c.b16 %v1502, %v1498
        %v2475 = vpack.c.b16 %v1503, %v1499
        %v2476 = vpack.c.b16 %v1504, %v1500
        %v2477 = vpack.c.b16 %v1505, %v1501
        %v2478 = vpack.c.b16 %v1510, %v1506
        %v2479 = vpack.c.b16 %v1511, %v1507
        %v2480 = vpack.c.b16 %v1512, %v1508
        %v2481 = vpack.c.b16 %v1513, %v1509
        %v2482 = vpack.c.b16 %v1518, %v1514
        %v2483 = vpack.c.b16 %v1519, %v1515
        %v2484 = vpack.c.b16 %v1520, %v1516
        %v2485 = vpack.c.b16 %v1521, %v1517
        %v2486 = vpack.c.b16 %v1526, %v1522
        %v2487 = vpack.c.b16 %v1527, %v1523
        %v2488 = vpack.c.b16 %v1528, %v1524
        %v2489 = vpack.c.b16 %v1529, %v1525
        %v2490 = vpack.c.b16 %v1534, %v1530
        %v2491 = vpack.c.b16 %v1535, %v1531
        %v2492 = vpack.c.b16 %v1536, %v1532
        %v2493 = vpack.c.b16 %v1537, %v1533
        %v2494 = vpack.c.b16 %v1542, %v1538
        %v2495 = vpack.c.b16 %v1543, %v1539
        %v2496 = vpack.c.b16 %v1544, %v1540
        %v2497 = vpack.c.b16 %v1545, %v1541
        %v2498 = vpack.c.b16 %v1550, %v1546
        %v2499 = vpack.c.b16 %v1551, %v1547
        %v2500 = vpack.c.b16 %v1552, %v1548
        %v2501 = vpack.c.b16 %v1553, %v1549
        %v2502 = vpack.c.b16 %v1558, %v1554
        %v2503 = vpack.c.b16 %v1559, %v1555
        %v2504 = vpack.c.b16 %v1560, %v1556
        %v2505 = vpack.c.b16 %v1561, %v1557
        %v2506 = vpack.c.b16 %v1566, %v1562
        %v2507 = vpack.c.b16 %v1567, %v1563
        %v2508 = vpack.c.b16 %v1568, %v1564
        %v2509 = vpack.c.b16 %v1569, %v1565
        %v2510 = vpack.c.b16 %v1574, %v1570
        %v2511 = vpack.c.b16 %v1575, %v1571
        %v2512 = vpack.c.b16 %v1576, %v1572
        %v2513 = vpack.c.b16 %v1577, %v1573
        %v2514 = vpack.c.b16 %v1582, %v1578
        %v2515 = vpack.c.b16 %v1583, %v1579
        %v2516 = vpack.c.b16 %v1584, %v1580
        %v2517 = vpack.c.b16 %v1585, %v1581
        %v2518 = vpack.c.b16 %v1590, %v1586
        %v2519 = vpack.c.b16 %v1591, %v1587
        %v2520 = vpack.c.b16 %v1592, %v1588
        %v2521 = vpack.c.b16 %v1593, %v1589
        %v2522 = vpack.c.b16 %v1598, %v1594
        %v2523 = vpack.c.b16 %v1599, %v1595
        %v2524 = vpack.c.b16 %v1600, %v1596
        %v2525 = vpack.c.b16 %v1601, %v1597
        %v2526 = vpack.c.b16 %v1606, %v1602
        %v2527 = vpack.c.b16 %v1607, %v1603
        %v2528 = vpack.c.b16 %v1608, %v1604
        %v2529 = vpack.c.b16 %v1609, %v1605
        %v2530 = vpack.c.b16 %v1614, %v1610
        %v2531 = vpack.c.b16 %v1615, %v1611
        %v2532 = vpack.c.b16 %v1616, %v1612
        %v2533 = vpack.c.b16 %v1617, %v1613
        %v2534 = vpack.c.b16 %v1622, %v1618
        %v2535 = vpack.c.b16 %v1623, %v1619
        %v2536 = vpack.c.b16 %v1624, %v1620
        %v2537 = vpack.c.b16 %v1625, %v1621
        %v2538 = vpack.c.b16 %v1630, %v1626
        %v2539 = vpack.c.b16 %v1631, %v1627
        %v2540 = vpack.c.b16 %v1632, %v1628
        %v2541 = vpack.c.b16 %v1633, %v1629
        %v2542 = vpack.c.b16 %v1638, %v1634
        %v2543 = vpack.c.b16 %v1639, %v1635
        %v2544 = vpack.c.b16 %v1640, %v1636
        %v2545 = vpack.c.b16 %v1641, %v1637
        %v2546 = vpack.c.b16 %v1646, %v1642
        %v2547 = vpack.c.b16 %v1647, %v1643
        %v2548 = vpack.c.b16 %v1648, %v1644
        %v2549 = vpack.c.b16 %v1649, %v1645
        %v2550 = vpack.c.b16 %v1654, %v1650
        %v2551 = vpack.c.b16 %v1655, %v1651
        %v2552 = vpack.c.b16 %v1656, %v1652
        %v2553 = vpack.c.b16 %v1657, %v1653
        %v2554 = vpack.c.b16 %v1662, %v1658
        %v2555 = vpack.c.b16 %v1663, %v1659
        %v2556 = vpack.c.b16 %v1664, %v1660
        %v2557 = vpack.c.b16 %v1665, %v1661
        %v2558 = vpack.c.b16 %v1670, %v1666
        %v2559 = vpack.c.b16 %v1671, %v1667
        %v2560 = vpack.c.b16 %v1672, %v1668
        %v2561 = vpack.c.b16 %v1673, %v1669
        %v2562 = vpack.c.b16 %v1678, %v1674
        %v2563 = vpack.c.b16 %v1679, %v1675
        %v2564 = vpack.c.b16 %v1680, %v1676
        %v2565 = vpack.c.b16 %v1681, %v1677
        %v2566 = vpack.c.b16 %v1686, %v1682
        %v2567 = vpack.c.b16 %v1687, %v1683
        %v2568 = vpack.c.b16 %v1688, %v1684
        %v2569 = vpack.c.b16 %v1689, %v1685
        %v2570 = vpack.c.b16 %v1694, %v1690
        %v2571 = vpack.c.b16 %v1695, %v1691
        %v2572 = vpack.c.b16 %v1696, %v1692
        %v2573 = vpack.c.b16 %v1697, %v1693
        %v2574 = vpack.c.b16 %v1702, %v1698
        %v2575 = vpack.c.b16 %v1703, %v1699
        %v2576 = vpack.c.b16 %v1704, %v1700
        %v2577 = vpack.c.b16 %v1705, %v1701
        %v2578 = vpack.c.b16 %v1710, %v1706
        %v2579 = vpack.c.b16 %v1711, %v1707
        %v2580 = vpack.c.b16 %v1712, %v1708
        %v2581 = vpack.c.b16 %v1713, %v1709
        %v2582 = vpack.c.b16 %v1718, %v1714
        %v2583 = vpack.c.b16 %v1719, %v1715
        %v2584 = vpack.c.b16 %v1720, %v1716
        %v2585 = vpack.c.b16 %v1721, %v1717
        %v2586 = vpack.c.b16 %v1726, %v1722
        %v2587 = vpack.c.b16 %v1727, %v1723
        %v2588 = vpack.c.b16 %v1728, %v1724
        %v2589 = vpack.c.b16 %v1729, %v1725
        %v2590 = vpack.c.b16 %v1734, %v1730
        %v2591 = vpack.c.b16 %v1735, %v1731
        %v2592 = vpack.c.b16 %v1736, %v1732
        %v2593 = vpack.c.b16 %v1737, %v1733
        %v2594 = vpack.c.b16 %v1742, %v1738
        %v2595 = vpack.c.b16 %v1743, %v1739
        %v2596 = vpack.c.b16 %v1744, %v1740
        %v2597 = vpack.c.b16 %v1745, %v1741
        %v2598 = vpack.c.b16 %v1750, %v1746
        %v2599 = vpack.c.b16 %v1751, %v1747
        %v2600 = vpack.c.b16 %v1752, %v1748
        %v2601 = vpack.c.b16 %v1753, %v1749
        %v2602 = vpack.c.b16 %v1758, %v1754
        %v2603 = vpack.c.b16 %v1759, %v1755
        %v2604 = vpack.c.b16 %v1760, %v1756
        %v2605 = vpack.c.b16 %v1761, %v1757
        %v2606 = vpack.c.b16 %v1766, %v1762
        %v2607 = vpack.c.b16 %v1767, %v1763
        %v2608 = vpack.c.b16 %v1768, %v1764
        %v2609 = vpack.c.b16 %v1769, %v1765
        %v2610 = vpack.c.b16 %v1774, %v1770
        %v2611 = vpack.c.b16 %v1775, %v1771
        %v2612 = vpack.c.b16 %v1776, %v1772
        %v2613 = vpack.c.b16 %v1777, %v1773
        %v2614 = vpack.c.b16 %v1782, %v1778
        %v2615 = vpack.c.b16 %v1783, %v1779
        %v2616 = vpack.c.b16 %v1784, %v1780
        %v2617 = vpack.c.b16 %v1785, %v1781
        %v2618 = vpack.c.b16 %v1790, %v1786
        %v2619 = vpack.c.b16 %v1791, %v1787
        %v2620 = vpack.c.b16 %v1792, %v1788
        %v2621 = vpack.c.b16 %v1793, %v1789
        %v2622 = vpack.c.b16 %v1798, %v1794
        %v2623 = vpack.c.b16 %v1799, %v1795
        %v2624 = vpack.c.b16 %v1800, %v1796
        %v2625 = vpack.c.b16 %v1801, %v1797
        %v2626 = vpack.c.b16 %v1806, %v1802
        %v2627 = vpack.c.b16 %v1807, %v1803
        %v2628 = vpack.c.b16 %v1808, %v1804
        %v2629 = vpack.c.b16 %v1809, %v1805
        %v2630 = vpack.c.b16 %v1814, %v1810
        %v2631 = vpack.c.b16 %v1815, %v1811
        %v2632 = vpack.c.b16 %v1816, %v1812
        %v2633 = vpack.c.b16 %v1817, %v1813
        %v2634 = vpack.c.b16 %v1822, %v1818
        %v2635 = vpack.c.b16 %v1823, %v1819
        %v2636 = vpack.c.b16 %v1824, %v1820
        %v2637 = vpack.c.b16 %v1825, %v1821
        %v2638 = vpack.c.b16 %v1830, %v1826
        %v2639 = vpack.c.b16 %v1831, %v1827
        %v2640 = vpack.c.b16 %v1832, %v1828
        %v2641 = vpack.c.b16 %v1833, %v1829
        %v2642 = vpack.c.b16 %v1838, %v1834
        %v2643 = vpack.c.b16 %v1839, %v1835
        %v2644 = vpack.c.b16 %v1840, %v1836
        %v2645 = vpack.c.b16 %v1841, %v1837
        %v2646 = vpack.c.b16 %v1846, %v1842
        %v2647 = vpack.c.b16 %v1847, %v1843
        %v2648 = vpack.c.b16 %v1848, %v1844
        %v2649 = vpack.c.b16 %v1849, %v1845
        %v2650 = vpack.c.b16 %v1854, %v1850
        %v2651 = vpack.c.b16 %v1855, %v1851
        %v2652 = vpack.c.b16 %v1856, %v1852
        %v2653 = vpack.c.b16 %v1857, %v1853
        %v2654 = vpack.c.b16 %v1862, %v1858
        %v2655 = vpack.c.b16 %v1863, %v1859
        %v2656 = vpack.c.b16 %v1864, %v1860
        %v2657 = vpack.c.b16 %v1865, %v1861
        %v2658 = vpack.c.b16 %v1870, %v1866
        %v2659 = vpack.c.b16 %v1871, %v1867
        %v2660 = vpack.c.b16 %v1872, %v1868
        %v2661 = vpack.c.b16 %v1873, %v1869
        %v2662 = vpack.c.b16 %v1878, %v1874
        %v2663 = vpack.c.b16 %v1879, %v1875
        %v2664 = vpack.c.b16 %v1880, %v1876
        %v2665 = vpack.c.b16 %v1881, %v1877
        %v2666 = vpack.c.b16 %v1886, %v1882
        %v2667 = vpack.c.b16 %v1887, %v1883
        %v2668 = vpack.c.b16 %v1888, %v1884
        %v2669 = vpack.c.b16 %v1889, %v1885
        %v2670 = vpack.c.b16 %v1894, %v1890
        %v2671 = vpack.c.b16 %v1895, %v1891
        %v2672 = vpack.c.b16 %v1896, %v1892
        %v2673 = vpack.c.b16 %v1897, %v1893
        %v2674 = vpack.c.b16 %v1902, %v1898
        %v2675 = vpack.c.b16 %v1903, %v1899
        %v2676 = vpack.c.b16 %v1904, %v1900
        %v2677 = vpack.c.b16 %v1905, %v1901
        %v2678 = vpack.c.b16 %v1910, %v1906
        %v2679 = vpack.c.b16 %v1911, %v1907
        %v2680 = vpack.c.b16 %v1912, %v1908
        %v2681 = vpack.c.b16 %v1913, %v1909
        %v2682 = vpack.c.b16 %v1918, %v1914
        %v2683 = vpack.c.b16 %v1919, %v1915
        %v2684 = vpack.c.b16 %v1920, %v1916
        %v2685 = vpack.c.b16 %v1921, %v1917
        %v2686 = vpack.c.b16 %v1926, %v1922
        %v2687 = vpack.c.b16 %v1927, %v1923
        %v2688 = vpack.c.b16 %v1928, %v1924
        %v2689 = vpack.c.b16 %v1929, %v1925
        %v2690 = vpack.c.b16 %v1934, %v1930
        %v2691 = vpack.c.b16 %v1935, %v1931
        %v2692 = vpack.c.b16 %v1936, %v1932
        %v2693 = vpack.c.b16 %v1937, %v1933
        %v2694 = vpack.c.b16 %v1942, %v1938
        %v2695 = vpack.c.b16 %v1943, %v1939
        %v2696 = vpack.c.b16 %v1944, %v1940
        %v2697 = vpack.c.b16 %v1945, %v1941
        %v2698 = vpack.c.b16 %v1950, %v1946
        %v2699 = vpack.c.b16 %v1951, %v1947
        %v2700 = vpack.c.b16 %v1952, %v1948
        %v2701 = vpack.c.b16 %v1953, %v1949
        %v2702 = vpack.c.b16 %v1958, %v1954
        %v2703 = vpack.c.b16 %v1959, %v1955
        %v2704 = vpack.c.b16 %v1960, %v1956
        %v2705 = vpack.c.b16 %v1961, %v1957
        %v2706 = vpack.c.b16 %v1966, %v1962
        %v2707 = vpack.c.b16 %v1967, %v1963
        %v2708 = vpack.c.b16 %v1968, %v1964
        %v2709 = vpack.c.b16 %v1969, %v1965
        %v2710 = vpack.c.b16 %v1974, %v1970
        %v2711 = vpack.c.b16 %v1975, %v1971
        %v2712 = vpack.c.b16 %v1976, %v1972
        %v2713 = vpack.c.b16 %v1977, %v1973
        %v2714 = vpack.c.b16 %v1982, %v1978
        %v2715 = vpack.c.b16 %v1983, %v1979
        %v2716 = vpack.c.b16 %v1984, %v1980
        %v2717 = vpack.c.b16 %v1985, %v1981
        %v2718 = vpack.c.b16 %v1990, %v1986
        %v2719 = vpack.c.b16 %v1991, %v1987
        %v2720 = vpack.c.b16 %v1992, %v1988
        %v2721 = vpack.c.b16 %v1993, %v1989
        %v2722 = vpack.c.b16 %v1998, %v1994
        %v2723 = vpack.c.b16 %v1999, %v1995
        %v2724 = vpack.c.b16 %v2000, %v1996
        %v2725 = vpack.c.b16 %v2001, %v1997
        %v2726 = vpack.c.b16 %v2006, %v2002
        %v2727 = vpack.c.b16 %v2007, %v2003
        %v2728 = vpack.c.b16 %v2008, %v2004
        %v2729 = vpack.c.b16 %v2009, %v2005
        %v2730 = vpack.c.b16 %v2014, %v2010
        %v2731 = vpack.c.b16 %v2015, %v2011
        %v2732 = vpack.c.b16 %v2016, %v2012
        %v2733 = vpack.c.b16 %v2017, %v2013
        %v2734 = vpack.c.b16 %v2022, %v2018
        %v2735 = vpack.c.b16 %v2023, %v2019
        %v2736 = vpack.c.b16 %v2024, %v2020
        %v2737 = vpack.c.b16 %v2025, %v2021
        %v2738 = vpack.c.b16 %v2030, %v2026
        %v2739 = vpack.c.b16 %v2031, %v2027
        %v2740 = vpack.c.b16 %v2032, %v2028
        %v2741 = vpack.c.b16 %v2033, %v2029
        %v2742 = vpack.c.b16 %v2038, %v2034
        %v2743 = vpack.c.b16 %v2039, %v2035
        %v2744 = vpack.c.b16 %v2040, %v2036
        %v2745 = vpack.c.b16 %v2041, %v2037
        %v2746 = vpack.c.b16 %v2046, %v2042
        %v2747 = vpack.c.b16 %v2047, %v2043
        %v2748 = vpack.c.b16 %v2048, %v2044
        %v2749 = vpack.c.b16 %v2049, %v2045
        %v2750 = vpack.c.b16 %v2054, %v2050
        %v2751 = vpack.c.b16 %v2055, %v2051
        %v2752 = vpack.c.b16 %v2056, %v2052
        %v2753 = vpack.c.b16 %v2057, %v2053
        %v2754 = vpack.c.b16 %v2062, %v2058
        %v2755 = vpack.c.b16 %v2063, %v2059
        %v2756 = vpack.c.b16 %v2064, %v2060
        %v2757 = vpack.c.b16 %v2065, %v2061
        %v2758 = vpack.c.b16 %v2070, %v2066
        %v2759 = vpack.c.b16 %v2071, %v2067
        %v2760 = vpack.c.b16 %v2072, %v2068
        %v2761 = vpack.c.b16 %v2073, %v2069
        %v2762 = vpack.c.b16 %v2078, %v2074
        %v2763 = vpack.c.b16 %v2079, %v2075
        %v2764 = vpack.c.b16 %v2080, %v2076
        %v2765 = vpack.c.b16 %v2081, %v2077
        %v2766 = vpack.c.b16 %v2086, %v2082
        %v2767 = vpack.c.b16 %v2087, %v2083
        %v2768 = vpack.c.b16 %v2088, %v2084
        %v2769 = vpack.c.b16 %v2089, %v2085
        %v2770 = vpack.c.b16 %v2094, %v2090
        %v2771 = vpack.c.b16 %v2095, %v2091
        %v2772 = vpack.c.b16 %v2096, %v2092
        %v2773 = vpack.c.b16 %v2097, %v2093
        %v2774 = vpack.c.b16 %v2102, %v2098
        %v2775 = vpack.c.b16 %v2103, %v2099
        %v2776 = vpack.c.b16 %v2104, %v2100
        %v2777 = vpack.c.b16 %v2105, %v2101
        %v2778 = vpack.c.b16 %v2110, %v2106
        %v2779 = vpack.c.b16 %v2111, %v2107
        %v2780 = vpack.c.b16 %v2112, %v2108
        %v2781 = vpack.c.b16 %v2113, %v2109
        %v2782 = vpack.c.b16 %v2118, %v2114
        %v2783 = vpack.c.b16 %v2119, %v2115
        %v2784 = vpack.c.b16 %v2120, %v2116
        %v2785 = vpack.c.b16 %v2121, %v2117
        %v2786 = vpack.c.b16 %v2126, %v2122
        %v2787 = vpack.c.b16 %v2127, %v2123
        %v2788 = vpack.c.b16 %v2128, %v2124
        %v2789 = vpack.c.b16 %v2129, %v2125
        %v2790 = vpack.c.b16 %v2134, %v2130
        %v2791 = vpack.c.b16 %v2135, %v2131
        %v2792 = vpack.c.b16 %v2136, %v2132
        %v2793 = vpack.c.b16 %v2137, %v2133
        %v2794 = vpack.c.b16 %v2142, %v2138
        %v2795 = vpack.c.b16 %v2143, %v2139
        %v2796 = vpack.c.b16 %v2144, %v2140
        %v2797 = vpack.c.b16 %v2145, %v2141
        %v2798 = vpack.c.b16 %v2150, %v2146
        %v2799 = vpack.c.b16 %v2151, %v2147
        %v2800 = vpack.c.b16 %v2152, %v2148
        %v2801 = vpack.c.b16 %v2153, %v2149
        %v2802 = vpack.c.b16 %v2158, %v2154
        %v2803 = vpack.c.b16 %v2159, %v2155
        %v2804 = vpack.c.b16 %v2160, %v2156
        %v2805 = vpack.c.b16 %v2161, %v2157
        %v2806 = vpack.c.b16 %v2166, %v2162
        %v2807 = vpack.c.b16 %v2167, %v2163
        %v2808 = vpack.c.b16 %v2168, %v2164
        %v2809 = vpack.c.b16 %v2169, %v2165
        %v2810 = vpack.c.b16 %v2174, %v2170
        %v2811 = vpack.c.b16 %v2175, %v2171
        %v2812 = vpack.c.b16 %v2176, %v2172
        %v2813 = vpack.c.b16 %v2177, %v2173
        %v2814 = vpack.c.b16 %v2182, %v2178
        %v2815 = vpack.c.b16 %v2183, %v2179
        %v2816 = vpack.c.b16 %v2184, %v2180
        %v2817 = vpack.c.b16 %v2185, %v2181
        %v2818 = vpack.c.b16 %v2190, %v2186
        %v2819 = vpack.c.b16 %v2191, %v2187
        %v2820 = vpack.c.b16 %v2192, %v2188
        %v2821 = vpack.c.b16 %v2193, %v2189
        %v2822 = vpack.c.b16 %v2198, %v2194
        %v2823 = vpack.c.b16 %v2199, %v2195
        %v2824 = vpack.c.b16 %v2200, %v2196
        %v2825 = vpack.c.b16 %v2201, %v2197
        %v2826 = vpack.c.b16 %v2206, %v2202
        %v2827 = vpack.c.b16 %v2207, %v2203
        %v2828 = vpack.c.b16 %v2208, %v2204
        %v2829 = vpack.c.b16 %v2209, %v2205
        %v2830 = vpack.c.b16 %v2214, %v2210
        %v2831 = vpack.c.b16 %v2215, %v2211
        %v2832 = vpack.c.b16 %v2216, %v2212
        %v2833 = vpack.c.b16 %v2217, %v2213
        %v2834 = vpack.c.b16 %v2222, %v2218
        %v2835 = vpack.c.b16 %v2223, %v2219
        %v2836 = vpack.c.b16 %v2224, %v2220
        %v2837 = vpack.c.b16 %v2225, %v2221
        %v2838 = vpack.c.b16 %v2230, %v2226
        %v2839 = vpack.c.b16 %v2231, %v2227
        %v2840 = vpack.c.b16 %v2232, %v2228
        %v2841 = vpack.c.b16 %v2233, %v2229
        %v2842 = vpack.c.b16 %v2238, %v2234
        %v2843 = vpack.c.b16 %v2239, %v2235
        %v2844 = vpack.c.b16 %v2240, %v2236
        %v2845 = vpack.c.b16 %v2241, %v2237
        %v2846 = vpack.c.b16 %v2246, %v2242
        %v2847 = vpack.c.b16 %v2247, %v2243
        %v2848 = vpack.c.b16 %v2248, %v2244
        %v2849 = vpack.c.b16 %v2249, %v2245
        %v2850 = vpack.c.b16 %v2254, %v2250
        %v2851 = vpack.c.b16 %v2255, %v2251
        %v2852 = vpack.c.b16 %v2256, %v2252
        %v2853 = vpack.c.b16 %v2257, %v2253
        %v2854 = vpack.c.b16 %v2262, %v2258
        %v2855 = vpack.c.b16 %v2263, %v2259
        %v2856 = vpack.c.b16 %v2264, %v2260
        %v2857 = vpack.c.b16 %v2265, %v2261
        %v2858 = vpack.c.b16 %v2270, %v2266
        %v2859 = vpack.c.b16 %v2271, %v2267
        %v2860 = vpack.c.b16 %v2272, %v2268
        %v2861 = vpack.c.b16 %v2273, %v2269
        %v2862 = vpack.c.b16 %v2278, %v2274
        %v2863 = vpack.c.b16 %v2279, %v2275
        %v2864 = vpack.c.b16 %v2280, %v2276
        %v2865 = vpack.c.b16 %v2281, %v2277
        %v2866 = vpack.c.b16 %v2286, %v2282
        %v2867 = vpack.c.b16 %v2287, %v2283
        %v2868 = vpack.c.b16 %v2288, %v2284
        %v2869 = vpack.c.b16 %v2289, %v2285
        %v2870 = vpack.c.b16 %v2294, %v2290
        %v2871 = vpack.c.b16 %v2295, %v2291
        %v2872 = vpack.c.b16 %v2296, %v2292
        %v2873 = vpack.c.b16 %v2297, %v2293
        %v2874 = vpack.c.b16 %v2302, %v2298
        %v2875 = vpack.c.b16 %v2303, %v2299
        %v2876 = vpack.c.b16 %v2304, %v2300
        %v2877 = vpack.c.b16 %v2305, %v2301
        %v2878 = vpack.c.b16 %v2310, %v2306
        %v2879 = vpack.c.b16 %v2311, %v2307
        %v2880 = vpack.c.b16 %v2312, %v2308
        %v2881 = vpack.c.b16 %v2313, %v2309
        %v2882 = vpack.c.b16 %v2318, %v2314
        %v2883 = vpack.c.b16 %v2319, %v2315
        %v2884 = vpack.c.b16 %v2320, %v2316
        %v2885 = vpack.c.b16 %v2321, %v2317
        %v2886 = vpack.c.b16 %v2326, %v2322
        %v2887 = vpack.c.b16 %v2327, %v2323
        %v2888 = vpack.c.b16 %v2328, %v2324
        %v2889 = vpack.c.b16 %v2329, %v2325
        %v2890 = vpack.c.b16 %v2334, %v2330
        %v2891 = vpack.c.b16 %v2335, %v2331
        %v2892 = vpack.c.b16 %v2336, %v2332
        %v2893 = vpack.c.b16 %v2337, %v2333
        %v2894 = vpack.c.b16 %v2342, %v2338
        %v2895 = vpack.c.b16 %v2343, %v2339
        %v2896 = vpack.c.b16 %v2344, %v2340
        %v2897 = vpack.c.b16 %v2345, %v2341
        %v2898 = vpack.c.b16 %v2350, %v2346
        %v2899 = vpack.c.b16 %v2351, %v2347
        %v2900 = vpack.c.b16 %v2352, %v2348
        %v2901 = vpack.c.b16 %v2353, %v2349
        %v2902 = vpack.c.b16 %v2358, %v2354
        %v2903 = vpack.c.b16 %v2359, %v2355
        %v2904 = vpack.c.b16 %v2360, %v2356
        %v2905 = vpack.c.b16 %v2361, %v2357
        %v2906 = vpack.c.b16 %v2366, %v2362
        %v2907 = vpack.c.b16 %v2367, %v2363
        %v2908 = vpack.c.b16 %v2368, %v2364
        %v2909 = vpack.c.b16 %v2369, %v2365
        %v2910 = vpack.c.b16 %v2374, %v2370
        %v2911 = vpack.c.b16 %v2375, %v2371
        %v2912 = vpack.c.b16 %v2376, %v2372
        %v2913 = vpack.c.b16 %v2377, %v2373
        %v2914 = vpack.c.b16 %v2382, %v2378
        %v2915 = vpack.c.b16 %v2383, %v2379
        %v2916 = vpack.c.b16 %v2384, %v2380
        %v2917 = vpack.c.b16 %v2385, %v2381
        %v2918 = vpack.c.b16 %v2390, %v2386
        %v2919 = vpack.c.b16 %v2391, %v2387
        %v2920 = vpack.c.b16 %v2392, %v2388
        %v2921 = vpack.c.b16 %v2393, %v2389
        %v2922 = vpack.c.b16 %v2398, %v2394
        %v2923 = vpack.c.b16 %v2399, %v2395
        %v2924 = vpack.c.b16 %v2400, %v2396
        %v2925 = vpack.c.b16 %v2401, %v2397
        %v2926 = vpack.c.b16 %v2406, %v2402
        %v2927 = vpack.c.b16 %v2407, %v2403
        %v2928 = vpack.c.b16 %v2408, %v2404
        %v2929 = vpack.c.b16 %v2409, %v2405
        %v2930 = vpack.c.b16 %v2414, %v2410
        %v2931 = vpack.c.b16 %v2415, %v2411
        %v2932 = vpack.c.b16 %v2416, %v2412
        %v2933 = vpack.c.b16 %v2417, %v2413
        %v2934 = vpack.c.b16 %v2422, %v2418
        %v2935 = vpack.c.b16 %v2423, %v2419
        %v2936 = vpack.c.b16 %v2424, %v2420
        %v2937 = vpack.c.b16 %v2425, %v2421
        %3450 = vmatpush.bf16.msra.mxu0 %v2454
        %3451 = vmatpush.bf16.msra.mxu0 %v2450
        %3452 = vmatpush.bf16.msra.mxu0 %v2446
        %3453 = vmatpush.bf16.msra.mxu0 %v2442
        %3454 = vmatpush.bf16.msra.mxu0 %v2438
        %3455 = vmatpush.bf16.msra.mxu0 %v2434
        %3456 = vmatpush.bf16.msra.mxu0 %v2430
        %3457 = vmatpush.bf16.msra.mxu0 %v2426
        %3458 = vmatmul.bf16.gmra.mxu0 %v314
        %v3459 = vpop.f32.mrf.mxu0
        %v3460 = vadd.f32 0.0, %v3459
        %v3461 = vpop.f32.mrf.mxu0
        %v3462 = vadd.f32 0.0, %v3461
        %3463 = vmatmul.bf16.gmra.mxu0 %v330
        %v3464 = vpop.f32.mrf.mxu0
        %v3465 = vadd.f32 0.0, %v3464
        %v3466 = vpop.f32.mrf.mxu0
        %v3467 = vadd.f32 0.0, %v3466
        %3468 = vmatmul.bf16.gmra.mxu0 %v346
        %v3469 = vpop.f32.mrf.mxu0
        %v3470 = vadd.f32 0.0, %v3469
        %v3471 = vpop.f32.mrf.mxu0
        %v3472 = vadd.f32 0.0, %v3471
        %3473 = vmatmul.bf16.gmra.mxu0 %v362
        %v3474 = vpop.f32.mrf.mxu0
        %v3475 = vadd.f32 0.0, %v3474
        %v3476 = vpop.f32.mrf.mxu0
        %3477 = vdwg.mxu0
        %3478 = vmatpush.bf16.msra.mxu0 %v2486
        %3479 = vmatpush.bf16.msra.mxu0 %v2482
        %3480 = vmatpush.bf16.msra.mxu0 %v2478
        %3481 = vmatpush.bf16.msra.mxu0 %v2474
        %3482 = vmatpush.bf16.msra.mxu0 %v2470
        %3483 = vmatpush.bf16.msra.mxu0 %v2466
        %3484 = vmatpush.bf16.msra.mxu0 %v2462
        %3485 = vmatpush.bf16.msra.mxu0 %v2458
        %3486 = vmatmul.bf16.gmra.mxu0 %v315
        %v3487 = vpop.f32.mrf.mxu0
        %v3488 = vadd.f32 %v3460, %v3487
        %v3489 = vpop.f32.mrf.mxu0
        %v3490 = vadd.f32 %v3462, %v3489
        %3491 = vmatmul.bf16.gmra.mxu0 %v331
        %v3492 = vpop.f32.mrf.mxu0
        %v3493 = vadd.f32 %v3465, %v3492
        %v3494 = vpop.f32.mrf.mxu0
        %v3495 = vadd.f32 %v3467, %v3494
        %3496 = vmatmul.bf16.gmra.mxu0 %v347
        %v3497 = vpop.f32.mrf.mxu0
        %v3498 = vadd.f32 %v3470, %v3497
        %v3499 = vpop.f32.mrf.mxu0
        %v3500 = vadd.f32 %v3472, %v3499
        %3501 = vmatmul.bf16.gmra.mxu0 %v363
        %v3502 = vpop.f32.mrf.mxu0
        %v3503 = vadd.f32 %v3475, %v3502
        %v3504 = vpop.f32.mrf.mxu0
        %3505 = vdwg.mxu0
        %3506 = vmatpush.bf16.msra.mxu0 %v2518
        %3507 = vmatpush.bf16.msra.mxu0 %v2514
        %3508 = vmatpush.bf16.msra.mxu0 %v2510
        %3509 = vmatpush.bf16.msra.mxu0 %v2506
        %3510 = vmatpush.bf16.msra.mxu0 %v2502
        %3511 = vmatpush.bf16.msra.mxu0 %v2498
        %3512 = vmatpush.bf16.msra.mxu0 %v2494
        %3513 = vmatpush.bf16.msra.mxu0 %v2490
        %3514 = vmatmul.bf16.gmra.mxu0 %v316
        %v3515 = vpop.f32.mrf.mxu0
        %v3516 = vadd.f32 %v3488, %v3515
        %v3517 = vpop.f32.mrf.mxu0
        %v3518 = vadd.f32 %v3490, %v3517
        %3519 = vmatmul.bf16.gmra.mxu0 %v332
        %v3520 = vpop.f32.mrf.mxu0
        %v3521 = vadd.f32 %v3493, %v3520
        %v3522 = vpop.f32.mrf.mxu0
        %v3523 = vadd.f32 %v3495, %v3522
        %3524 = vmatmul.bf16.gmra.mxu0 %v348
        %v3525 = vpop.f32.mrf.mxu0
        %v3526 = vadd.f32 %v3498, %v3525
        %v3527 = vpop.f32.mrf.mxu0
        %v3528 = vadd.f32 %v3500, %v3527
        %3529 = vmatmul.bf16.gmra.mxu0 %v364
        %v3530 = vpop.f32.mrf.mxu0
        %v3531 = vadd.f32 %v3503, %v3530
        %v3532 = vpop.f32.mrf.mxu0
        %3533 = vdwg.mxu0
        %3534 = vmatpush.bf16.msra.mxu0 %v2550
        %3535 = vmatpush.bf16.msra.mxu0 %v2546
        %3536 = vmatpush.bf16.msra.mxu0 %v2542
        %3537 = vmatpush.bf16.msra.mxu0 %v2538
        %3538 = vmatpush.bf16.msra.mxu0 %v2534
        %3539 = vmatpush.bf16.msra.mxu0 %v2530
        %3540 = vmatpush.bf16.msra.mxu0 %v2526
        %3541 = vmatpush.bf16.msra.mxu0 %v2522
        %3542 = vmatmul.bf16.gmra.mxu0 %v317
        %v3543 = vpop.f32.mrf.mxu0
        %v3544 = vadd.f32 %v3516, %v3543
        %v3545 = vpop.f32.mrf.mxu0
        %v3546 = vadd.f32 %v3518, %v3545
        %3547 = vmatmul.bf16.gmra.mxu0 %v333
        %v3548 = vpop.f32.mrf.mxu0
        %v3549 = vadd.f32 %v3521, %v3548
        %v3550 = vpop.f32.mrf.mxu0
        %v3551 = vadd.f32 %v3523, %v3550
        %3552 = vmatmul.bf16.gmra.mxu0 %v349
        %v3553 = vpop.f32.mrf.mxu0
        %v3554 = vadd.f32 %v3526, %v3553
        %v3555 = vpop.f32.mrf.mxu0
        %v3556 = vadd.f32 %v3528, %v3555
        %3557 = vmatmul.bf16.gmra.mxu0 %v365
        %v3558 = vpop.f32.mrf.mxu0
        %v3559 = vadd.f32 %v3531, %v3558
        %v3560 = vpop.f32.mrf.mxu0
        %3561 = vdwg.mxu0
        %3562 = vmatpush.bf16.msra.mxu0 %v2582
        %3563 = vmatpush.bf16.msra.mxu0 %v2578
        %3564 = vmatpush.bf16.msra.mxu0 %v2574
        %3565 = vmatpush.bf16.msra.mxu0 %v2570
        %3566 = vmatpush.bf16.msra.mxu0 %v2566
        %3567 = vmatpush.bf16.msra.mxu0 %v2562
        %3568 = vmatpush.bf16.msra.mxu0 %v2558
        %3569 = vmatpush.bf16.msra.mxu0 %v2554
        %3570 = vmatmul.bf16.gmra.mxu0 %v318
        %v3571 = vpop.f32.mrf.mxu0
        %v3572 = vadd.f32 %v3544, %v3571
        %v3573 = vpop.f32.mrf.mxu0
        %v3574 = vadd.f32 %v3546, %v3573
        %3575 = vmatmul.bf16.gmra.mxu0 %v334
        %v3576 = vpop.f32.mrf.mxu0
        %v3577 = vadd.f32 %v3549, %v3576
        %v3578 = vpop.f32.mrf.mxu0
        %v3579 = vadd.f32 %v3551, %v3578
        %3580 = vmatmul.bf16.gmra.mxu0 %v350
        %v3581 = vpop.f32.mrf.mxu0
        %v3582 = vadd.f32 %v3554, %v3581
        %v3583 = vpop.f32.mrf.mxu0
        %v3584 = vadd.f32 %v3556, %v3583
        %3585 = vmatmul.bf16.gmra.mxu0 %v366
        %v3586 = vpop.f32.mrf.mxu0
        %v3587 = vadd.f32 %v3559, %v3586
        %v3588 = vpop.f32.mrf.mxu0
        %3589 = vdwg.mxu0
        %3590 = vmatpush.bf16.msra.mxu0 %v2614
        %3591 = vmatpush.bf16.msra.mxu0 %v2610
        %3592 = vmatpush.bf16.msra.mxu0 %v2606
        %3593 = vmatpush.bf16.msra.mxu0 %v2602
        %3594 = vmatpush.bf16.msra.mxu0 %v2598
        %3595 = vmatpush.bf16.msra.mxu0 %v2594
        %3596 = vmatpush.bf16.msra.mxu0 %v2590
        %3597 = vmatpush.bf16.msra.mxu0 %v2586
        %3598 = vmatmul.bf16.gmra.mxu0 %v319
        %v3599 = vpop.f32.mrf.mxu0
        %v3600 = vadd.f32 %v3572, %v3599
        %v3601 = vpop.f32.mrf.mxu0
        %v3602 = vadd.f32 %v3574, %v3601
        %3603 = vmatmul.bf16.gmra.mxu0 %v335
        %v3604 = vpop.f32.mrf.mxu0
        %v3605 = vadd.f32 %v3577, %v3604
        %v3606 = vpop.f32.mrf.mxu0
        %v3607 = vadd.f32 %v3579, %v3606
        %3608 = vmatmul.bf16.gmra.mxu0 %v351
        %v3609 = vpop.f32.mrf.mxu0
        %v3610 = vadd.f32 %v3582, %v3609
        %v3611 = vpop.f32.mrf.mxu0
        %v3612 = vadd.f32 %v3584, %v3611
        %3613 = vmatmul.bf16.gmra.mxu0 %v367
        %v3614 = vpop.f32.mrf.mxu0
        %v3615 = vadd.f32 %v3587, %v3614
        %v3616 = vpop.f32.mrf.mxu0
        %3617 = vdwg.mxu0
        %3618 = vmatpush.bf16.msra.mxu0 %v2646
        %3619 = vmatpush.bf16.msra.mxu0 %v2642
        %3620 = vmatpush.bf16.msra.mxu0 %v2638
        %3621 = vmatpush.bf16.msra.mxu0 %v2634
        %3622 = vmatpush.bf16.msra.mxu0 %v2630
        %3623 = vmatpush.bf16.msra.mxu0 %v2626
        %3624 = vmatpush.bf16.msra.mxu0 %v2622
        %3625 = vmatpush.bf16.msra.mxu0 %v2618
        %3626 = vmatmul.bf16.gmra.mxu0 %v320
        %v3627 = vpop.f32.mrf.mxu0
        %v3628 = vadd.f32 %v3600, %v3627
        %v3629 = vpop.f32.mrf.mxu0
        %v3630 = vadd.f32 %v3602, %v3629
        %3631 = vmatmul.bf16.gmra.mxu0 %v336
        %v3632 = vpop.f32.mrf.mxu0
        %v3633 = vadd.f32 %v3605, %v3632
        %v3634 = vpop.f32.mrf.mxu0
        %v3635 = vadd.f32 %v3607, %v3634
        %3636 = vmatmul.bf16.gmra.mxu0 %v352
        %v3637 = vpop.f32.mrf.mxu0
        %v3638 = vadd.f32 %v3610, %v3637
        %v3639 = vpop.f32.mrf.mxu0
        %v3640 = vadd.f32 %v3612, %v3639
        %3641 = vmatmul.bf16.gmra.mxu0 %v368
        %v3642 = vpop.f32.mrf.mxu0
        %v3643 = vadd.f32 %v3615, %v3642
        %v3644 = vpop.f32.mrf.mxu0
        %3645 = vdwg.mxu0
        %3646 = vmatpush.bf16.msra.mxu0 %v2678
        %3647 = vmatpush.bf16.msra.mxu0 %v2674
        %3648 = vmatpush.bf16.msra.mxu0 %v2670
        %3649 = vmatpush.bf16.msra.mxu0 %v2666
        %3650 = vmatpush.bf16.msra.mxu0 %v2662
        %3651 = vmatpush.bf16.msra.mxu0 %v2658
        %3652 = vmatpush.bf16.msra.mxu0 %v2654
        %3653 = vmatpush.bf16.msra.mxu0 %v2650
        %3654 = vmatmul.bf16.gmra.mxu0 %v321
        %v3655 = vpop.f32.mrf.mxu0
        %v3656 = vadd.f32 %v3628, %v3655
        %v3657 = vpop.f32.mrf.mxu0
        %v3658 = vadd.f32 %v3630, %v3657
        %3659 = vmatmul.bf16.gmra.mxu0 %v337
        %v3660 = vpop.f32.mrf.mxu0
        %v3661 = vadd.f32 %v3633, %v3660
        %v3662 = vpop.f32.mrf.mxu0
        %v3663 = vadd.f32 %v3635, %v3662
        %3664 = vmatmul.bf16.gmra.mxu0 %v353
        %v3665 = vpop.f32.mrf.mxu0
        %v3666 = vadd.f32 %v3638, %v3665
        %v3667 = vpop.f32.mrf.mxu0
        %v3668 = vadd.f32 %v3640, %v3667
        %3669 = vmatmul.bf16.gmra.mxu0 %v369
        %v3670 = vpop.f32.mrf.mxu0
        %v3671 = vadd.f32 %v3643, %v3670
        %v3672 = vpop.f32.mrf.mxu0
        %3673 = vdwg.mxu0
        %3674 = vmatpush.bf16.msra.mxu0 %v2710
        %3675 = vmatpush.bf16.msra.mxu0 %v2706
        %3676 = vmatpush.bf16.msra.mxu0 %v2702
        %3677 = vmatpush.bf16.msra.mxu0 %v2698
        %3678 = vmatpush.bf16.msra.mxu0 %v2694
        %3679 = vmatpush.bf16.msra.mxu0 %v2690
        %3680 = vmatpush.bf16.msra.mxu0 %v2686
        %3681 = vmatpush.bf16.msra.mxu0 %v2682
        %3682 = vmatmul.bf16.gmra.mxu0 %v322
        %v3683 = vpop.f32.mrf.mxu0
        %v3684 = vadd.f32 %v3656, %v3683
        %v3685 = vpop.f32.mrf.mxu0
        %v3686 = vadd.f32 %v3658, %v3685
        %3687 = vmatmul.bf16.gmra.mxu0 %v338
        %v3688 = vpop.f32.mrf.mxu0
        %v3689 = vadd.f32 %v3661, %v3688
        %v3690 = vpop.f32.mrf.mxu0
        %v3691 = vadd.f32 %v3663, %v3690
        %3692 = vmatmul.bf16.gmra.mxu0 %v354
        %v3693 = vpop.f32.mrf.mxu0
        %v3694 = vadd.f32 %v3666, %v3693
        %v3695 = vpop.f32.mrf.mxu0
        %v3696 = vadd.f32 %v3668, %v3695
        %3697 = vmatmul.bf16.gmra.mxu0 %v370
        %v3698 = vpop.f32.mrf.mxu0
        %v3699 = vadd.f32 %v3671, %v3698
        %v3700 = vpop.f32.mrf.mxu0
        %3701 = vdwg.mxu0
        %3702 = vmatpush.bf16.msra.mxu0 %v2742
        %3703 = vmatpush.bf16.msra.mxu0 %v2738
        %3704 = vmatpush.bf16.msra.mxu0 %v2734
        %3705 = vmatpush.bf16.msra.mxu0 %v2730
        %3706 = vmatpush.bf16.msra.mxu0 %v2726
        %3707 = vmatpush.bf16.msra.mxu0 %v2722
        %3708 = vmatpush.bf16.msra.mxu0 %v2718
        %3709 = vmatpush.bf16.msra.mxu0 %v2714
        %3710 = vmatmul.bf16.gmra.mxu0 %v323
        %v3711 = vpop.f32.mrf.mxu0
        %v3712 = vadd.f32 %v3684, %v3711
        %v3713 = vpop.f32.mrf.mxu0
        %v3714 = vadd.f32 %v3686, %v3713
        %3715 = vmatmul.bf16.gmra.mxu0 %v339
        %v3716 = vpop.f32.mrf.mxu0
        %v3717 = vadd.f32 %v3689, %v3716
        %v3718 = vpop.f32.mrf.mxu0
        %v3719 = vadd.f32 %v3691, %v3718
        %3720 = vmatmul.bf16.gmra.mxu0 %v355
        %v3721 = vpop.f32.mrf.mxu0
        %v3722 = vadd.f32 %v3694, %v3721
        %v3723 = vpop.f32.mrf.mxu0
        %v3724 = vadd.f32 %v3696, %v3723
        %3725 = vmatmul.bf16.gmra.mxu0 %v371
        %v3726 = vpop.f32.mrf.mxu0
        %v3727 = vadd.f32 %v3699, %v3726
        %v3728 = vpop.f32.mrf.mxu0
        %3729 = vdwg.mxu0
        %3730 = vmatpush.bf16.msra.mxu0 %v2774
        %3731 = vmatpush.bf16.msra.mxu0 %v2770
        %3732 = vmatpush.bf16.msra.mxu0 %v2766
        %3733 = vmatpush.bf16.msra.mxu0 %v2762
        %3734 = vmatpush.bf16.msra.mxu0 %v2758
        %3735 = vmatpush.bf16.msra.mxu0 %v2754
        %3736 = vmatpush.bf16.msra.mxu0 %v2750
        %3737 = vmatpush.bf16.msra.mxu0 %v2746
        %3738 = vmatmul.bf16.gmra.mxu0 %v324
        %v3739 = vpop.f32.mrf.mxu0
        %v3740 = vadd.f32 %v3712, %v3739
        %v3741 = vpop.f32.mrf.mxu0
        %v3742 = vadd.f32 %v3714, %v3741
        %3743 = vmatmul.bf16.gmra.mxu0 %v340
        %v3744 = vpop.f32.mrf.mxu0
        %v3745 = vadd.f32 %v3717, %v3744
        %v3746 = vpop.f32.mrf.mxu0
        %v3747 = vadd.f32 %v3719, %v3746
        %3748 = vmatmul.bf16.gmra.mxu0 %v356
        %v3749 = vpop.f32.mrf.mxu0
        %v3750 = vadd.f32 %v3722, %v3749
        %v3751 = vpop.f32.mrf.mxu0
        %v3752 = vadd.f32 %v3724, %v3751
        %3753 = vmatmul.bf16.gmra.mxu0 %v372
        %v3754 = vpop.f32.mrf.mxu0
        %v3755 = vadd.f32 %v3727, %v3754
        %v3756 = vpop.f32.mrf.mxu0
        %3757 = vdwg.mxu0
        %3758 = vmatpush.bf16.msra.mxu0 %v2806
        %3759 = vmatpush.bf16.msra.mxu0 %v2802
        %3760 = vmatpush.bf16.msra.mxu0 %v2798
        %3761 = vmatpush.bf16.msra.mxu0 %v2794
        %3762 = vmatpush.bf16.msra.mxu0 %v2790
        %3763 = vmatpush.bf16.msra.mxu0 %v2786
        %3764 = vmatpush.bf16.msra.mxu0 %v2782
        %3765 = vmatpush.bf16.msra.mxu0 %v2778
        %3766 = vmatmul.bf16.gmra.mxu0 %v325
        %v3767 = vpop.f32.mrf.mxu0
        %v3768 = vadd.f32 %v3740, %v3767
        %v3769 = vpop.f32.mrf.mxu0
        %v3770 = vadd.f32 %v3742, %v3769
        %3771 = vmatmul.bf16.gmra.mxu0 %v341
        %v3772 = vpop.f32.mrf.mxu0
        %v3773 = vadd.f32 %v3745, %v3772
        %v3774 = vpop.f32.mrf.mxu0
        %v3775 = vadd.f32 %v3747, %v3774
        %3776 = vmatmul.bf16.gmra.mxu0 %v357
        %v3777 = vpop.f32.mrf.mxu0
        %v3778 = vadd.f32 %v3750, %v3777
        %v3779 = vpop.f32.mrf.mxu0
        %v3780 = vadd.f32 %v3752, %v3779
        %3781 = vmatmul.bf16.gmra.mxu0 %v373
        %v3782 = vpop.f32.mrf.mxu0
        %v3783 = vadd.f32 %v3755, %v3782
        %v3784 = vpop.f32.mrf.mxu0
        %3785 = vdwg.mxu0
        %3786 = vmatpush.bf16.msra.mxu0 %v2838
        %3787 = vmatpush.bf16.msra.mxu0 %v2834
        %3788 = vmatpush.bf16.msra.mxu0 %v2830
        %3789 = vmatpush.bf16.msra.mxu0 %v2826
        %3790 = vmatpush.bf16.msra.mxu0 %v2822
        %3791 = vmatpush.bf16.msra.mxu0 %v2818
        %3792 = vmatpush.bf16.msra.mxu0 %v2814
        %3793 = vmatpush.bf16.msra.mxu0 %v2810
        %3794 = vmatmul.bf16.gmra.mxu0 %v326
        %v3795 = vpop.f32.mrf.mxu0
        %v3796 = vadd.f32 %v3768, %v3795
        %v3797 = vpop.f32.mrf.mxu0
        %v3798 = vadd.f32 %v3770, %v3797
        %3799 = vmatmul.bf16.gmra.mxu0 %v342
        %v3800 = vpop.f32.mrf.mxu0
        %v3801 = vadd.f32 %v3773, %v3800
        %v3802 = vpop.f32.mrf.mxu0
        %v3803 = vadd.f32 %v3775, %v3802
        %3804 = vmatmul.bf16.gmra.mxu0 %v358
        %v3805 = vpop.f32.mrf.mxu0
        %v3806 = vadd.f32 %v3778, %v3805
        %v3807 = vpop.f32.mrf.mxu0
        %v3808 = vadd.f32 %v3780, %v3807
        %3809 = vmatmul.bf16.gmra.mxu0 %v374
        %v3810 = vpop.f32.mrf.mxu0
        %v3811 = vadd.f32 %v3783, %v3810
        %v3812 = vpop.f32.mrf.mxu0
        %3813 = vdwg.mxu0
        %3814 = vmatpush.bf16.msra.mxu0 %v2870
        %3815 = vmatpush.bf16.msra.mxu0 %v2866
        %3816 = vmatpush.bf16.msra.mxu0 %v2862
        %3817 = vmatpush.bf16.msra.mxu0 %v2858
        %3818 = vmatpush.bf16.msra.mxu0 %v2854
        %3819 = vmatpush.bf16.msra.mxu0 %v2850
        %3820 = vmatpush.bf16.msra.mxu0 %v2846
        %3821 = vmatpush.bf16.msra.mxu0 %v2842
        %3822 = vmatmul.bf16.gmra.mxu0 %v327
        %v3823 = vpop.f32.mrf.mxu0
        %v3824 = vadd.f32 %v3796, %v3823
        %v3825 = vpop.f32.mrf.mxu0
        %v3826 = vadd.f32 %v3798, %v3825
        %3827 = vmatmul.bf16.gmra.mxu0 %v343
        %v3828 = vpop.f32.mrf.mxu0
        %v3829 = vadd.f32 %v3801, %v3828
        %v3830 = vpop.f32.mrf.mxu0
        %v3831 = vadd.f32 %v3803, %v3830
        %3832 = vmatmul.bf16.gmra.mxu0 %v359
        %v3833 = vpop.f32.mrf.mxu0
        %v3834 = vadd.f32 %v3806, %v3833
        %v3835 = vpop.f32.mrf.mxu0
        %v3836 = vadd.f32 %v3808, %v3835
        %3837 = vmatmul.bf16.gmra.mxu0 %v375
        %v3838 = vpop.f32.mrf.mxu0
        %v3839 = vadd.f32 %v3811, %v3838
        %v3840 = vpop.f32.mrf.mxu0
        %3841 = vdwg.mxu0
        %3842 = vmatpush.bf16.msra.mxu0 %v2902
        %3843 = vmatpush.bf16.msra.mxu0 %v2898
        %3844 = vmatpush.bf16.msra.mxu0 %v2894
        %3845 = vmatpush.bf16.msra.mxu0 %v2890
        %3846 = vmatpush.bf16.msra.mxu0 %v2886
        %3847 = vmatpush.bf16.msra.mxu0 %v2882
        %3848 = vmatpush.bf16.msra.mxu0 %v2878
        %3849 = vmatpush.bf16.msra.mxu0 %v2874
        %3850 = vmatmul.bf16.gmra.mxu0 %v328
        %v3851 = vpop.f32.mrf.mxu0
        %v3852 = vadd.f32 %v3824, %v3851
        %v3853 = vpop.f32.mrf.mxu0
        %v3854 = vadd.f32 %v3826, %v3853
        %3855 = vmatmul.bf16.gmra.mxu0 %v344
        %v3856 = vpop.f32.mrf.mxu0
        %v3857 = vadd.f32 %v3829, %v3856
        %v3858 = vpop.f32.mrf.mxu0
        %v3859 = vadd.f32 %v3831, %v3858
        %3860 = vmatmul.bf16.gmra.mxu0 %v360
        %v3861 = vpop.f32.mrf.mxu0
        %v3862 = vadd.f32 %v3834, %v3861
        %v3863 = vpop.f32.mrf.mxu0
        %v3864 = vadd.f32 %v3836, %v3863
        %3865 = vmatmul.bf16.gmra.mxu0 %v376
        %v3866 = vpop.f32.mrf.mxu0
        %v3867 = vadd.f32 %v3839, %v3866
        %v3868 = vpop.f32.mrf.mxu0
        %3869 = vdwg.mxu0
        %3870 = vmatpush.bf16.msra.mxu0 %v2934
        %3871 = vmatpush.bf16.msra.mxu0 %v2930
        %3872 = vmatpush.bf16.msra.mxu0 %v2926
        %3873 = vmatpush.bf16.msra.mxu0 %v2922
        %3874 = vmatpush.bf16.msra.mxu0 %v2918
        %3875 = vmatpush.bf16.msra.mxu0 %v2914
        %3876 = vmatpush.bf16.msra.mxu0 %v2910
        %3877 = vmatpush.bf16.msra.mxu0 %v2906
        %3878 = vmatmul.bf16.gmra.mxu0 %v329
        %v3879 = vpop.f32.mrf.mxu0
        %v3880 = vadd.f32 %v3852, %v3879
        %v3881 = vpop.f32.mrf.mxu0
        %v3882 = vadd.f32 %v3854, %v3881
        %3883 = vmatmul.bf16.gmra.mxu0 %v345
        %v3884 = vpop.f32.mrf.mxu0
        %v3885 = vadd.f32 %v3857, %v3884
        %v3886 = vpop.f32.mrf.mxu0
        %v3887 = vadd.f32 %v3859, %v3886
        %3888 = vmatmul.bf16.gmra.mxu0 %v361
        %v3889 = vpop.f32.mrf.mxu0
        %v3890 = vadd.f32 %v3862, %v3889
        %v3891 = vpop.f32.mrf.mxu0
        %v3892 = vadd.f32 %v3864, %v3891
        %3893 = vmatmul.bf16.gmra.mxu0 %v377
        %v3894 = vpop.f32.mrf.mxu0
        %v3895 = vadd.f32 %v3867, %v3894
        %v3896 = vpop.f32.mrf.mxu0
        %3897 = vdwg.mxu0
        %3898 = vmatpush.bf16.msra.mxu0 %v2455
        %3899 = vmatpush.bf16.msra.mxu0 %v2451
        %3900 = vmatpush.bf16.msra.mxu0 %v2447
        %3901 = vmatpush.bf16.msra.mxu0 %v2443
        %3902 = vmatpush.bf16.msra.mxu0 %v2439
        %3903 = vmatpush.bf16.msra.mxu0 %v2435
        %3904 = vmatpush.bf16.msra.mxu0 %v2431
        %3905 = vmatpush.bf16.msra.mxu0 %v2427
        %3906 = vmatmul.bf16.gmra.mxu0 %v314
        %v3907 = vpop.f32.mrf.mxu0
        %v3908 = vadd.f32 0.0, %v3907
        %v3909 = vpop.f32.mrf.mxu0
        %v3910 = vadd.f32 0.0, %v3909
        %3911 = vmatmul.bf16.gmra.mxu0 %v330
        %v3912 = vpop.f32.mrf.mxu0
        %v3913 = vadd.f32 0.0, %v3912
        %v3914 = vpop.f32.mrf.mxu0
        %v3915 = vadd.f32 0.0, %v3914
        %3916 = vmatmul.bf16.gmra.mxu0 %v346
        %v3917 = vpop.f32.mrf.mxu0
        %v3918 = vadd.f32 0.0, %v3917
        %v3919 = vpop.f32.mrf.mxu0
        %v3920 = vadd.f32 0.0, %v3919
        %3921 = vmatmul.bf16.gmra.mxu0 %v362
        %v3922 = vpop.f32.mrf.mxu0
        %v3923 = vadd.f32 0.0, %v3922
        %v3924 = vpop.f32.mrf.mxu0
        %3925 = vdwg.mxu0
        %3926 = vmatpush.bf16.msra.mxu0 %v2487
        %3927 = vmatpush.bf16.msra.mxu0 %v2483
        %3928 = vmatpush.bf16.msra.mxu0 %v2479
        %3929 = vmatpush.bf16.msra.mxu0 %v2475
        %3930 = vmatpush.bf16.msra.mxu0 %v2471
        %3931 = vmatpush.bf16.msra.mxu0 %v2467
        %3932 = vmatpush.bf16.msra.mxu0 %v2463
        %3933 = vmatpush.bf16.msra.mxu0 %v2459
        %3934 = vmatmul.bf16.gmra.mxu0 %v315
        %v3935 = vpop.f32.mrf.mxu0
        %v3936 = vadd.f32 %v3908, %v3935
        %v3937 = vpop.f32.mrf.mxu0
        %v3938 = vadd.f32 %v3910, %v3937
        %3939 = vmatmul.bf16.gmra.mxu0 %v331
        %v3940 = vpop.f32.mrf.mxu0
        %v3941 = vadd.f32 %v3913, %v3940
        %v3942 = vpop.f32.mrf.mxu0
        %v3943 = vadd.f32 %v3915, %v3942
        %3944 = vmatmul.bf16.gmra.mxu0 %v347
        %v3945 = vpop.f32.mrf.mxu0
        %v3946 = vadd.f32 %v3918, %v3945
        %v3947 = vpop.f32.mrf.mxu0
        %v3948 = vadd.f32 %v3920, %v3947
        %3949 = vmatmul.bf16.gmra.mxu0 %v363
        %v3950 = vpop.f32.mrf.mxu0
        %v3951 = vadd.f32 %v3923, %v3950
        %v3952 = vpop.f32.mrf.mxu0
        %3953 = vdwg.mxu0
        %3954 = vmatpush.bf16.msra.mxu0 %v2519
        %3955 = vmatpush.bf16.msra.mxu0 %v2515
        %3956 = vmatpush.bf16.msra.mxu0 %v2511
        %3957 = vmatpush.bf16.msra.mxu0 %v2507
        %3958 = vmatpush.bf16.msra.mxu0 %v2503
        %3959 = vmatpush.bf16.msra.mxu0 %v2499
        %3960 = vmatpush.bf16.msra.mxu0 %v2495
        %3961 = vmatpush.bf16.msra.mxu0 %v2491
        %3962 = vmatmul.bf16.gmra.mxu0 %v316
        %v3963 = vpop.f32.mrf.mxu0
        %v3964 = vadd.f32 %v3936, %v3963
        %v3965 = vpop.f32.mrf.mxu0
        %v3966 = vadd.f32 %v3938, %v3965
        %3967 = vmatmul.bf16.gmra.mxu0 %v332
        %v3968 = vpop.f32.mrf.mxu0
        %v3969 = vadd.f32 %v3941, %v3968
        %v3970 = vpop.f32.mrf.mxu0
        %v3971 = vadd.f32 %v3943, %v3970
        %3972 = vmatmul.bf16.gmra.mxu0 %v348
        %v3973 = vpop.f32.mrf.mxu0
        %v3974 = vadd.f32 %v3946, %v3973
        %v3975 = vpop.f32.mrf.mxu0
        %v3976 = vadd.f32 %v3948, %v3975
        %3977 = vmatmul.bf16.gmra.mxu0 %v364
        %v3978 = vpop.f32.mrf.mxu0
        %v3979 = vadd.f32 %v3951, %v3978
        %v3980 = vpop.f32.mrf.mxu0
        %3981 = vdwg.mxu0
        %3982 = vmatpush.bf16.msra.mxu0 %v2551
        %3983 = vmatpush.bf16.msra.mxu0 %v2547
        %3984 = vmatpush.bf16.msra.mxu0 %v2543
        %3985 = vmatpush.bf16.msra.mxu0 %v2539
        %3986 = vmatpush.bf16.msra.mxu0 %v2535
        %3987 = vmatpush.bf16.msra.mxu0 %v2531
        %3988 = vmatpush.bf16.msra.mxu0 %v2527
        %3989 = vmatpush.bf16.msra.mxu0 %v2523
        %3990 = vmatmul.bf16.gmra.mxu0 %v317
        %v3991 = vpop.f32.mrf.mxu0
        %v3992 = vadd.f32 %v3964, %v3991
        %v3993 = vpop.f32.mrf.mxu0
        %v3994 = vadd.f32 %v3966, %v3993
        %3995 = vmatmul.bf16.gmra.mxu0 %v333
        %v3996 = vpop.f32.mrf.mxu0
        %v3997 = vadd.f32 %v3969, %v3996
        %v3998 = vpop.f32.mrf.mxu0
        %v3999 = vadd.f32 %v3971, %v3998
        %4000 = vmatmul.bf16.gmra.mxu0 %v349
        %v4001 = vpop.f32.mrf.mxu0
        %v4002 = vadd.f32 %v3974, %v4001
        %v4003 = vpop.f32.mrf.mxu0
        %v4004 = vadd.f32 %v3976, %v4003
        %4005 = vmatmul.bf16.gmra.mxu0 %v365
        %v4006 = vpop.f32.mrf.mxu0
        %v4007 = vadd.f32 %v3979, %v4006
        %v4008 = vpop.f32.mrf.mxu0
        %4009 = vdwg.mxu0
        %4010 = vmatpush.bf16.msra.mxu0 %v2583
        %4011 = vmatpush.bf16.msra.mxu0 %v2579
        %4012 = vmatpush.bf16.msra.mxu0 %v2575
        %4013 = vmatpush.bf16.msra.mxu0 %v2571
        %4014 = vmatpush.bf16.msra.mxu0 %v2567
        %4015 = vmatpush.bf16.msra.mxu0 %v2563
        %4016 = vmatpush.bf16.msra.mxu0 %v2559
        %4017 = vmatpush.bf16.msra.mxu0 %v2555
        %4018 = vmatmul.bf16.gmra.mxu0 %v318
        %v4019 = vpop.f32.mrf.mxu0
        %v4020 = vadd.f32 %v3992, %v4019
        %v4021 = vpop.f32.mrf.mxu0
        %v4022 = vadd.f32 %v3994, %v4021
        %4023 = vmatmul.bf16.gmra.mxu0 %v334
        %v4024 = vpop.f32.mrf.mxu0
        %v4025 = vadd.f32 %v3997, %v4024
        %v4026 = vpop.f32.mrf.mxu0
        %v4027 = vadd.f32 %v3999, %v4026
        %4028 = vmatmul.bf16.gmra.mxu0 %v350
        %v4029 = vpop.f32.mrf.mxu0
        %v4030 = vadd.f32 %v4002, %v4029
        %v4031 = vpop.f32.mrf.mxu0
        %v4032 = vadd.f32 %v4004, %v4031
        %4033 = vmatmul.bf16.gmra.mxu0 %v366
        %v4034 = vpop.f32.mrf.mxu0
        %v4035 = vadd.f32 %v4007, %v4034
        %v4036 = vpop.f32.mrf.mxu0
        %4037 = vdwg.mxu0
        %4038 = vmatpush.bf16.msra.mxu0 %v2615
        %4039 = vmatpush.bf16.msra.mxu0 %v2611
        %4040 = vmatpush.bf16.msra.mxu0 %v2607
        %4041 = vmatpush.bf16.msra.mxu0 %v2603
        %4042 = vmatpush.bf16.msra.mxu0 %v2599
        %4043 = vmatpush.bf16.msra.mxu0 %v2595
        %4044 = vmatpush.bf16.msra.mxu0 %v2591
        %4045 = vmatpush.bf16.msra.mxu0 %v2587
        %4046 = vmatmul.bf16.gmra.mxu0 %v319
        %v4047 = vpop.f32.mrf.mxu0
        %v4048 = vadd.f32 %v4020, %v4047
        %v4049 = vpop.f32.mrf.mxu0
        %v4050 = vadd.f32 %v4022, %v4049
        %4051 = vmatmul.bf16.gmra.mxu0 %v335
        %v4052 = vpop.f32.mrf.mxu0
        %v4053 = vadd.f32 %v4025, %v4052
        %v4054 = vpop.f32.mrf.mxu0
        %v4055 = vadd.f32 %v4027, %v4054
        %4056 = vmatmul.bf16.gmra.mxu0 %v351
        %v4057 = vpop.f32.mrf.mxu0
        %v4058 = vadd.f32 %v4030, %v4057
        %v4059 = vpop.f32.mrf.mxu0
        %v4060 = vadd.f32 %v4032, %v4059
        %4061 = vmatmul.bf16.gmra.mxu0 %v367
        %v4062 = vpop.f32.mrf.mxu0
        %v4063 = vadd.f32 %v4035, %v4062
        %v4064 = vpop.f32.mrf.mxu0
        %4065 = vdwg.mxu0
        %4066 = vmatpush.bf16.msra.mxu0 %v2647
        %4067 = vmatpush.bf16.msra.mxu0 %v2643
        %4068 = vmatpush.bf16.msra.mxu0 %v2639
        %4069 = vmatpush.bf16.msra.mxu0 %v2635
        %4070 = vmatpush.bf16.msra.mxu0 %v2631
        %4071 = vmatpush.bf16.msra.mxu0 %v2627
        %4072 = vmatpush.bf16.msra.mxu0 %v2623
        %4073 = vmatpush.bf16.msra.mxu0 %v2619
        %4074 = vmatmul.bf16.gmra.mxu0 %v320
        %v4075 = vpop.f32.mrf.mxu0
        %v4076 = vadd.f32 %v4048, %v4075
        %v4077 = vpop.f32.mrf.mxu0
        %v4078 = vadd.f32 %v4050, %v4077
        %4079 = vmatmul.bf16.gmra.mxu0 %v336
        %v4080 = vpop.f32.mrf.mxu0
        %v4081 = vadd.f32 %v4053, %v4080
        %v4082 = vpop.f32.mrf.mxu0
        %v4083 = vadd.f32 %v4055, %v4082
        %4084 = vmatmul.bf16.gmra.mxu0 %v352
        %v4085 = vpop.f32.mrf.mxu0
        %v4086 = vadd.f32 %v4058, %v4085
        %v4087 = vpop.f32.mrf.mxu0
        %v4088 = vadd.f32 %v4060, %v4087
        %4089 = vmatmul.bf16.gmra.mxu0 %v368
        %v4090 = vpop.f32.mrf.mxu0
        %v4091 = vadd.f32 %v4063, %v4090
        %v4092 = vpop.f32.mrf.mxu0
        %4093 = vdwg.mxu0
        %4094 = vmatpush.bf16.msra.mxu0 %v2679
        %4095 = vmatpush.bf16.msra.mxu0 %v2675
        %4096 = vmatpush.bf16.msra.mxu0 %v2671
        %4097 = vmatpush.bf16.msra.mxu0 %v2667
        %4098 = vmatpush.bf16.msra.mxu0 %v2663
        %4099 = vmatpush.bf16.msra.mxu0 %v2659
        %4100 = vmatpush.bf16.msra.mxu0 %v2655
        %4101 = vmatpush.bf16.msra.mxu0 %v2651
        %4102 = vmatmul.bf16.gmra.mxu0 %v321
        %v4103 = vpop.f32.mrf.mxu0
        %v4104 = vadd.f32 %v4076, %v4103
        %v4105 = vpop.f32.mrf.mxu0
        %v4106 = vadd.f32 %v4078, %v4105
        %4107 = vmatmul.bf16.gmra.mxu0 %v337
        %v4108 = vpop.f32.mrf.mxu0
        %v4109 = vadd.f32 %v4081, %v4108
        %v4110 = vpop.f32.mrf.mxu0
        %v4111 = vadd.f32 %v4083, %v4110
        %4112 = vmatmul.bf16.gmra.mxu0 %v353
        %v4113 = vpop.f32.mrf.mxu0
        %v4114 = vadd.f32 %v4086, %v4113
        %v4115 = vpop.f32.mrf.mxu0
        %v4116 = vadd.f32 %v4088, %v4115
        %4117 = vmatmul.bf16.gmra.mxu0 %v369
        %v4118 = vpop.f32.mrf.mxu0
        %v4119 = vadd.f32 %v4091, %v4118
        %v4120 = vpop.f32.mrf.mxu0
        %4121 = vdwg.mxu0
        %4122 = vmatpush.bf16.msra.mxu0 %v2711
        %4123 = vmatpush.bf16.msra.mxu0 %v2707
        %4124 = vmatpush.bf16.msra.mxu0 %v2703
        %4125 = vmatpush.bf16.msra.mxu0 %v2699
        %4126 = vmatpush.bf16.msra.mxu0 %v2695
        %4127 = vmatpush.bf16.msra.mxu0 %v2691
        %4128 = vmatpush.bf16.msra.mxu0 %v2687
        %4129 = vmatpush.bf16.msra.mxu0 %v2683
        %4130 = vmatmul.bf16.gmra.mxu0 %v322
        %v4131 = vpop.f32.mrf.mxu0
        %v4132 = vadd.f32 %v4104, %v4131
        %v4133 = vpop.f32.mrf.mxu0
        %v4134 = vadd.f32 %v4106, %v4133
        %4135 = vmatmul.bf16.gmra.mxu0 %v338
        %v4136 = vpop.f32.mrf.mxu0
        %v4137 = vadd.f32 %v4109, %v4136
        %v4138 = vpop.f32.mrf.mxu0
        %v4139 = vadd.f32 %v4111, %v4138
        %4140 = vmatmul.bf16.gmra.mxu0 %v354
        %v4141 = vpop.f32.mrf.mxu0
        %v4142 = vadd.f32 %v4114, %v4141
        %v4143 = vpop.f32.mrf.mxu0
        %v4144 = vadd.f32 %v4116, %v4143
        %4145 = vmatmul.bf16.gmra.mxu0 %v370
        %v4146 = vpop.f32.mrf.mxu0
        %v4147 = vadd.f32 %v4119, %v4146
        %v4148 = vpop.f32.mrf.mxu0
        %4149 = vdwg.mxu0
        %4150 = vmatpush.bf16.msra.mxu0 %v2743
        %4151 = vmatpush.bf16.msra.mxu0 %v2739
        %4152 = vmatpush.bf16.msra.mxu0 %v2735
        %4153 = vmatpush.bf16.msra.mxu0 %v2731
        %4154 = vmatpush.bf16.msra.mxu0 %v2727
        %4155 = vmatpush.bf16.msra.mxu0 %v2723
        %4156 = vmatpush.bf16.msra.mxu0 %v2719
        %4157 = vmatpush.bf16.msra.mxu0 %v2715
        %4158 = vmatmul.bf16.gmra.mxu0 %v323
        %v4159 = vpop.f32.mrf.mxu0
        %v4160 = vadd.f32 %v4132, %v4159
        %v4161 = vpop.f32.mrf.mxu0
        %v4162 = vadd.f32 %v4134, %v4161
        %4163 = vmatmul.bf16.gmra.mxu0 %v339
        %v4164 = vpop.f32.mrf.mxu0
        %v4165 = vadd.f32 %v4137, %v4164
        %v4166 = vpop.f32.mrf.mxu0
        %v4167 = vadd.f32 %v4139, %v4166
        %4168 = vmatmul.bf16.gmra.mxu0 %v355
        %v4169 = vpop.f32.mrf.mxu0
        %v4170 = vadd.f32 %v4142, %v4169
        %v4171 = vpop.f32.mrf.mxu0
        %v4172 = vadd.f32 %v4144, %v4171
        %4173 = vmatmul.bf16.gmra.mxu0 %v371
        %v4174 = vpop.f32.mrf.mxu0
        %v4175 = vadd.f32 %v4147, %v4174
        %v4176 = vpop.f32.mrf.mxu0
        %4177 = vdwg.mxu0
        %4178 = vmatpush.bf16.msra.mxu0 %v2775
        %4179 = vmatpush.bf16.msra.mxu0 %v2771
        %4180 = vmatpush.bf16.msra.mxu0 %v2767
        %4181 = vmatpush.bf16.msra.mxu0 %v2763
        %4182 = vmatpush.bf16.msra.mxu0 %v2759
        %4183 = vmatpush.bf16.msra.mxu0 %v2755
        %4184 = vmatpush.bf16.msra.mxu0 %v2751
        %4185 = vmatpush.bf16.msra.mxu0 %v2747
        %4186 = vmatmul.bf16.gmra.mxu0 %v324
        %v4187 = vpop.f32.mrf.mxu0
        %v4188 = vadd.f32 %v4160, %v4187
        %v4189 = vpop.f32.mrf.mxu0
        %v4190 = vadd.f32 %v4162, %v4189
        %4191 = vmatmul.bf16.gmra.mxu0 %v340
        %v4192 = vpop.f32.mrf.mxu0
        %v4193 = vadd.f32 %v4165, %v4192
        %v4194 = vpop.f32.mrf.mxu0
        %v4195 = vadd.f32 %v4167, %v4194
        %4196 = vmatmul.bf16.gmra.mxu0 %v356
        %v4197 = vpop.f32.mrf.mxu0
        %v4198 = vadd.f32 %v4170, %v4197
        %v4199 = vpop.f32.mrf.mxu0
        %v4200 = vadd.f32 %v4172, %v4199
        %4201 = vmatmul.bf16.gmra.mxu0 %v372
        %v4202 = vpop.f32.mrf.mxu0
        %v4203 = vadd.f32 %v4175, %v4202
        %v4204 = vpop.f32.mrf.mxu0
        %4205 = vdwg.mxu0
        %4206 = vmatpush.bf16.msra.mxu0 %v2807
        %4207 = vmatpush.bf16.msra.mxu0 %v2803
        %4208 = vmatpush.bf16.msra.mxu0 %v2799
        %4209 = vmatpush.bf16.msra.mxu0 %v2795
        %4210 = vmatpush.bf16.msra.mxu0 %v2791
        %4211 = vmatpush.bf16.msra.mxu0 %v2787
        %4212 = vmatpush.bf16.msra.mxu0 %v2783
        %4213 = vmatpush.bf16.msra.mxu0 %v2779
        %4214 = vmatmul.bf16.gmra.mxu0 %v325
        %v4215 = vpop.f32.mrf.mxu0
        %v4216 = vadd.f32 %v4188, %v4215
        %v4217 = vpop.f32.mrf.mxu0
        %v4218 = vadd.f32 %v4190, %v4217
        %4219 = vmatmul.bf16.gmra.mxu0 %v341
        %v4220 = vpop.f32.mrf.mxu0
        %v4221 = vadd.f32 %v4193, %v4220
        %v4222 = vpop.f32.mrf.mxu0
        %v4223 = vadd.f32 %v4195, %v4222
        %4224 = vmatmul.bf16.gmra.mxu0 %v357
        %v4225 = vpop.f32.mrf.mxu0
        %v4226 = vadd.f32 %v4198, %v4225
        %v4227 = vpop.f32.mrf.mxu0
        %v4228 = vadd.f32 %v4200, %v4227
        %4229 = vmatmul.bf16.gmra.mxu0 %v373
        %v4230 = vpop.f32.mrf.mxu0
        %v4231 = vadd.f32 %v4203, %v4230
        %v4232 = vpop.f32.mrf.mxu0
        %4233 = vdwg.mxu0
        %4234 = vmatpush.bf16.msra.mxu0 %v2839
        %4235 = vmatpush.bf16.msra.mxu0 %v2835
        %4236 = vmatpush.bf16.msra.mxu0 %v2831
        %4237 = vmatpush.bf16.msra.mxu0 %v2827
        %4238 = vmatpush.bf16.msra.mxu0 %v2823
        %4239 = vmatpush.bf16.msra.mxu0 %v2819
        %4240 = vmatpush.bf16.msra.mxu0 %v2815
        %4241 = vmatpush.bf16.msra.mxu0 %v2811
        %4242 = vmatmul.bf16.gmra.mxu0 %v326
        %v4243 = vpop.f32.mrf.mxu0
        %v4244 = vadd.f32 %v4216, %v4243
        %v4245 = vpop.f32.mrf.mxu0
        %v4246 = vadd.f32 %v4218, %v4245
        %4247 = vmatmul.bf16.gmra.mxu0 %v342
        %v4248 = vpop.f32.mrf.mxu0
        %v4249 = vadd.f32 %v4221, %v4248
        %v4250 = vpop.f32.mrf.mxu0
        %v4251 = vadd.f32 %v4223, %v4250
        %4252 = vmatmul.bf16.gmra.mxu0 %v358
        %v4253 = vpop.f32.mrf.mxu0
        %v4254 = vadd.f32 %v4226, %v4253
        %v4255 = vpop.f32.mrf.mxu0
        %v4256 = vadd.f32 %v4228, %v4255
        %4257 = vmatmul.bf16.gmra.mxu0 %v374
        %v4258 = vpop.f32.mrf.mxu0
        %v4259 = vadd.f32 %v4231, %v4258
        %v4260 = vpop.f32.mrf.mxu0
        %4261 = vdwg.mxu0
        %4262 = vmatpush.bf16.msra.mxu0 %v2871
        %4263 = vmatpush.bf16.msra.mxu0 %v2867
        %4264 = vmatpush.bf16.msra.mxu0 %v2863
        %4265 = vmatpush.bf16.msra.mxu0 %v2859
        %4266 = vmatpush.bf16.msra.mxu0 %v2855
        %4267 = vmatpush.bf16.msra.mxu0 %v2851
        %4268 = vmatpush.bf16.msra.mxu0 %v2847
        %4269 = vmatpush.bf16.msra.mxu0 %v2843
        %4270 = vmatmul.bf16.gmra.mxu0 %v327
        %v4271 = vpop.f32.mrf.mxu0
        %v4272 = vadd.f32 %v4244, %v4271
        %v4273 = vpop.f32.mrf.mxu0
        %v4274 = vadd.f32 %v4246, %v4273
        %4275 = vmatmul.bf16.gmra.mxu0 %v343
        %v4276 = vpop.f32.mrf.mxu0
        %v4277 = vadd.f32 %v4249, %v4276
        %v4278 = vpop.f32.mrf.mxu0
        %v4279 = vadd.f32 %v4251, %v4278
        %4280 = vmatmul.bf16.gmra.mxu0 %v359
        %v4281 = vpop.f32.mrf.mxu0
        %v4282 = vadd.f32 %v4254, %v4281
        %v4283 = vpop.f32.mrf.mxu0
        %v4284 = vadd.f32 %v4256, %v4283
        %4285 = vmatmul.bf16.gmra.mxu0 %v375
        %v4286 = vpop.f32.mrf.mxu0
        %v4287 = vadd.f32 %v4259, %v4286
        %v4288 = vpop.f32.mrf.mxu0
        %4289 = vdwg.mxu0
        %4290 = vmatpush.bf16.msra.mxu0 %v2903
        %4291 = vmatpush.bf16.msra.mxu0 %v2899
        %4292 = vmatpush.bf16.msra.mxu0 %v2895
        %4293 = vmatpush.bf16.msra.mxu0 %v2891
        %4294 = vmatpush.bf16.msra.mxu0 %v2887
        %4295 = vmatpush.bf16.msra.mxu0 %v2883
        %4296 = vmatpush.bf16.msra.mxu0 %v2879
        %4297 = vmatpush.bf16.msra.mxu0 %v2875
        %4298 = vmatmul.bf16.gmra.mxu0 %v328
        %v4299 = vpop.f32.mrf.mxu0
        %v4300 = vadd.f32 %v4272, %v4299
        %v4301 = vpop.f32.mrf.mxu0
        %v4302 = vadd.f32 %v4274, %v4301
        %4303 = vmatmul.bf16.gmra.mxu0 %v344
        %v4304 = vpop.f32.mrf.mxu0
        %v4305 = vadd.f32 %v4277, %v4304
        %v4306 = vpop.f32.mrf.mxu0
        %v4307 = vadd.f32 %v4279, %v4306
        %4308 = vmatmul.bf16.gmra.mxu0 %v360
        %v4309 = vpop.f32.mrf.mxu0
        %v4310 = vadd.f32 %v4282, %v4309
        %v4311 = vpop.f32.mrf.mxu0
        %v4312 = vadd.f32 %v4284, %v4311
        %4313 = vmatmul.bf16.gmra.mxu0 %v376
        %v4314 = vpop.f32.mrf.mxu0
        %v4315 = vadd.f32 %v4287, %v4314
        %v4316 = vpop.f32.mrf.mxu0
        %4317 = vdwg.mxu0
        %4318 = vmatpush.bf16.msra.mxu0 %v2935
        %4319 = vmatpush.bf16.msra.mxu0 %v2931
        %4320 = vmatpush.bf16.msra.mxu0 %v2927
        %4321 = vmatpush.bf16.msra.mxu0 %v2923
        %4322 = vmatpush.bf16.msra.mxu0 %v2919
        %4323 = vmatpush.bf16.msra.mxu0 %v2915
        %4324 = vmatpush.bf16.msra.mxu0 %v2911
        %4325 = vmatpush.bf16.msra.mxu0 %v2907
        %4326 = vmatmul.bf16.gmra.mxu0 %v329
        %v4327 = vpop.f32.mrf.mxu0
        %v4328 = vadd.f32 %v4300, %v4327
        %v4329 = vpop.f32.mrf.mxu0
        %v4330 = vadd.f32 %v4302, %v4329
        %4331 = vmatmul.bf16.gmra.mxu0 %v345
        %v4332 = vpop.f32.mrf.mxu0
        %v4333 = vadd.f32 %v4305, %v4332
        %v4334 = vpop.f32.mrf.mxu0
        %v4335 = vadd.f32 %v4307, %v4334
        %4336 = vmatmul.bf16.gmra.mxu0 %v361
        %v4337 = vpop.f32.mrf.mxu0
        %v4338 = vadd.f32 %v4310, %v4337
        %v4339 = vpop.f32.mrf.mxu0
        %v4340 = vadd.f32 %v4312, %v4339
        %4341 = vmatmul.bf16.gmra.mxu0 %v377
        %v4342 = vpop.f32.mrf.mxu0
        %v4343 = vadd.f32 %v4315, %v4342
        %v4344 = vpop.f32.mrf.mxu0
        %4345 = vdwg.mxu0
        %4346 = vmatpush.bf16.msra.mxu0 %v2456
        %4347 = vmatpush.bf16.msra.mxu0 %v2452
        %4348 = vmatpush.bf16.msra.mxu0 %v2448
        %4349 = vmatpush.bf16.msra.mxu0 %v2444
        %4350 = vmatpush.bf16.msra.mxu0 %v2440
        %4351 = vmatpush.bf16.msra.mxu0 %v2436
        %4352 = vmatpush.bf16.msra.mxu0 %v2432
        %4353 = vmatpush.bf16.msra.mxu0 %v2428
        %4354 = vmatmul.bf16.gmra.mxu0 %v314
        %v4355 = vpop.f32.mrf.mxu0
        %v4356 = vadd.f32 0.0, %v4355
        %v4357 = vpop.f32.mrf.mxu0
        %v4358 = vadd.f32 0.0, %v4357
        %4359 = vmatmul.bf16.gmra.mxu0 %v330
        %v4360 = vpop.f32.mrf.mxu0
        %v4361 = vadd.f32 0.0, %v4360
        %v4362 = vpop.f32.mrf.mxu0
        %v4363 = vadd.f32 0.0, %v4362
        %4364 = vmatmul.bf16.gmra.mxu0 %v346
        %v4365 = vpop.f32.mrf.mxu0
        %v4366 = vadd.f32 0.0, %v4365
        %v4367 = vpop.f32.mrf.mxu0
        %v4368 = vadd.f32 0.0, %v4367
        %4369 = vmatmul.bf16.gmra.mxu0 %v362
        %v4370 = vpop.f32.mrf.mxu0
        %v4371 = vadd.f32 0.0, %v4370
        %v4372 = vpop.f32.mrf.mxu0
        %4373 = vdwg.mxu0
        %4374 = vmatpush.bf16.msra.mxu0 %v2488
        %4375 = vmatpush.bf16.msra.mxu0 %v2484
        %4376 = vmatpush.bf16.msra.mxu0 %v2480
        %4377 = vmatpush.bf16.msra.mxu0 %v2476
        %4378 = vmatpush.bf16.msra.mxu0 %v2472
        %4379 = vmatpush.bf16.msra.mxu0 %v2468
        %4380 = vmatpush.bf16.msra.mxu0 %v2464
        %4381 = vmatpush.bf16.msra.mxu0 %v2460
        %4382 = vmatmul.bf16.gmra.mxu0 %v315
        %v4383 = vpop.f32.mrf.mxu0
        %v4384 = vadd.f32 %v4356, %v4383
        %v4385 = vpop.f32.mrf.mxu0
        %v4386 = vadd.f32 %v4358, %v4385
        %4387 = vmatmul.bf16.gmra.mxu0 %v331
        %v4388 = vpop.f32.mrf.mxu0
        %v4389 = vadd.f32 %v4361, %v4388
        %v4390 = vpop.f32.mrf.mxu0
        %v4391 = vadd.f32 %v4363, %v4390
        %4392 = vmatmul.bf16.gmra.mxu0 %v347
        %v4393 = vpop.f32.mrf.mxu0
        %v4394 = vadd.f32 %v4366, %v4393
        %v4395 = vpop.f32.mrf.mxu0
        %v4396 = vadd.f32 %v4368, %v4395
        %4397 = vmatmul.bf16.gmra.mxu0 %v363
        %v4398 = vpop.f32.mrf.mxu0
        %v4399 = vadd.f32 %v4371, %v4398
        %v4400 = vpop.f32.mrf.mxu0
        %4401 = vdwg.mxu0
        %4402 = vmatpush.bf16.msra.mxu0 %v2520
        %4403 = vmatpush.bf16.msra.mxu0 %v2516
        %4404 = vmatpush.bf16.msra.mxu0 %v2512
        %4405 = vmatpush.bf16.msra.mxu0 %v2508
        %4406 = vmatpush.bf16.msra.mxu0 %v2504
        %4407 = vmatpush.bf16.msra.mxu0 %v2500
        %4408 = vmatpush.bf16.msra.mxu0 %v2496
        %4409 = vmatpush.bf16.msra.mxu0 %v2492
        %4410 = vmatmul.bf16.gmra.mxu0 %v316
        %v4411 = vpop.f32.mrf.mxu0
        %v4412 = vadd.f32 %v4384, %v4411
        %v4413 = vpop.f32.mrf.mxu0
        %v4414 = vadd.f32 %v4386, %v4413
        %4415 = vmatmul.bf16.gmra.mxu0 %v332
        %v4416 = vpop.f32.mrf.mxu0
        %v4417 = vadd.f32 %v4389, %v4416
        %v4418 = vpop.f32.mrf.mxu0
        %v4419 = vadd.f32 %v4391, %v4418
        %4420 = vmatmul.bf16.gmra.mxu0 %v348
        %v4421 = vpop.f32.mrf.mxu0
        %v4422 = vadd.f32 %v4394, %v4421
        %v4423 = vpop.f32.mrf.mxu0
        %v4424 = vadd.f32 %v4396, %v4423
        %4425 = vmatmul.bf16.gmra.mxu0 %v364
        %v4426 = vpop.f32.mrf.mxu0
        %v4427 = vadd.f32 %v4399, %v4426
        %v4428 = vpop.f32.mrf.mxu0
        %4429 = vdwg.mxu0
        %4430 = vmatpush.bf16.msra.mxu0 %v2552
        %4431 = vmatpush.bf16.msra.mxu0 %v2548
        %4432 = vmatpush.bf16.msra.mxu0 %v2544
        %4433 = vmatpush.bf16.msra.mxu0 %v2540
        %4434 = vmatpush.bf16.msra.mxu0 %v2536
        %4435 = vmatpush.bf16.msra.mxu0 %v2532
        %4436 = vmatpush.bf16.msra.mxu0 %v2528
        %4437 = vmatpush.bf16.msra.mxu0 %v2524
        %4438 = vmatmul.bf16.gmra.mxu0 %v317
        %v4439 = vpop.f32.mrf.mxu0
        %v4440 = vadd.f32 %v4412, %v4439
        %v4441 = vpop.f32.mrf.mxu0
        %v4442 = vadd.f32 %v4414, %v4441
        %4443 = vmatmul.bf16.gmra.mxu0 %v333
        %v4444 = vpop.f32.mrf.mxu0
        %v4445 = vadd.f32 %v4417, %v4444
        %v4446 = vpop.f32.mrf.mxu0
        %v4447 = vadd.f32 %v4419, %v4446
        %4448 = vmatmul.bf16.gmra.mxu0 %v349
        %v4449 = vpop.f32.mrf.mxu0
        %v4450 = vadd.f32 %v4422, %v4449
        %v4451 = vpop.f32.mrf.mxu0
        %v4452 = vadd.f32 %v4424, %v4451
        %4453 = vmatmul.bf16.gmra.mxu0 %v365
        %v4454 = vpop.f32.mrf.mxu0
        %v4455 = vadd.f32 %v4427, %v4454
        %v4456 = vpop.f32.mrf.mxu0
        %4457 = vdwg.mxu0
        %4458 = vmatpush.bf16.msra.mxu0 %v2584
        %4459 = vmatpush.bf16.msra.mxu0 %v2580
        %4460 = vmatpush.bf16.msra.mxu0 %v2576
        %4461 = vmatpush.bf16.msra.mxu0 %v2572
        %4462 = vmatpush.bf16.msra.mxu0 %v2568
        %4463 = vmatpush.bf16.msra.mxu0 %v2564
        %4464 = vmatpush.bf16.msra.mxu0 %v2560
        %4465 = vmatpush.bf16.msra.mxu0 %v2556
        %4466 = vmatmul.bf16.gmra.mxu0 %v318
        %v4467 = vpop.f32.mrf.mxu0
        %v4468 = vadd.f32 %v4440, %v4467
        %v4469 = vpop.f32.mrf.mxu0
        %v4470 = vadd.f32 %v4442, %v4469
        %4471 = vmatmul.bf16.gmra.mxu0 %v334
        %v4472 = vpop.f32.mrf.mxu0
        %v4473 = vadd.f32 %v4445, %v4472
        %v4474 = vpop.f32.mrf.mxu0
        %v4475 = vadd.f32 %v4447, %v4474
        %4476 = vmatmul.bf16.gmra.mxu0 %v350
        %v4477 = vpop.f32.mrf.mxu0
        %v4478 = vadd.f32 %v4450, %v4477
        %v4479 = vpop.f32.mrf.mxu0
        %v4480 = vadd.f32 %v4452, %v4479
        %4481 = vmatmul.bf16.gmra.mxu0 %v366
        %v4482 = vpop.f32.mrf.mxu0
        %v4483 = vadd.f32 %v4455, %v4482
        %v4484 = vpop.f32.mrf.mxu0
        %4485 = vdwg.mxu0
        %4486 = vmatpush.bf16.msra.mxu0 %v2616
        %4487 = vmatpush.bf16.msra.mxu0 %v2612
        %4488 = vmatpush.bf16.msra.mxu0 %v2608
        %4489 = vmatpush.bf16.msra.mxu0 %v2604
        %4490 = vmatpush.bf16.msra.mxu0 %v2600
        %4491 = vmatpush.bf16.msra.mxu0 %v2596
        %4492 = vmatpush.bf16.msra.mxu0 %v2592
        %4493 = vmatpush.bf16.msra.mxu0 %v2588
        %4494 = vmatmul.bf16.gmra.mxu0 %v319
        %v4495 = vpop.f32.mrf.mxu0
        %v4496 = vadd.f32 %v4468, %v4495
        %v4497 = vpop.f32.mrf.mxu0
        %v4498 = vadd.f32 %v4470, %v4497
        %4499 = vmatmul.bf16.gmra.mxu0 %v335
        %v4500 = vpop.f32.mrf.mxu0
        %v4501 = vadd.f32 %v4473, %v4500
        %v4502 = vpop.f32.mrf.mxu0
        %v4503 = vadd.f32 %v4475, %v4502
        %4504 = vmatmul.bf16.gmra.mxu0 %v351
        %v4505 = vpop.f32.mrf.mxu0
        %v4506 = vadd.f32 %v4478, %v4505
        %v4507 = vpop.f32.mrf.mxu0
        %v4508 = vadd.f32 %v4480, %v4507
        %4509 = vmatmul.bf16.gmra.mxu0 %v367
        %v4510 = vpop.f32.mrf.mxu0
        %v4511 = vadd.f32 %v4483, %v4510
        %v4512 = vpop.f32.mrf.mxu0
        %4513 = vdwg.mxu0
        %4514 = vmatpush.bf16.msra.mxu0 %v2648
        %4515 = vmatpush.bf16.msra.mxu0 %v2644
        %4516 = vmatpush.bf16.msra.mxu0 %v2640
        %4517 = vmatpush.bf16.msra.mxu0 %v2636
        %4518 = vmatpush.bf16.msra.mxu0 %v2632
        %4519 = vmatpush.bf16.msra.mxu0 %v2628
        %4520 = vmatpush.bf16.msra.mxu0 %v2624
        %4521 = vmatpush.bf16.msra.mxu0 %v2620
        %4522 = vmatmul.bf16.gmra.mxu0 %v320
        %v4523 = vpop.f32.mrf.mxu0
        %v4524 = vadd.f32 %v4496, %v4523
        %v4525 = vpop.f32.mrf.mxu0
        %v4526 = vadd.f32 %v4498, %v4525
        %4527 = vmatmul.bf16.gmra.mxu0 %v336
        %v4528 = vpop.f32.mrf.mxu0
        %v4529 = vadd.f32 %v4501, %v4528
        %v4530 = vpop.f32.mrf.mxu0
        %v4531 = vadd.f32 %v4503, %v4530
        %4532 = vmatmul.bf16.gmra.mxu0 %v352
        %v4533 = vpop.f32.mrf.mxu0
        %v4534 = vadd.f32 %v4506, %v4533
        %v4535 = vpop.f32.mrf.mxu0
        %v4536 = vadd.f32 %v4508, %v4535
        %4537 = vmatmul.bf16.gmra.mxu0 %v368
        %v4538 = vpop.f32.mrf.mxu0
        %v4539 = vadd.f32 %v4511, %v4538
        %v4540 = vpop.f32.mrf.mxu0
        %4541 = vdwg.mxu0
        %4542 = vmatpush.bf16.msra.mxu0 %v2680
        %4543 = vmatpush.bf16.msra.mxu0 %v2676
        %4544 = vmatpush.bf16.msra.mxu0 %v2672
        %4545 = vmatpush.bf16.msra.mxu0 %v2668
        %4546 = vmatpush.bf16.msra.mxu0 %v2664
        %4547 = vmatpush.bf16.msra.mxu0 %v2660
        %4548 = vmatpush.bf16.msra.mxu0 %v2656
        %4549 = vmatpush.bf16.msra.mxu0 %v2652
        %4550 = vmatmul.bf16.gmra.mxu0 %v321
        %v4551 = vpop.f32.mrf.mxu0
        %v4552 = vadd.f32 %v4524, %v4551
        %v4553 = vpop.f32.mrf.mxu0
        %v4554 = vadd.f32 %v4526, %v4553
        %4555 = vmatmul.bf16.gmra.mxu0 %v337
        %v4556 = vpop.f32.mrf.mxu0
        %v4557 = vadd.f32 %v4529, %v4556
        %v4558 = vpop.f32.mrf.mxu0
        %v4559 = vadd.f32 %v4531, %v4558
        %4560 = vmatmul.bf16.gmra.mxu0 %v353
        %v4561 = vpop.f32.mrf.mxu0
        %v4562 = vadd.f32 %v4534, %v4561
        %v4563 = vpop.f32.mrf.mxu0
        %v4564 = vadd.f32 %v4536, %v4563
        %4565 = vmatmul.bf16.gmra.mxu0 %v369
        %v4566 = vpop.f32.mrf.mxu0
        %v4567 = vadd.f32 %v4539, %v4566
        %v4568 = vpop.f32.mrf.mxu0
        %4569 = vdwg.mxu0
        %4570 = vmatpush.bf16.msra.mxu0 %v2712
        %4571 = vmatpush.bf16.msra.mxu0 %v2708
        %4572 = vmatpush.bf16.msra.mxu0 %v2704
        %4573 = vmatpush.bf16.msra.mxu0 %v2700
        %4574 = vmatpush.bf16.msra.mxu0 %v2696
        %4575 = vmatpush.bf16.msra.mxu0 %v2692
        %4576 = vmatpush.bf16.msra.mxu0 %v2688
        %4577 = vmatpush.bf16.msra.mxu0 %v2684
        %4578 = vmatmul.bf16.gmra.mxu0 %v322
        %v4579 = vpop.f32.mrf.mxu0
        %v4580 = vadd.f32 %v4552, %v4579
        %v4581 = vpop.f32.mrf.mxu0
        %v4582 = vadd.f32 %v4554, %v4581
        %4583 = vmatmul.bf16.gmra.mxu0 %v338
        %v4584 = vpop.f32.mrf.mxu0
        %v4585 = vadd.f32 %v4557, %v4584
        %v4586 = vpop.f32.mrf.mxu0
        %v4587 = vadd.f32 %v4559, %v4586
        %4588 = vmatmul.bf16.gmra.mxu0 %v354
        %v4589 = vpop.f32.mrf.mxu0
        %v4590 = vadd.f32 %v4562, %v4589
        %v4591 = vpop.f32.mrf.mxu0
        %v4592 = vadd.f32 %v4564, %v4591
        %4593 = vmatmul.bf16.gmra.mxu0 %v370
        %v4594 = vpop.f32.mrf.mxu0
        %v4595 = vadd.f32 %v4567, %v4594
        %v4596 = vpop.f32.mrf.mxu0
        %4597 = vdwg.mxu0
        %4598 = vmatpush.bf16.msra.mxu0 %v2744
        %4599 = vmatpush.bf16.msra.mxu0 %v2740
        %4600 = vmatpush.bf16.msra.mxu0 %v2736
        %4601 = vmatpush.bf16.msra.mxu0 %v2732
        %4602 = vmatpush.bf16.msra.mxu0 %v2728
        %4603 = vmatpush.bf16.msra.mxu0 %v2724
        %4604 = vmatpush.bf16.msra.mxu0 %v2720
        %4605 = vmatpush.bf16.msra.mxu0 %v2716
        %4606 = vmatmul.bf16.gmra.mxu0 %v323
        %v4607 = vpop.f32.mrf.mxu0
        %v4608 = vadd.f32 %v4580, %v4607
        %v4609 = vpop.f32.mrf.mxu0
        %v4610 = vadd.f32 %v4582, %v4609
        %4611 = vmatmul.bf16.gmra.mxu0 %v339
        %v4612 = vpop.f32.mrf.mxu0
        %v4613 = vadd.f32 %v4585, %v4612
        %v4614 = vpop.f32.mrf.mxu0
        %v4615 = vadd.f32 %v4587, %v4614
        %4616 = vmatmul.bf16.gmra.mxu0 %v355
        %v4617 = vpop.f32.mrf.mxu0
        %v4618 = vadd.f32 %v4590, %v4617
        %v4619 = vpop.f32.mrf.mxu0
        %v4620 = vadd.f32 %v4592, %v4619
        %4621 = vmatmul.bf16.gmra.mxu0 %v371
        %v4622 = vpop.f32.mrf.mxu0
        %v4623 = vadd.f32 %v4595, %v4622
        %v4624 = vpop.f32.mrf.mxu0
        %4625 = vdwg.mxu0
        %4626 = vmatpush.bf16.msra.mxu0 %v2776
        %4627 = vmatpush.bf16.msra.mxu0 %v2772
        %4628 = vmatpush.bf16.msra.mxu0 %v2768
        %4629 = vmatpush.bf16.msra.mxu0 %v2764
        %4630 = vmatpush.bf16.msra.mxu0 %v2760
        %4631 = vmatpush.bf16.msra.mxu0 %v2756
        %4632 = vmatpush.bf16.msra.mxu0 %v2752
        %4633 = vmatpush.bf16.msra.mxu0 %v2748
        %4634 = vmatmul.bf16.gmra.mxu0 %v324
        %v4635 = vpop.f32.mrf.mxu0
        %v4636 = vadd.f32 %v4608, %v4635
        %v4637 = vpop.f32.mrf.mxu0
        %v4638 = vadd.f32 %v4610, %v4637
        %4639 = vmatmul.bf16.gmra.mxu0 %v340
        %v4640 = vpop.f32.mrf.mxu0
        %v4641 = vadd.f32 %v4613, %v4640
        %v4642 = vpop.f32.mrf.mxu0
        %v4643 = vadd.f32 %v4615, %v4642
        %4644 = vmatmul.bf16.gmra.mxu0 %v356
        %v4645 = vpop.f32.mrf.mxu0
        %v4646 = vadd.f32 %v4618, %v4645
        %v4647 = vpop.f32.mrf.mxu0
        %v4648 = vadd.f32 %v4620, %v4647
        %4649 = vmatmul.bf16.gmra.mxu0 %v372
        %v4650 = vpop.f32.mrf.mxu0
        %v4651 = vadd.f32 %v4623, %v4650
        %v4652 = vpop.f32.mrf.mxu0
        %4653 = vdwg.mxu0
        %4654 = vmatpush.bf16.msra.mxu0 %v2808
        %4655 = vmatpush.bf16.msra.mxu0 %v2804
        %4656 = vmatpush.bf16.msra.mxu0 %v2800
        %4657 = vmatpush.bf16.msra.mxu0 %v2796
        %4658 = vmatpush.bf16.msra.mxu0 %v2792
        %4659 = vmatpush.bf16.msra.mxu0 %v2788
        %4660 = vmatpush.bf16.msra.mxu0 %v2784
        %4661 = vmatpush.bf16.msra.mxu0 %v2780
        %4662 = vmatmul.bf16.gmra.mxu0 %v325
        %v4663 = vpop.f32.mrf.mxu0
        %v4664 = vadd.f32 %v4636, %v4663
        %v4665 = vpop.f32.mrf.mxu0
        %v4666 = vadd.f32 %v4638, %v4665
        %4667 = vmatmul.bf16.gmra.mxu0 %v341
        %v4668 = vpop.f32.mrf.mxu0
        %v4669 = vadd.f32 %v4641, %v4668
        %v4670 = vpop.f32.mrf.mxu0
        %v4671 = vadd.f32 %v4643, %v4670
        %4672 = vmatmul.bf16.gmra.mxu0 %v357
        %v4673 = vpop.f32.mrf.mxu0
        %v4674 = vadd.f32 %v4646, %v4673
        %v4675 = vpop.f32.mrf.mxu0
        %v4676 = vadd.f32 %v4648, %v4675
        %4677 = vmatmul.bf16.gmra.mxu0 %v373
        %v4678 = vpop.f32.mrf.mxu0
        %v4679 = vadd.f32 %v4651, %v4678
        %v4680 = vpop.f32.mrf.mxu0
        %4681 = vdwg.mxu0
        %4682 = vmatpush.bf16.msra.mxu0 %v2840
        %4683 = vmatpush.bf16.msra.mxu0 %v2836
        %4684 = vmatpush.bf16.msra.mxu0 %v2832
        %4685 = vmatpush.bf16.msra.mxu0 %v2828
        %4686 = vmatpush.bf16.msra.mxu0 %v2824
        %4687 = vmatpush.bf16.msra.mxu0 %v2820
        %4688 = vmatpush.bf16.msra.mxu0 %v2816
        %4689 = vmatpush.bf16.msra.mxu0 %v2812
        %4690 = vmatmul.bf16.gmra.mxu0 %v326
        %v4691 = vpop.f32.mrf.mxu0
        %v4692 = vadd.f32 %v4664, %v4691
        %v4693 = vpop.f32.mrf.mxu0
        %v4694 = vadd.f32 %v4666, %v4693
        %4695 = vmatmul.bf16.gmra.mxu0 %v342
        %v4696 = vpop.f32.mrf.mxu0
        %v4697 = vadd.f32 %v4669, %v4696
        %v4698 = vpop.f32.mrf.mxu0
        %v4699 = vadd.f32 %v4671, %v4698
        %4700 = vmatmul.bf16.gmra.mxu0 %v358
        %v4701 = vpop.f32.mrf.mxu0
        %v4702 = vadd.f32 %v4674, %v4701
        %v4703 = vpop.f32.mrf.mxu0
        %v4704 = vadd.f32 %v4676, %v4703
        %4705 = vmatmul.bf16.gmra.mxu0 %v374
        %v4706 = vpop.f32.mrf.mxu0
        %v4707 = vadd.f32 %v4679, %v4706
        %v4708 = vpop.f32.mrf.mxu0
        %4709 = vdwg.mxu0
        %4710 = vmatpush.bf16.msra.mxu0 %v2872
        %4711 = vmatpush.bf16.msra.mxu0 %v2868
        %4712 = vmatpush.bf16.msra.mxu0 %v2864
        %4713 = vmatpush.bf16.msra.mxu0 %v2860
        %4714 = vmatpush.bf16.msra.mxu0 %v2856
        %4715 = vmatpush.bf16.msra.mxu0 %v2852
        %4716 = vmatpush.bf16.msra.mxu0 %v2848
        %4717 = vmatpush.bf16.msra.mxu0 %v2844
        %4718 = vmatmul.bf16.gmra.mxu0 %v327
        %v4719 = vpop.f32.mrf.mxu0
        %v4720 = vadd.f32 %v4692, %v4719
        %v4721 = vpop.f32.mrf.mxu0
        %v4722 = vadd.f32 %v4694, %v4721
        %4723 = vmatmul.bf16.gmra.mxu0 %v343
        %v4724 = vpop.f32.mrf.mxu0
        %v4725 = vadd.f32 %v4697, %v4724
        %v4726 = vpop.f32.mrf.mxu0
        %v4727 = vadd.f32 %v4699, %v4726
        %4728 = vmatmul.bf16.gmra.mxu0 %v359
        %v4729 = vpop.f32.mrf.mxu0
        %v4730 = vadd.f32 %v4702, %v4729
        %v4731 = vpop.f32.mrf.mxu0
        %v4732 = vadd.f32 %v4704, %v4731
        %4733 = vmatmul.bf16.gmra.mxu0 %v375
        %v4734 = vpop.f32.mrf.mxu0
        %v4735 = vadd.f32 %v4707, %v4734
        %v4736 = vpop.f32.mrf.mxu0
        %4737 = vdwg.mxu0
        %4738 = vmatpush.bf16.msra.mxu0 %v2904
        %4739 = vmatpush.bf16.msra.mxu0 %v2900
        %4740 = vmatpush.bf16.msra.mxu0 %v2896
        %4741 = vmatpush.bf16.msra.mxu0 %v2892
        %4742 = vmatpush.bf16.msra.mxu0 %v2888
        %4743 = vmatpush.bf16.msra.mxu0 %v2884
        %4744 = vmatpush.bf16.msra.mxu0 %v2880
        %4745 = vmatpush.bf16.msra.mxu0 %v2876
        %4746 = vmatmul.bf16.gmra.mxu0 %v328
        %v4747 = vpop.f32.mrf.mxu0
        %v4748 = vadd.f32 %v4720, %v4747
        %v4749 = vpop.f32.mrf.mxu0
        %v4750 = vadd.f32 %v4722, %v4749
        %4751 = vmatmul.bf16.gmra.mxu0 %v344
        %v4752 = vpop.f32.mrf.mxu0
        %v4753 = vadd.f32 %v4725, %v4752
        %v4754 = vpop.f32.mrf.mxu0
        %v4755 = vadd.f32 %v4727, %v4754
        %4756 = vmatmul.bf16.gmra.mxu0 %v360
        %v4757 = vpop.f32.mrf.mxu0
        %v4758 = vadd.f32 %v4730, %v4757
        %v4759 = vpop.f32.mrf.mxu0
        %v4760 = vadd.f32 %v4732, %v4759
        %4761 = vmatmul.bf16.gmra.mxu0 %v376
        %v4762 = vpop.f32.mrf.mxu0
        %v4763 = vadd.f32 %v4735, %v4762
        %v4764 = vpop.f32.mrf.mxu0
        %4765 = vdwg.mxu0
        %4766 = vmatpush.bf16.msra.mxu0 %v2936
        %4767 = vmatpush.bf16.msra.mxu0 %v2932
        %4768 = vmatpush.bf16.msra.mxu0 %v2928
        %4769 = vmatpush.bf16.msra.mxu0 %v2924
        %4770 = vmatpush.bf16.msra.mxu0 %v2920
        %4771 = vmatpush.bf16.msra.mxu0 %v2916
        %4772 = vmatpush.bf16.msra.mxu0 %v2912
        %4773 = vmatpush.bf16.msra.mxu0 %v2908
        %4774 = vmatmul.bf16.gmra.mxu0 %v329
        %v4775 = vpop.f32.mrf.mxu0
        %v4776 = vadd.f32 %v4748, %v4775
        %v4777 = vpop.f32.mrf.mxu0
        %v4778 = vadd.f32 %v4750, %v4777
        %4779 = vmatmul.bf16.gmra.mxu0 %v345
        %v4780 = vpop.f32.mrf.mxu0
        %v4781 = vadd.f32 %v4753, %v4780
        %v4782 = vpop.f32.mrf.mxu0
        %v4783 = vadd.f32 %v4755, %v4782
        %4784 = vmatmul.bf16.gmra.mxu0 %v361
        %v4785 = vpop.f32.mrf.mxu0
        %v4786 = vadd.f32 %v4758, %v4785
        %v4787 = vpop.f32.mrf.mxu0
        %v4788 = vadd.f32 %v4760, %v4787
        %4789 = vmatmul.bf16.gmra.mxu0 %v377
        %v4790 = vpop.f32.mrf.mxu0
        %v4791 = vadd.f32 %v4763, %v4790
        %v4792 = vpop.f32.mrf.mxu0
        %4793 = vdwg.mxu0
        %4794 = vmatpush.bf16.msra.mxu0 %v2457
        %4795 = vmatpush.bf16.msra.mxu0 %v2453
        %4796 = vmatpush.bf16.msra.mxu0 %v2449
        %4797 = vmatpush.bf16.msra.mxu0 %v2445
        %4798 = vmatpush.bf16.msra.mxu0 %v2441
        %4799 = vmatpush.bf16.msra.mxu0 %v2437
        %4800 = vmatpush.bf16.msra.mxu0 %v2433
        %4801 = vmatpush.bf16.msra.mxu0 %v2429
        %4802 = vmatmul.bf16.gmra.mxu0 %v314
        %v4803 = vpop.f32.mrf.mxu0
        %v4804 = vadd.f32 0.0, %v4803
        %v4805 = vpop.f32.mrf.mxu0
        %v4806 = vadd.f32 0.0, %v4805
        %4807 = vmatmul.bf16.gmra.mxu0 %v330
        %v4808 = vpop.f32.mrf.mxu0
        %v4809 = vadd.f32 0.0, %v4808
        %v4810 = vpop.f32.mrf.mxu0
        %v4811 = vadd.f32 0.0, %v4810
        %4812 = vmatmul.bf16.gmra.mxu0 %v346
        %v4813 = vpop.f32.mrf.mxu0
        %v4814 = vadd.f32 0.0, %v4813
        %v4815 = vpop.f32.mrf.mxu0
        %v4816 = vadd.f32 0.0, %v4815
        %4817 = vmatmul.bf16.gmra.mxu0 %v362
        %v4818 = vpop.f32.mrf.mxu0
        %v4819 = vadd.f32 0.0, %v4818
        %v4820 = vpop.f32.mrf.mxu0
        %4821 = vdwg.mxu0
        %4822 = vmatpush.bf16.msra.mxu0 %v2489
        %4823 = vmatpush.bf16.msra.mxu0 %v2485
        %4824 = vmatpush.bf16.msra.mxu0 %v2481
        %4825 = vmatpush.bf16.msra.mxu0 %v2477
        %4826 = vmatpush.bf16.msra.mxu0 %v2473
        %4827 = vmatpush.bf16.msra.mxu0 %v2469
        %4828 = vmatpush.bf16.msra.mxu0 %v2465
        %4829 = vmatpush.bf16.msra.mxu0 %v2461
        %4830 = vmatmul.bf16.gmra.mxu0 %v315
        %v4831 = vpop.f32.mrf.mxu0
        %v4832 = vadd.f32 %v4804, %v4831
        %v4833 = vpop.f32.mrf.mxu0
        %v4834 = vadd.f32 %v4806, %v4833
        %4835 = vmatmul.bf16.gmra.mxu0 %v331
        %v4836 = vpop.f32.mrf.mxu0
        %v4837 = vadd.f32 %v4809, %v4836
        %v4838 = vpop.f32.mrf.mxu0
        %v4839 = vadd.f32 %v4811, %v4838
        %4840 = vmatmul.bf16.gmra.mxu0 %v347
        %v4841 = vpop.f32.mrf.mxu0
        %v4842 = vadd.f32 %v4814, %v4841
        %v4843 = vpop.f32.mrf.mxu0
        %v4844 = vadd.f32 %v4816, %v4843
        %4845 = vmatmul.bf16.gmra.mxu0 %v363
        %v4846 = vpop.f32.mrf.mxu0
        %v4847 = vadd.f32 %v4819, %v4846
        %v4848 = vpop.f32.mrf.mxu0
        %4849 = vdwg.mxu0
        %4850 = vmatpush.bf16.msra.mxu0 %v2521
        %4851 = vmatpush.bf16.msra.mxu0 %v2517
        %4852 = vmatpush.bf16.msra.mxu0 %v2513
        %4853 = vmatpush.bf16.msra.mxu0 %v2509
        %4854 = vmatpush.bf16.msra.mxu0 %v2505
        %4855 = vmatpush.bf16.msra.mxu0 %v2501
        %4856 = vmatpush.bf16.msra.mxu0 %v2497
        %4857 = vmatpush.bf16.msra.mxu0 %v2493
        %4858 = vmatmul.bf16.gmra.mxu0 %v316
        %v4859 = vpop.f32.mrf.mxu0
        %v4860 = vadd.f32 %v4832, %v4859
        %v4861 = vpop.f32.mrf.mxu0
        %v4862 = vadd.f32 %v4834, %v4861
        %4863 = vmatmul.bf16.gmra.mxu0 %v332
        %v4864 = vpop.f32.mrf.mxu0
        %v4865 = vadd.f32 %v4837, %v4864
        %v4866 = vpop.f32.mrf.mxu0
        %v4867 = vadd.f32 %v4839, %v4866
        %4868 = vmatmul.bf16.gmra.mxu0 %v348
        %v4869 = vpop.f32.mrf.mxu0
        %v4870 = vadd.f32 %v4842, %v4869
        %v4871 = vpop.f32.mrf.mxu0
        %v4872 = vadd.f32 %v4844, %v4871
        %4873 = vmatmul.bf16.gmra.mxu0 %v364
        %v4874 = vpop.f32.mrf.mxu0
        %v4875 = vadd.f32 %v4847, %v4874
        %v4876 = vpop.f32.mrf.mxu0
        %4877 = vdwg.mxu0
        %4878 = vmatpush.bf16.msra.mxu0 %v2553
        %4879 = vmatpush.bf16.msra.mxu0 %v2549
        %4880 = vmatpush.bf16.msra.mxu0 %v2545
        %4881 = vmatpush.bf16.msra.mxu0 %v2541
        %4882 = vmatpush.bf16.msra.mxu0 %v2537
        %4883 = vmatpush.bf16.msra.mxu0 %v2533
        %4884 = vmatpush.bf16.msra.mxu0 %v2529
        %4885 = vmatpush.bf16.msra.mxu0 %v2525
        %4886 = vmatmul.bf16.gmra.mxu0 %v317
        %v4887 = vpop.f32.mrf.mxu0
        %v4888 = vadd.f32 %v4860, %v4887
        %v4889 = vpop.f32.mrf.mxu0
        %v4890 = vadd.f32 %v4862, %v4889
        %4891 = vmatmul.bf16.gmra.mxu0 %v333
        %v4892 = vpop.f32.mrf.mxu0
        %v4893 = vadd.f32 %v4865, %v4892
        %v4894 = vpop.f32.mrf.mxu0
        %v4895 = vadd.f32 %v4867, %v4894
        %4896 = vmatmul.bf16.gmra.mxu0 %v349
        %v4897 = vpop.f32.mrf.mxu0
        %v4898 = vadd.f32 %v4870, %v4897
        %v4899 = vpop.f32.mrf.mxu0
        %v4900 = vadd.f32 %v4872, %v4899
        %4901 = vmatmul.bf16.gmra.mxu0 %v365
        %v4902 = vpop.f32.mrf.mxu0
        %v4903 = vadd.f32 %v4875, %v4902
        %v4904 = vpop.f32.mrf.mxu0
        %4905 = vdwg.mxu0
        %4906 = vmatpush.bf16.msra.mxu0 %v2585
        %4907 = vmatpush.bf16.msra.mxu0 %v2581
        %4908 = vmatpush.bf16.msra.mxu0 %v2577
        %4909 = vmatpush.bf16.msra.mxu0 %v2573
        %4910 = vmatpush.bf16.msra.mxu0 %v2569
        %4911 = vmatpush.bf16.msra.mxu0 %v2565
        %4912 = vmatpush.bf16.msra.mxu0 %v2561
        %4913 = vmatpush.bf16.msra.mxu0 %v2557
        %4914 = vmatmul.bf16.gmra.mxu0 %v318
        %v4915 = vpop.f32.mrf.mxu0
        %v4916 = vadd.f32 %v4888, %v4915
        %v4917 = vpop.f32.mrf.mxu0
        %v4918 = vadd.f32 %v4890, %v4917
        %4919 = vmatmul.bf16.gmra.mxu0 %v334
        %v4920 = vpop.f32.mrf.mxu0
        %v4921 = vadd.f32 %v4893, %v4920
        %v4922 = vpop.f32.mrf.mxu0
        %v4923 = vadd.f32 %v4895, %v4922
        %4924 = vmatmul.bf16.gmra.mxu0 %v350
        %v4925 = vpop.f32.mrf.mxu0
        %v4926 = vadd.f32 %v4898, %v4925
        %v4927 = vpop.f32.mrf.mxu0
        %v4928 = vadd.f32 %v4900, %v4927
        %4929 = vmatmul.bf16.gmra.mxu0 %v366
        %v4930 = vpop.f32.mrf.mxu0
        %v4931 = vadd.f32 %v4903, %v4930
        %v4932 = vpop.f32.mrf.mxu0
        %4933 = vdwg.mxu0
        %4934 = vmatpush.bf16.msra.mxu0 %v2617
        %4935 = vmatpush.bf16.msra.mxu0 %v2613
        %4936 = vmatpush.bf16.msra.mxu0 %v2609
        %4937 = vmatpush.bf16.msra.mxu0 %v2605
        %4938 = vmatpush.bf16.msra.mxu0 %v2601
        %4939 = vmatpush.bf16.msra.mxu0 %v2597
        %4940 = vmatpush.bf16.msra.mxu0 %v2593
        %4941 = vmatpush.bf16.msra.mxu0 %v2589
        %4942 = vmatmul.bf16.gmra.mxu0 %v319
        %v4943 = vpop.f32.mrf.mxu0
        %v4944 = vadd.f32 %v4916, %v4943
        %v4945 = vpop.f32.mrf.mxu0
        %v4946 = vadd.f32 %v4918, %v4945
        %4947 = vmatmul.bf16.gmra.mxu0 %v335
        %v4948 = vpop.f32.mrf.mxu0
        %v4949 = vadd.f32 %v4921, %v4948
        %v4950 = vpop.f32.mrf.mxu0
        %v4951 = vadd.f32 %v4923, %v4950
        %4952 = vmatmul.bf16.gmra.mxu0 %v351
        %v4953 = vpop.f32.mrf.mxu0
        %v4954 = vadd.f32 %v4926, %v4953
        %v4955 = vpop.f32.mrf.mxu0
        %v4956 = vadd.f32 %v4928, %v4955
        %4957 = vmatmul.bf16.gmra.mxu0 %v367
        %v4958 = vpop.f32.mrf.mxu0
        %v4959 = vadd.f32 %v4931, %v4958
        %v4960 = vpop.f32.mrf.mxu0
        %4961 = vdwg.mxu0
        %4962 = vmatpush.bf16.msra.mxu0 %v2649
        %4963 = vmatpush.bf16.msra.mxu0 %v2645
        %4964 = vmatpush.bf16.msra.mxu0 %v2641
        %4965 = vmatpush.bf16.msra.mxu0 %v2637
        %4966 = vmatpush.bf16.msra.mxu0 %v2633
        %4967 = vmatpush.bf16.msra.mxu0 %v2629
        %4968 = vmatpush.bf16.msra.mxu0 %v2625
        %4969 = vmatpush.bf16.msra.mxu0 %v2621
        %4970 = vmatmul.bf16.gmra.mxu0 %v320
        %v4971 = vpop.f32.mrf.mxu0
        %v4972 = vadd.f32 %v4944, %v4971
        %v4973 = vpop.f32.mrf.mxu0
        %v4974 = vadd.f32 %v4946, %v4973
        %4975 = vmatmul.bf16.gmra.mxu0 %v336
        %v4976 = vpop.f32.mrf.mxu0
        %v4977 = vadd.f32 %v4949, %v4976
        %v4978 = vpop.f32.mrf.mxu0
        %v4979 = vadd.f32 %v4951, %v4978
        %4980 = vmatmul.bf16.gmra.mxu0 %v352
        %v4981 = vpop.f32.mrf.mxu0
        %v4982 = vadd.f32 %v4954, %v4981
        %v4983 = vpop.f32.mrf.mxu0
        %v4984 = vadd.f32 %v4956, %v4983
        %4985 = vmatmul.bf16.gmra.mxu0 %v368
        %v4986 = vpop.f32.mrf.mxu0
        %v4987 = vadd.f32 %v4959, %v4986
        %v4988 = vpop.f32.mrf.mxu0
        %4989 = vdwg.mxu0
        %4990 = vmatpush.bf16.msra.mxu0 %v2681
        %4991 = vmatpush.bf16.msra.mxu0 %v2677
        %4992 = vmatpush.bf16.msra.mxu0 %v2673
        %4993 = vmatpush.bf16.msra.mxu0 %v2669
        %4994 = vmatpush.bf16.msra.mxu0 %v2665
        %4995 = vmatpush.bf16.msra.mxu0 %v2661
        %4996 = vmatpush.bf16.msra.mxu0 %v2657
        %4997 = vmatpush.bf16.msra.mxu0 %v2653
        %4998 = vmatmul.bf16.gmra.mxu0 %v321
        %v4999 = vpop.f32.mrf.mxu0
        %v5000 = vadd.f32 %v4972, %v4999
        %v5001 = vpop.f32.mrf.mxu0
        %v5002 = vadd.f32 %v4974, %v5001
        %5003 = vmatmul.bf16.gmra.mxu0 %v337
        %v5004 = vpop.f32.mrf.mxu0
        %v5005 = vadd.f32 %v4977, %v5004
        %v5006 = vpop.f32.mrf.mxu0
        %v5007 = vadd.f32 %v4979, %v5006
        %5008 = vmatmul.bf16.gmra.mxu0 %v353
        %v5009 = vpop.f32.mrf.mxu0
        %v5010 = vadd.f32 %v4982, %v5009
        %v5011 = vpop.f32.mrf.mxu0
        %v5012 = vadd.f32 %v4984, %v5011
        %5013 = vmatmul.bf16.gmra.mxu0 %v369
        %v5014 = vpop.f32.mrf.mxu0
        %v5015 = vadd.f32 %v4987, %v5014
        %v5016 = vpop.f32.mrf.mxu0
        %5017 = vdwg.mxu0
        %5018 = vmatpush.bf16.msra.mxu0 %v2713
        %5019 = vmatpush.bf16.msra.mxu0 %v2709
        %5020 = vmatpush.bf16.msra.mxu0 %v2705
        %5021 = vmatpush.bf16.msra.mxu0 %v2701
        %5022 = vmatpush.bf16.msra.mxu0 %v2697
        %5023 = vmatpush.bf16.msra.mxu0 %v2693
        %5024 = vmatpush.bf16.msra.mxu0 %v2689
        %5025 = vmatpush.bf16.msra.mxu0 %v2685
        %5026 = vmatmul.bf16.gmra.mxu0 %v322
        %v5027 = vpop.f32.mrf.mxu0
        %v5028 = vadd.f32 %v5000, %v5027
        %v5029 = vpop.f32.mrf.mxu0
        %v5030 = vadd.f32 %v5002, %v5029
        %5031 = vmatmul.bf16.gmra.mxu0 %v338
        %v5032 = vpop.f32.mrf.mxu0
        %v5033 = vadd.f32 %v5005, %v5032
        %v5034 = vpop.f32.mrf.mxu0
        %v5035 = vadd.f32 %v5007, %v5034
        %5036 = vmatmul.bf16.gmra.mxu0 %v354
        %v5037 = vpop.f32.mrf.mxu0
        %v5038 = vadd.f32 %v5010, %v5037
        %v5039 = vpop.f32.mrf.mxu0
        %v5040 = vadd.f32 %v5012, %v5039
        %5041 = vmatmul.bf16.gmra.mxu0 %v370
        %v5042 = vpop.f32.mrf.mxu0
        %v5043 = vadd.f32 %v5015, %v5042
        %v5044 = vpop.f32.mrf.mxu0
        %5045 = vdwg.mxu0
        %5046 = vmatpush.bf16.msra.mxu0 %v2745
        %5047 = vmatpush.bf16.msra.mxu0 %v2741
        %5048 = vmatpush.bf16.msra.mxu0 %v2737
        %5049 = vmatpush.bf16.msra.mxu0 %v2733
        %5050 = vmatpush.bf16.msra.mxu0 %v2729
        %5051 = vmatpush.bf16.msra.mxu0 %v2725
        %5052 = vmatpush.bf16.msra.mxu0 %v2721
        %5053 = vmatpush.bf16.msra.mxu0 %v2717
        %5054 = vmatmul.bf16.gmra.mxu0 %v323
        %v5055 = vpop.f32.mrf.mxu0
        %v5056 = vadd.f32 %v5028, %v5055
        %v5057 = vpop.f32.mrf.mxu0
        %v5058 = vadd.f32 %v5030, %v5057
        %5059 = vmatmul.bf16.gmra.mxu0 %v339
        %v5060 = vpop.f32.mrf.mxu0
        %v5061 = vadd.f32 %v5033, %v5060
        %v5062 = vpop.f32.mrf.mxu0
        %v5063 = vadd.f32 %v5035, %v5062
        %5064 = vmatmul.bf16.gmra.mxu0 %v355
        %v5065 = vpop.f32.mrf.mxu0
        %v5066 = vadd.f32 %v5038, %v5065
        %v5067 = vpop.f32.mrf.mxu0
        %v5068 = vadd.f32 %v5040, %v5067
        %5069 = vmatmul.bf16.gmra.mxu0 %v371
        %v5070 = vpop.f32.mrf.mxu0
        %v5071 = vadd.f32 %v5043, %v5070
        %v5072 = vpop.f32.mrf.mxu0
        %5073 = vdwg.mxu0
        %5074 = vmatpush.bf16.msra.mxu0 %v2777
        %5075 = vmatpush.bf16.msra.mxu0 %v2773
        %5076 = vmatpush.bf16.msra.mxu0 %v2769
        %5077 = vmatpush.bf16.msra.mxu0 %v2765
        %5078 = vmatpush.bf16.msra.mxu0 %v2761
        %5079 = vmatpush.bf16.msra.mxu0 %v2757
        %5080 = vmatpush.bf16.msra.mxu0 %v2753
        %5081 = vmatpush.bf16.msra.mxu0 %v2749
        %5082 = vmatmul.bf16.gmra.mxu0 %v324
        %v5083 = vpop.f32.mrf.mxu0
        %v5084 = vadd.f32 %v5056, %v5083
        %v5085 = vpop.f32.mrf.mxu0
        %v5086 = vadd.f32 %v5058, %v5085
        %5087 = vmatmul.bf16.gmra.mxu0 %v340
        %v5088 = vpop.f32.mrf.mxu0
        %v5089 = vadd.f32 %v5061, %v5088
        %v5090 = vpop.f32.mrf.mxu0
        %v5091 = vadd.f32 %v5063, %v5090
        %5092 = vmatmul.bf16.gmra.mxu0 %v356
        %v5093 = vpop.f32.mrf.mxu0
        %v5094 = vadd.f32 %v5066, %v5093
        %v5095 = vpop.f32.mrf.mxu0
        %v5096 = vadd.f32 %v5068, %v5095
        %5097 = vmatmul.bf16.gmra.mxu0 %v372
        %v5098 = vpop.f32.mrf.mxu0
        %v5099 = vadd.f32 %v5071, %v5098
        %v5100 = vpop.f32.mrf.mxu0
        %5101 = vdwg.mxu0
        %5102 = vmatpush.bf16.msra.mxu0 %v2809
        %5103 = vmatpush.bf16.msra.mxu0 %v2805
        %5104 = vmatpush.bf16.msra.mxu0 %v2801
        %5105 = vmatpush.bf16.msra.mxu0 %v2797
        %5106 = vmatpush.bf16.msra.mxu0 %v2793
        %5107 = vmatpush.bf16.msra.mxu0 %v2789
        %5108 = vmatpush.bf16.msra.mxu0 %v2785
        %5109 = vmatpush.bf16.msra.mxu0 %v2781
        %5110 = vmatmul.bf16.gmra.mxu0 %v325
        %v5111 = vpop.f32.mrf.mxu0
        %v5112 = vadd.f32 %v5084, %v5111
        %v5113 = vpop.f32.mrf.mxu0
        %v5114 = vadd.f32 %v5086, %v5113
        %5115 = vmatmul.bf16.gmra.mxu0 %v341
        %v5116 = vpop.f32.mrf.mxu0
        %v5117 = vadd.f32 %v5089, %v5116
        %v5118 = vpop.f32.mrf.mxu0
        %v5119 = vadd.f32 %v5091, %v5118
        %5120 = vmatmul.bf16.gmra.mxu0 %v357
        %v5121 = vpop.f32.mrf.mxu0
        %v5122 = vadd.f32 %v5094, %v5121
        %v5123 = vpop.f32.mrf.mxu0
        %v5124 = vadd.f32 %v5096, %v5123
        %5125 = vmatmul.bf16.gmra.mxu0 %v373
        %v5126 = vpop.f32.mrf.mxu0
        %v5127 = vadd.f32 %v5099, %v5126
        %v5128 = vpop.f32.mrf.mxu0
        %5129 = vdwg.mxu0
        %5130 = vmatpush.bf16.msra.mxu0 %v2841
        %5131 = vmatpush.bf16.msra.mxu0 %v2837
        %5132 = vmatpush.bf16.msra.mxu0 %v2833
        %5133 = vmatpush.bf16.msra.mxu0 %v2829
        %5134 = vmatpush.bf16.msra.mxu0 %v2825
        %5135 = vmatpush.bf16.msra.mxu0 %v2821
        %5136 = vmatpush.bf16.msra.mxu0 %v2817
        %5137 = vmatpush.bf16.msra.mxu0 %v2813
        %5138 = vmatmul.bf16.gmra.mxu0 %v326
        %v5139 = vpop.f32.mrf.mxu0
        %v5140 = vadd.f32 %v5112, %v5139
        %v5141 = vpop.f32.mrf.mxu0
        %v5142 = vadd.f32 %v5114, %v5141
        %5143 = vmatmul.bf16.gmra.mxu0 %v342
        %v5144 = vpop.f32.mrf.mxu0
        %v5145 = vadd.f32 %v5117, %v5144
        %v5146 = vpop.f32.mrf.mxu0
        %v5147 = vadd.f32 %v5119, %v5146
        %5148 = vmatmul.bf16.gmra.mxu0 %v358
        %v5149 = vpop.f32.mrf.mxu0
        %v5150 = vadd.f32 %v5122, %v5149
        %v5151 = vpop.f32.mrf.mxu0
        %v5152 = vadd.f32 %v5124, %v5151
        %5153 = vmatmul.bf16.gmra.mxu0 %v374
        %v5154 = vpop.f32.mrf.mxu0
        %v5155 = vadd.f32 %v5127, %v5154
        %v5156 = vpop.f32.mrf.mxu0
        %5157 = vdwg.mxu0
        %5158 = vmatpush.bf16.msra.mxu0 %v2873
        %5159 = vmatpush.bf16.msra.mxu0 %v2869
        %5160 = vmatpush.bf16.msra.mxu0 %v2865
        %5161 = vmatpush.bf16.msra.mxu0 %v2861
        %5162 = vmatpush.bf16.msra.mxu0 %v2857
        %5163 = vmatpush.bf16.msra.mxu0 %v2853
        %5164 = vmatpush.bf16.msra.mxu0 %v2849
        %5165 = vmatpush.bf16.msra.mxu0 %v2845
        %5166 = vmatmul.bf16.gmra.mxu0 %v327
        %v5167 = vpop.f32.mrf.mxu0
        %v5168 = vadd.f32 %v5140, %v5167
        %v5169 = vpop.f32.mrf.mxu0
        %v5170 = vadd.f32 %v5142, %v5169
        %5171 = vmatmul.bf16.gmra.mxu0 %v343
        %v5172 = vpop.f32.mrf.mxu0
        %v5173 = vadd.f32 %v5145, %v5172
        %v5174 = vpop.f32.mrf.mxu0
        %v5175 = vadd.f32 %v5147, %v5174
        %5176 = vmatmul.bf16.gmra.mxu0 %v359
        %v5177 = vpop.f32.mrf.mxu0
        %v5178 = vadd.f32 %v5150, %v5177
        %v5179 = vpop.f32.mrf.mxu0
        %v5180 = vadd.f32 %v5152, %v5179
        %5181 = vmatmul.bf16.gmra.mxu0 %v375
        %v5182 = vpop.f32.mrf.mxu0
        %v5183 = vadd.f32 %v5155, %v5182
        %v5184 = vpop.f32.mrf.mxu0
        %5185 = vdwg.mxu0
        %5186 = vmatpush.bf16.msra.mxu0 %v2905
        %5187 = vmatpush.bf16.msra.mxu0 %v2901
        %5188 = vmatpush.bf16.msra.mxu0 %v2897
        %5189 = vmatpush.bf16.msra.mxu0 %v2893
        %5190 = vmatpush.bf16.msra.mxu0 %v2889
        %5191 = vmatpush.bf16.msra.mxu0 %v2885
        %5192 = vmatpush.bf16.msra.mxu0 %v2881
        %5193 = vmatpush.bf16.msra.mxu0 %v2877
        %5194 = vmatmul.bf16.gmra.mxu0 %v328
        %v5195 = vpop.f32.mrf.mxu0
        %v5196 = vadd.f32 %v5168, %v5195
        %v5197 = vpop.f32.mrf.mxu0
        %v5198 = vadd.f32 %v5170, %v5197
        %5199 = vmatmul.bf16.gmra.mxu0 %v344
        %v5200 = vpop.f32.mrf.mxu0
        %v5201 = vadd.f32 %v5173, %v5200
        %v5202 = vpop.f32.mrf.mxu0
        %v5203 = vadd.f32 %v5175, %v5202
        %5204 = vmatmul.bf16.gmra.mxu0 %v360
        %v5205 = vpop.f32.mrf.mxu0
        %v5206 = vadd.f32 %v5178, %v5205
        %v5207 = vpop.f32.mrf.mxu0
        %v5208 = vadd.f32 %v5180, %v5207
        %5209 = vmatmul.bf16.gmra.mxu0 %v376
        %v5210 = vpop.f32.mrf.mxu0
        %v5211 = vadd.f32 %v5183, %v5210
        %v5212 = vpop.f32.mrf.mxu0
        %5213 = vdwg.mxu0
        %5214 = vmatpush.bf16.msra.mxu0 %v2937
        %5215 = vmatpush.bf16.msra.mxu0 %v2933
        %5216 = vmatpush.bf16.msra.mxu0 %v2929
        %5217 = vmatpush.bf16.msra.mxu0 %v2925
        %5218 = vmatpush.bf16.msra.mxu0 %v2921
        %5219 = vmatpush.bf16.msra.mxu0 %v2917
        %5220 = vmatpush.bf16.msra.mxu0 %v2913
        %5221 = vmatpush.bf16.msra.mxu0 %v2909
        %5222 = vmatmul.bf16.gmra.mxu0 %v329
        %v5223 = vpop.f32.mrf.mxu0
        %v5224 = vadd.f32 %v5196, %v5223
        %v5225 = vpop.f32.mrf.mxu0
        %v5226 = vadd.f32 %v5198, %v5225
        %5227 = vmatmul.bf16.gmra.mxu0 %v345
        %v5228 = vpop.f32.mrf.mxu0
        %v5229 = vadd.f32 %v5201, %v5228
        %v5230 = vpop.f32.mrf.mxu0
        %v5231 = vadd.f32 %v5203, %v5230
        %5232 = vmatmul.bf16.gmra.mxu0 %v361
        %v5233 = vpop.f32.mrf.mxu0
        %v5234 = vadd.f32 %v5206, %v5233
        %v5235 = vpop.f32.mrf.mxu0
        %v5236 = vadd.f32 %v5208, %v5235
        %5237 = vmatmul.bf16.gmra.mxu0 %v377
        %v5238 = vpop.f32.mrf.mxu0
        %v5239 = vadd.f32 %v5211, %v5238
        %v5240 = vpop.f32.mrf.mxu0
        %5241 = vdwg.mxu0
        %v5242 = vmul.f32 %v3880, %v3880
        %v5243 = vmul.f32 %v4328, %v4328
        %v5244 = vmul.f32 %v4776, %v4776
        %v5245 = vmul.f32 %v5224, %v5224
        %v5246 = vmul.f32 %v3882, %v3882
        %v5247 = vmul.f32 %v4330, %v4330
        %v5248 = vmul.f32 %v4778, %v4778
        %v5249 = vmul.f32 %v5226, %v5226
        %v5250 = vmul.f32 %v3885, %v3885
        %v5251 = vmul.f32 %v4333, %v4333
        %v5252 = vmul.f32 %v4781, %v4781
        %v5253 = vmul.f32 %v5229, %v5229
        %v5254 = vmul.f32 %v3887, %v3887
        %v5255 = vmul.f32 %v4335, %v4335
        %v5256 = vmul.f32 %v4783, %v4783
        %v5257 = vmul.f32 %v5231, %v5231
        %v5258 = vmul.f32 %v3890, %v3890
        %v5259 = vmul.f32 %v4338, %v4338
        %v5260 = vmul.f32 %v4786, %v4786
        %v5261 = vmul.f32 %v5234, %v5234
        %v5262 = vmul.f32 %v3892, %v3892
        %v5263 = vmul.f32 %v4340, %v4340
        %v5264 = vmul.f32 %v4788, %v4788
        %v5265 = vmul.f32 %v5236, %v5236
        %v5266 = vmul.f32 %v3895, %v3895
        %v5267 = vmul.f32 %v4343, %v4343
        %v5268 = vmul.f32 %v4791, %v4791
        %v5269 = vmul.f32 %v5239, %v5239
        %v5270 = vadd.f32 %v5242, %v5243
        %v5271 = vadd.f32 %v5270, %v5244
        %v5272 = vadd.f32 %v5271, %v5245
        %5273 = vadd.xlane.f32.xlu0 %v5272
        %v5274 = vpop.xlane.xlu0 %5273
        %v5275 = vadd.f32 %v5246, %v5247
        %v5276 = vadd.f32 %v5275, %v5248
        %v5277 = vadd.f32 %v5276, %v5249
        %5278 = vadd.xlane.f32.xlu0 %v5277
        %v5279 = vpop.xlane.xlu0 %5278
        %v5280 = vadd.f32 %v5250, %v5251
        %v5281 = vadd.f32 %v5280, %v5252
        %v5282 = vadd.f32 %v5281, %v5253
        %5283 = vadd.xlane.f32.xlu0 %v5282
        %v5284 = vpop.xlane.xlu0 %5283
        %v5285 = vadd.f32 %v5254, %v5255
        %v5286 = vadd.f32 %v5285, %v5256
        %v5287 = vadd.f32 %v5286, %v5257
        %5288 = vadd.xlane.f32.xlu0 %v5287
        %v5289 = vpop.xlane.xlu0 %5288
        %v5290 = vadd.f32 %v5258, %v5259
        %v5291 = vadd.f32 %v5290, %v5260
        %v5292 = vadd.f32 %v5291, %v5261
        %5293 = vadd.xlane.f32.xlu0 %v5292
        %v5294 = vpop.xlane.xlu0 %5293
        %v5295 = vadd.f32 %v5262, %v5263
        %v5296 = vadd.f32 %v5295, %v5264
        %v5297 = vadd.f32 %v5296, %v5265
        %5298 = vadd.xlane.f32.xlu0 %v5297
        %v5299 = vpop.xlane.xlu0 %5298
        %v5300 = vadd.f32 %v5266, %v5267
        %v5301 = vadd.f32 %v5300, %v5268
        %v5302 = vadd.f32 %v5301, %v5269
        %5303 = vadd.xlane.f32.xlu0 %v5302
        %v5304 = vpop.xlane.xlu0 %5303
        %v5305 = vmax.f32 %v5274, 1e-24
        %v5306 = vmax.f32 %v5279, 1e-24
        %v5307 = vmax.f32 %v5284, 1e-24
        %v5308 = vmax.f32 %v5289, 1e-24
        %v5309 = vmax.f32 %v5294, 1e-24
        %v5310 = vmax.f32 %v5299, 1e-24
        %v5311 = vmax.f32 %v5304, 1e-24
        %v5312 = vrsqrt.pop %v5305
        %v5313 = vmul.f32 %v5312, %v5305
        %v5314 = vmul.f32 %v5313, %v5312
        %v5315 = vmul.f32 0.5, %v5314
        %v5316 = vsub.f32 1.5, %v5315
        %v5317 = vmul.f32 %v5312, %v5316
        %vm5318 = vweird.f32 %v5305
        %vm5319 = vweird.f32 %v5312
        %vm5320 = vmor %vm5318, %vm5319
        %v5321 = vsel %vm5320, %v5312, %v5317
        %v5322 = vrsqrt.pop %v5306
        %v5323 = vmul.f32 %v5322, %v5306
        %v5324 = vmul.f32 %v5323, %v5322
        %v5325 = vmul.f32 0.5, %v5324
        %v5326 = vsub.f32 1.5, %v5325
        %v5327 = vmul.f32 %v5322, %v5326
        %vm5328 = vweird.f32 %v5306
        %vm5329 = vweird.f32 %v5322
        %vm5330 = vmor %vm5328, %vm5329
        %v5331 = vsel %vm5330, %v5322, %v5327
        %v5332 = vrsqrt.pop %v5307
        %v5333 = vmul.f32 %v5332, %v5307
        %v5334 = vmul.f32 %v5333, %v5332
        %v5335 = vmul.f32 0.5, %v5334
        %v5336 = vsub.f32 1.5, %v5335
        %v5337 = vmul.f32 %v5332, %v5336
        %vm5338 = vweird.f32 %v5307
        %vm5339 = vweird.f32 %v5332
        %vm5340 = vmor %vm5338, %vm5339
        %v5341 = vsel %vm5340, %v5332, %v5337
        %v5342 = vrsqrt.pop %v5308
        %v5343 = vmul.f32 %v5342, %v5308
        %v5344 = vmul.f32 %v5343, %v5342
        %v5345 = vmul.f32 0.5, %v5344
        %v5346 = vsub.f32 1.5, %v5345
        %v5347 = vmul.f32 %v5342, %v5346
        %vm5348 = vweird.f32 %v5308
        %vm5349 = vweird.f32 %v5342
        %vm5350 = vmor %vm5348, %vm5349
        %v5351 = vsel %vm5350, %v5342, %v5347
        %v5352 = vrsqrt.pop %v5309
        %v5353 = vmul.f32 %v5352, %v5309
        %v5354 = vmul.f32 %v5353, %v5352
        %v5355 = vmul.f32 0.5, %v5354
        %v5356 = vsub.f32 1.5, %v5355
        %v5357 = vmul.f32 %v5352, %v5356
        %vm5358 = vweird.f32 %v5309
        %vm5359 = vweird.f32 %v5352
        %vm5360 = vmor %vm5358, %vm5359
        %v5361 = vsel %vm5360, %v5352, %v5357
        %v5362 = vrsqrt.pop %v5310
        %v5363 = vmul.f32 %v5362, %v5310
        %v5364 = vmul.f32 %v5363, %v5362
        %v5365 = vmul.f32 0.5, %v5364
        %v5366 = vsub.f32 1.5, %v5365
        %v5367 = vmul.f32 %v5362, %v5366
        %vm5368 = vweird.f32 %v5310
        %vm5369 = vweird.f32 %v5362
        %vm5370 = vmor %vm5368, %vm5369
        %v5371 = vsel %vm5370, %v5362, %v5367
        %v5372 = vrsqrt.pop %v5311
        %v5373 = vmul.f32 %v5372, %v5311
        %v5374 = vmul.f32 %v5373, %v5372
        %v5375 = vmul.f32 0.5, %v5374
        %v5376 = vsub.f32 1.5, %v5375
        %v5377 = vmul.f32 %v5372, %v5376
        %vm5378 = vweird.f32 %v5311
        %vm5379 = vweird.f32 %v5372
        %vm5380 = vmor %vm5378, %vm5379
        %v5381 = vsel %vm5380, %v5372, %v5377
        %v5382 = vmul.f32 %v3880, %v5321
        %v5383 = vmul.f32 %v4328, %v5321
        %v5384 = vmul.f32 %v4776, %v5321
        %v5385 = vmul.f32 %v5224, %v5321
        %v5386 = vmul.f32 %v3882, %v5331
        %v5387 = vmul.f32 %v4330, %v5331
        %v5388 = vmul.f32 %v4778, %v5331
        %v5389 = vmul.f32 %v5226, %v5331
        %v5390 = vmul.f32 %v3885, %v5341
        %v5391 = vmul.f32 %v4333, %v5341
        %v5392 = vmul.f32 %v4781, %v5341
        %v5393 = vmul.f32 %v5229, %v5341
        %v5394 = vmul.f32 %v3887, %v5351
        %v5395 = vmul.f32 %v4335, %v5351
        %v5396 = vmul.f32 %v4783, %v5351
        %v5397 = vmul.f32 %v5231, %v5351
        %v5398 = vmul.f32 %v3890, %v5361
        %v5399 = vmul.f32 %v4338, %v5361
        %v5400 = vmul.f32 %v4786, %v5361
        %v5401 = vmul.f32 %v5234, %v5361
        %v5402 = vmul.f32 %v3892, %v5371
        %v5403 = vmul.f32 %v4340, %v5371
        %v5404 = vmul.f32 %v4788, %v5371
        %v5405 = vmul.f32 %v5236, %v5371
        %v5406 = vmul.f32 %v3895, %v5381
        %v5407 = vmul.f32 %v4343, %v5381
        %v5408 = vmul.f32 %v4791, %v5381
        %v5409 = vmul.f32 %v5239, %v5381
        %5410 = vst [vmem:[%s189] sm:$0xff] %v5382
        %5411 = vst [vmem:[%s189 + $0x8] sm:$0xff] %v5383
        %5412 = vst [vmem:[%s189 + $0x10] sm:$0xff] %v5384
        %5413 = vst [vmem:[%s189 + $0x18] sm:$0xff] %v5385
        %5414 = vst [vmem:[%s189 + $0x20] sm:$0xff] %v5386
        %5415 = vst [vmem:[%s189 + $0x28] sm:$0xff] %v5387
        %5416 = vst [vmem:[%s189 + $0x30] sm:$0xff] %v5388
        %5417 = vst [vmem:[%s189 + $0x38] sm:$0xff] %v5389
        %5418 = vst [vmem:[%s189 + $0x40] sm:$0xff] %v5390
        %5419 = vst [vmem:[%s189 + $0x48] sm:$0xff] %v5391
        %5420 = vst [vmem:[%s189 + $0x50] sm:$0xff] %v5392
        %5421 = vst [vmem:[%s189 + $0x58] sm:$0xff] %v5393
        %5422 = vst [vmem:[%s189 + $0x60] sm:$0xff] %v5394
        %5423 = vst [vmem:[%s189 + $0x68] sm:$0xff] %v5395
        %5424 = vst [vmem:[%s189 + $0x70] sm:$0xff] %v5396
        %5425 = vst [vmem:[%s189 + $0x78] sm:$0xff] %v5397
        %5426 = vst [vmem:[%s189 + $0x80] sm:$0xff] %v5398
        %5427 = vst [vmem:[%s189 + $0x88] sm:$0xff] %v5399
        %5428 = vst [vmem:[%s189 + $0x90] sm:$0xff] %v5400
        %5429 = vst [vmem:[%s189 + $0x98] sm:$0xff] %v5401
        %5430 = vst [vmem:[%s189 + $0xa0] sm:$0xff] %v5402
        %5431 = vst [vmem:[%s189 + $0xa8] sm:$0xff] %v5403
        %5432 = vst [vmem:[%s189 + $0xb0] sm:$0xff] %v5404
        %5433 = vst [vmem:[%s189 + $0xb8] sm:$0xff] %v5405
        %5434 = vst [vmem:[%s189 + $0xc0] sm:$0xff] %v5406
        %5435 = vst [vmem:[%s189 + $0xc8] sm:$0xff] %v5407
        %5436 = vst [vmem:[%s189 + $0xd0] sm:$0xff] %v5408
        %5437 = vst [vmem:[%s189 + $0xd8] sm:$0xff] %v5409
        %s5438 = sand.u32 %s75, 1
        %s5439 = scalar_lea.sflag [#allocation4], %s5438
        %s5440 = sand.u32 %s75, 1
        %s5441 = smul.addr %s5440, 224
        %s5442 = scalar_lea.vmem [#allocation7], %s5441
        // Predicated region
        $region37: #{_projection_forward.1} parent=27 // pred_check
          %p5443 = pneg %p85
        $region38: #{_projection_forward.1} parent=27 // pred_check_branch
          %5445 = sbr.rel (%p5443) target = $region40
        $region39: #{_projection_forward.1} parent=27 // pred_region
          %s5446 = smul.u32 7, %s20
          %s5447 = ssub.s32 25, %s5446
          %p5448 = scmp.lt.s32.totalorder %s5447, 7
          %s5449 = scalar_select %p5448, %s5447, 7
          %s5450 = smul.u32 8, %s5449
          %s5451 = smul.u32 %s5450, 4
          %s5452 = ssub.s32 224, %s5451
          %s5453 = sshll.u32 %s5452, 4
          %5454 = vsyncadd %s5439, %s5453
          %p5455 = scmp.ne.s32.totalorder 0, %s5451
          %s5456 = smul.addr %s5446, 4
          %s5457 = smul.addr %s5456, 8
          %s5458 = scalar_lea.hbm %s2, %s5457
          %s5459 = smul.u32 32, %s5449
          %s5460 = sshll.u32 %s5442, 4
          %s5461 = int_to_ptr.vmem [resolvable:$true] %s5460
          %s5462 = sshll.u32 %s5458, 4
          %s5463 = int_to_ptr.hbm [resolvable:$true] %s5462
          %s5464 = sshll.u32 %s5459, 4
          %5468 = dma.vmem_to_hbm [thread:$0]  (%p5455), %s5461, %s5464, %s5463, %s5439, 512, 512, 32
        $region40: #{_projection_forward.1} parent=27 // pred_fallthru
          _
      $region28: #{_projection_forward.1} parent=5 // pred_fallthru
        _
      %p5469 = scmp.le.s32.totalorder 2, %s15
      // Predicated region
      $region41: #{_projection_forward.1} parent=5 // pred_check
        %p5470 = pneg %p5469
      $region42: #{_projection_forward.1} parent=5 // pred_check_branch
        %5472 = sbr.rel (%p5470) target = $region44
      $region43: #{_projection_forward.1} parent=5 // pred_region
        %s5473 = ssub.s32 %s15, 2
        // Predicated region
        $region45: #{_projection_forward.1} parent=43 // pred_check
          %p5474 = pneg %p91
        $region46: #{_projection_forward.1} parent=43 // pred_check_branch
          %5476 = sbr.rel (%p5474) target = $region48
        $region47: #{_projection_forward.1} parent=43 // pred_region
          %s5477 = sand.u32 %s76, 1
          %s5478 = scalar_lea.sflag [#allocation4], %s5477
          %s5479 = sand.u32 %s76, 1
          %s5480 = smul.addr %s5479, 224
          %s5481 = scalar_lea.vmem [#allocation7], %s5480
          %5483 = dma.done %s5478, 3584
        $region48: #{_projection_forward.1} parent=43 // pred_fallthru
          _
      $region44: #{_projection_forward.1} parent=5 // pred_fallthru
        _
    $region6: #{_projection_forward.1} parent=1 // loop_footer
      %s19 = sadd.s32 1, %s15
    $region7: #{_projection_forward.1} parent=1 // loop_footer_branch
      %14 = sbr.rel target = $region3
    $region8: #{_projection_forward.1} parent=1 // loop_exit
      _
    %5484 = vsyncpa [#allocation3], 1
    %s5485 = scalar_lea.sflag [#allocation3], 1
    %5486 = vsyncpa %s5485, 1
    %5487 = vsyncpa [#allocation6], 1
    %5488 = vsyncpa [#allocation4], 1
    %s5489 = scalar_lea.sflag [#allocation4], 1
    %5490 = vsyncpa %s5489, 1

</llo_original>
